<compile_context>
chip_gen: v5e
topology: v5e:2x2
jax: 0.10.0
libtpu: 0.0.40
codegen_flags: <defaults>
</compile_context>

<pallas_src>
import functools

import jax
import jax.numpy as jnp
import numpy as np
from jax.experimental import pallas as pl
from jax.experimental.pallas import tpu as pltpu

# ----------------------------- model sizes ---------------------------------
EMB = 32        # embed_size
HID = 32        # hidden_size
V_SRC = 40      # len(vocab.src)
V_TGT = 48      # len(vocab.tgt)
V_PAD = 128     # vocab projection / embedding tables padded to one lane tile
PAD = 0         # '<pad>' id in both vocabs

_VMEM_SPEC = pl.BlockSpec(memory_space=pltpu.MemorySpace.VMEM)


# ============================ fused Pallas kernel ===========================

def nmt_fused_kernel(lens_col_ref, lens_row_ref, src_ids_ref, tgt_ids_ref,
                     gold_ref, src_emb_ref, tgt_emb_ref,
                     w_enc_ref, bf_ref, bb_ref, w_dec_ref, bd_ref,
                     wh_ref, wc_ref, watt_ref, wcomb_ref, wvoc_ref,
                     scores_ref, enc_scr,
                     *, S, B, Tm1, E, H, V, pad_id):
    f32 = jnp.float32
    EH = E + H
    Vrow = src_emb_ref.shape[0]          # 128 padded embedding rows
    Vp = wvoc_ref.shape[1]               # 128 padded vocab lanes

    lens_col = lens_col_ref[...]         # (B, 1) int32
    lens_row = lens_row_ref[...]         # (1, B) int32

    # ---- in-kernel embedding lookups: one-hot (rows,128)@(128,E) matmuls ----
    src_oh = (jax.lax.broadcasted_iota(jnp.int32, (S * B, Vrow), 1)
              == src_ids_ref[...]).astype(f32)
    Xsrc = jnp.dot(src_oh, src_emb_ref[...], preferred_element_type=f32)
    tgt_oh = (jax.lax.broadcasted_iota(jnp.int32, (Tm1 * B, Vrow), 1)
              == tgt_ids_ref[...]).astype(f32)
    Ytgt = jnp.dot(tgt_oh, tgt_emb_ref[...], preferred_element_type=f32)

    # ---- bidirectional encoder: fwd + bwd fused into one matmul per step ----
    b_enc = jnp.concatenate([jnp.broadcast_to(bf_ref[...], (B, 4 * H)),
                             jnp.broadcast_to(bb_ref[...], (B, 4 * H))], axis=0)
    lens2 = jnp.concatenate([lens_col, lens_col], axis=0)        # (2B, 1)
    row_fwd = jax.lax.broadcasted_iota(jnp.int32, (2 * B, 1), 0) < B
    zEH = jnp.zeros((B, EH), f32)
    h = jnp.zeros((2 * B, H), f32)        # rows [:B] = fwd, [B:] = bwd
    c = jnp.zeros((2 * B, H), f32)

    for t in range(S):
        s = S - 1 - t
        x_f = Xsrc[t * B:(t + 1) * B, :]
        x_b = Xsrc[s * B:(s + 1) * B, :]
        lhs = jnp.concatenate(
            [jnp.concatenate([x_f, h[:B], zEH], axis=1),
             jnp.concatenate([zEH, x_b, h[B:]], axis=1)], axis=0)   # (2B, 2EH)
        g = jnp.dot(lhs, w_enc_ref[...], preferred_element_type=f32) + b_enc
        sg = jax.nn.sigmoid(g)            # one EUP pass on the full (.,128) tile
        tg = jnp.tanh(g)
        c_new = sg[:, H:2 * H] * c + sg[:, 0:H] * tg[:, 2 * H:3 * H]
        h_new = sg[:, 3 * H:4 * H] * jnp.tanh(c_new)

        # pack_padded_sequence semantics: freeze state past each length, zero
        # padded outputs; bwd effectively starts at each sequence's last token.
        thr = jnp.where(row_fwd, t, s)                            # (2B,1) int32
        mask = lens2 > thr                                        # (2B,1) bool
        h = jnp.where(mask, h_new, h)
        c = jnp.where(mask, c_new, c)
        h_out = jnp.where(mask, h_new, 0.0)
        enc_scr[0, t] = h_out[:B]         # fwd hidden for source position t
        enc_scr[1, s] = h_out[B:]         # bwd hidden for source position s

    # ---- decoder init states (h/c projections) ----
    hd = jnp.dot(jnp.concatenate([h[:B], h[B:]], axis=1), wh_ref[...],
                 preferred_element_type=f32)
    cd = jnp.dot(jnp.concatenate([c[:B], c[B:]], axis=1), wc_ref[...],
                 preferred_element_type=f32)

    enc_f = enc_scr[0]                    # (S, B, H)
    enc_b = enc_scr[1]                    # (S, B, H)
    src_pad = (jax.lax.broadcasted_iota(jnp.int32, (S, B), 0) >= lens_row)

    bd = jnp.broadcast_to(bd_ref[...], (B, 4 * H))
    o_prev = jnp.zeros((B, H), f32)
    o_list = []
    for t in range(Tm1):
        y_t = Ytgt[t * B:(t + 1) * B, :]
        g = jnp.dot(jnp.concatenate([y_t, o_prev, hd], axis=1), w_dec_ref[...],
                    preferred_element_type=f32) + bd
        sg = jax.nn.sigmoid(g)
        tg = jnp.tanh(g)
        cd = sg[:, H:2 * H] * cd + sg[:, 0:H] * tg[:, 2 * H:3 * H]
        hd = sg[:, 3 * H:4 * H] * jnp.tanh(cd)

        # Luong attention; att_projection folded into the query:
        #   score[s,b] = (W_att enc[s,b]) . h[b] = (h[b] @ W_att) . enc[s,b]
        q = jnp.dot(hd, watt_ref[...], preferred_element_type=f32)   # (B, 2H)
        att_sc = (jnp.sum(enc_f * q[:, 0:H][None, :, :], axis=2)
                  + jnp.sum(enc_b * q[:, H:2 * H][None, :, :], axis=2))  # (S,B)
        att_sc = jnp.where(src_pad, f32(-1e30), att_sc)
        m = jnp.max(att_sc, axis=0, keepdims=True)
        p = jnp.exp(att_sc - m)
        e = p / jnp.sum(p, axis=0, keepdims=True)        # exact softmax
        e3 = e[:, :, None]
        att_f = jnp.sum(e3 * enc_f, axis=0)              # (B, H)
        att_b = jnp.sum(e3 * enc_b, axis=0)              # (B, H)

        o_t = jnp.tanh(jnp.dot(jnp.concatenate([att_f, att_b, hd], axis=1),
                               wcomb_ref[...], preferred_element_type=f32))
        o_prev = o_t
        o_list.append(o_t)
        # dropout: eval-mode identity

    # ---- deferred gold log-prob scoring: one lane-dense matmul + one LSE ----
    O = jnp.concatenate(o_list, axis=0)                  # (Tm1*B, H)
    logits = jnp.dot(O, wvoc_ref[...], preferred_element_type=f32)  # (Tm1*B,Vp)
    voc_ids = jax.lax.broadcasted_iota(jnp.int32, (Tm1 * B, Vp), 1)
    logits = jnp.where(voc_ids >= V, f32(-1e30), logits)
    lm = jnp.max(logits, axis=1, keepdims=True)
    lse = jnp.log(jnp.sum(jnp.exp(logits - lm), axis=1, keepdims=True)) + lm
    gold = gold_ref[...]                                 # (Tm1*B, 1) int32
    gold_logit = jnp.sum(jnp.where(voc_ids == gold, logits, 0.0),
                         axis=1, keepdims=True)          # (Tm1*B, 1)
    tmask = (gold != pad_id).astype(f32)
    ll = (gold_logit - lse) * tmask                      # (Tm1*B, 1)

    acc = jnp.zeros((B, 1), f32)
    for t in range(Tm1):
        acc = acc + ll[t * B:(t + 1) * B, :]
    scores_ref[...] = acc


# ============================ wrappers (glue) ===============================

def prepare_params(params):
    """One-time layout work (gate stacking, transposes, vocab/emb padding).

    Hoisted out of the per-call jitted forward per the perf review."""
    f32 = jnp.float32
    src_emb = jnp.zeros((V_PAD, EMB), f32).at[:V_SRC].set(params['src_emb'])
    tgt_emb = jnp.zeros((V_PAD, EMB), f32).at[:V_TGT].set(params['tgt_emb'])
    # K-stacked [W_ih^T ; W_hh^T] per direction, then fwd/bwd stacked along K
    wf = jnp.concatenate([params['enc_wih_f'].T, params['enc_whh_f'].T], axis=0)
    wb = jnp.concatenate([params['enc_wih_b'].T, params['enc_whh_b'].T], axis=0)
    prep = dict(
        src_emb=src_emb, tgt_emb=tgt_emb,
        w_enc=jnp.concatenate([wf, wb], axis=0),      # (2(E+H), 4H) = (128,128)
        b_enc_f=params['enc_b_f'][None, :],
        b_enc_b=params['enc_b_b'][None, :],
        w_dec=jnp.concatenate([params['dec_wih'].T, params['dec_whh'].T], 0),
        b_dec=params['dec_b'][None, :],
        wh=params['Wh'].T, wc=params['Wc'].T,
        watt=params['Watt'],                          # used as q = h @ W_att
        wcomb=params['Wcomb'].T,
        wvoc=jnp.zeros((HID, V_PAD), f32).at[:, :V_TGT].set(params['W_vocab'].T),
    )
    return prep


def nmt_forward_pallas(prep, src_ids, src_lens, tgt_ids):
    """Equivalent of NMT.forward: log-likelihood score per batch element."""
    S, B = src_ids.shape
    Tm1 = tgt_ids.shape[0] - 1

    lens_col = src_lens.astype(jnp.int32)[:, None]              # (B, 1)
    lens_row = src_lens.astype(jnp.int32)[None, :]              # (1, B)
    src_rows = src_ids.astype(jnp.int32).reshape(S * B, 1)      # t-major rows
    tgt_rows = tgt_ids[:-1].astype(jnp.int32).reshape(Tm1 * B, 1)
    gold_rows = tgt_ids[1:].astype(jnp.int32).reshape(Tm1 * B, 1)

    kernel = functools.partial(nmt_fused_kernel, S=S, B=B, Tm1=Tm1,
                               E=EMB, H=HID, V=V_TGT, pad_id=PAD)
    scores = pl.pallas_call(
        kernel,
        out_shape=jax.ShapeDtypeStruct((B, 1), jnp.float32),
        in_specs=[_VMEM_SPEC] * 17,
        out_specs=_VMEM_SPEC,
        scratch_shapes=[pltpu.VMEM((2, S, B, HID), jnp.float32)],
    )(lens_col, lens_row, src_rows, tgt_rows, gold_rows,
      prep['src_emb'], prep['tgt_emb'],
      prep['w_enc'], prep['b_enc_f'], prep['b_enc_b'],
      prep['w_dec'], prep['b_dec'],
      prep['wh'], prep['wc'], prep['watt'], prep['wcomb'], prep['wvoc'])
    return scores[:, 0]                                          # (B,)


# ========================= pure-JAX reference ===============================

def reference_forward(params, src_ids, src_lens, tgt_ids, pad_id=PAD):
    H = HID
    X = params['src_emb'][src_ids]                    # (S, B, E)
    S, B, _ = X.shape

    def cell(x, h, c, wih, whh, b):
        gates = x @ wih.T + h @ whh.T + b
        i, f, g, o = jnp.split(gates, 4, axis=1)
        c = jax.nn.sigmoid(f) * c + jax.nn.sigmoid(i) * jnp.tanh(g)
        h = jax.nn.sigmoid(o) * jnp.tanh(c)
        return h, c

    hf = jnp.zeros((B, H)); cf = jnp.zeros((B, H))
    hb = jnp.zeros((B, H)); cb = jnp.zeros((B, H))
    hf_out = [None] * S; hb_out = [None] * S
    for t in range(S):
        m = (t < src_lens)[:, None]
        hn, cn = cell(X[t], hf, cf, params['enc_wih_f'], params['enc_whh_f'],
                      params['enc_b_f'])
        hf = jnp.where(m, hn, hf); cf = jnp.where(m, cn, cf)
        hf_out[t] = jnp.where(m, hn, 0.0)
    for t in range(S - 1, -1, -1):
        m = (t < src_lens)[:, None]
        hn, cn = cell(X[t], hb, cb, params['enc_wih_b'], params['enc_whh_b'],
                      params['enc_b_b'])
        hb = jnp.where(m, hn, hb); cb = jnp.where(m, cn, cb)
        hb_out[t] = jnp.where(m, hn, 0.0)

    enc_h = jnp.stack([jnp.concatenate([hf_out[t], hb_out[t]], axis=1)
                       for t in range(S)], axis=0).transpose(1, 0, 2)  # (B,S,2H)
    init_h = jnp.concatenate([hf, hb], axis=1) @ params['Wh'].T
    init_c = jnp.concatenate([cf, cb], axis=1) @ params['Wc'].T
    enc_masks = jnp.arange(S)[None, :] >= src_lens[:, None]
    enc_proj = enc_h @ params['Watt'].T

    Y = params['tgt_emb'][tgt_ids[:-1]]
    h, c = init_h, init_c
    o_prev = jnp.zeros((B, H))
    outs = []
    for t in range(Y.shape[0]):
        ybar = jnp.concatenate([Y[t], o_prev], axis=1)
        h, c = cell(ybar, h, c, params['dec_wih'], params['dec_whh'],
                    params['dec_b'])
        scores = jnp.einsum('bsh,bh->bs', enc_proj, h)
        scores = jnp.where(enc_masks, -jnp.inf, scores)
        e = jax.nn.softmax(scores, axis=1)
        att = jnp.einsum('bs,bsd->bd', e, enc_h)
        o = jnp.tanh(jnp.concatenate([att, h], axis=1) @ params['Wcomb'].T)
        outs.append(o); o_prev = o
    combined = jnp.stack(outs, axis=0)

    logits = combined @ params['W_vocab'].T
    logp = jax.nn.log_softmax(logits, axis=-1)
    gold = tgt_ids[1:]
    gathered = jnp.take_along_axis(logp, gold[:, :, None], axis=-1)[..., 0]
    tmask = (gold != pad_id).astype(jnp.float32)
    return (gathered * tmask).sum(axis=0)


# ============================== main ========================================

def init_params(key):
    ks = jax.random.split(key, 16)
    u = lambda k, shape: jax.random.uniform(k, shape, jnp.float32, -0.1, 0.1)
    p = {}
    p['src_emb'] = u(ks[0], (V_SRC, EMB)).at[PAD].set(0.0)
    p['tgt_emb'] = u(ks[1], (V_TGT, EMB)).at[PAD].set(0.0)
    p['enc_wih_f'] = u(ks[2], (4 * HID, EMB))
    p['enc_whh_f'] = u(ks[3], (4 * HID, HID))
    p['enc_b_f'] = u(ks[4], (4 * HID,))
    p['enc_wih_b'] = u(ks[5], (4 * HID, EMB))
    p['enc_whh_b'] = u(ks[6], (4 * HID, HID))
    p['enc_b_b'] = u(ks[7], (4 * HID,))
    p['dec_wih'] = u(ks[8], (4 * HID, EMB + HID))
    p['dec_whh'] = u(ks[9], (4 * HID, HID))
    p['dec_b'] = u(ks[10], (4 * HID,))
    p['Wh'] = u(ks[11], (HID, 2 * HID))          # h_projection
    p['Wc'] = u(ks[12], (HID, 2 * HID))          # c_projection
    p['Watt'] = u(ks[13], (HID, 2 * HID))        # att_projection
    p['Wcomb'] = u(ks[14], (HID, 3 * HID))       # combined_output_projection
    p['W_vocab'] = u(ks[15], (V_TGT, HID))       # target_vocab_projection
    return p


if __name__ == "__main__":
    key = jax.random.PRNGKey(0)
    params = init_params(key)
    prep = prepare_params(params)                # one-time weight layout work

    S, B, T_TGT = 8, 2, 8
    src_lens = jnp.array([8, 5], dtype=jnp.int32)       # sorted descending
    tgt_lens = jnp.array([8, 6], dtype=jnp.int32)

    k1, k2 = jax.random.split(jax.random.PRNGKey(1))
    src_ids = jax.random.randint(k1, (S, B), 1, V_SRC, dtype=jnp.int32)
    src_ids = jnp.where(jnp.arange(S)[:, None] < src_lens[None, :], src_ids, PAD)
    tgt_ids = jax.random.randint(k2, (T_TGT, B), 1, V_TGT, dtype=jnp.int32)
    tgt_ids = jnp.where(jnp.arange(T_TGT)[:, None] < tgt_lens[None, :], tgt_ids, PAD)

    fwd = jax.jit(nmt_forward_pallas)
    scores = fwd(prep, src_ids, src_lens, tgt_ids)
    jax.block_until_ready(scores)

    ref = reference_forward(params, src_ids, src_lens, tgt_ids)
    np.testing.assert_allclose(np.asarray(scores), np.asarray(ref),
                               rtol=2e-3, atol=2e-3)
    print("KERNEL_OK")
</pallas_src>

<mosaic_0001>
module attributes {stable_mosaic.version = 11 : i64} {
  func.func @nmt_fused_kernel(%arg0: memref<2x1xi32, #tpu.memory_space<vmem>>, %arg1: memref<1x2xi32, #tpu.memory_space<vmem>>, %arg2: memref<16x1xi32, #tpu.memory_space<vmem>>, %arg3: memref<14x1xi32, #tpu.memory_space<vmem>>, %arg4: memref<14x1xi32, #tpu.memory_space<vmem>>, %arg5: memref<128x32xf32, #tpu.memory_space<vmem>>, %arg6: memref<128x32xf32, #tpu.memory_space<vmem>>, %arg7: memref<128x128xf32, #tpu.memory_space<vmem>>, %arg8: memref<1x128xf32, #tpu.memory_space<vmem>>, %arg9: memref<1x128xf32, #tpu.memory_space<vmem>>, %arg10: memref<96x128xf32, #tpu.memory_space<vmem>>, %arg11: memref<1x128xf32, #tpu.memory_space<vmem>>, %arg12: memref<64x32xf32, #tpu.memory_space<vmem>>, %arg13: memref<64x32xf32, #tpu.memory_space<vmem>>, %arg14: memref<32x64xf32, #tpu.memory_space<vmem>>, %arg15: memref<96x32xf32, #tpu.memory_space<vmem>>, %arg16: memref<32x128xf32, #tpu.memory_space<vmem>>, %arg17: memref<2x1xf32, #tpu.memory_space<vmem>>, %arg18: memref<2x8x2x32xf32, #tpu.memory_space<vmem>>) attributes {dimension_semantics = [], scalar_prefetch = 0 : i64, scratch_operands = 1 : i64, tpu.core_type = #tpu.core_type<tc>} {
    %c0 = arith.constant 0 : index
    %c0_0 = arith.constant 0 : index
    %0 = vector.load %arg0[%c0, %c0_0] : memref<2x1xi32, #tpu.memory_space<vmem>>, vector<2x1xi32>
    %c0_1 = arith.constant 0 : index
    %c0_2 = arith.constant 0 : index
    %1 = vector.load %arg1[%c0_1, %c0_2] : memref<1x2xi32, #tpu.memory_space<vmem>>, vector<1x2xi32>
    %2 = tpu.iota {dimensions = array<i32: 1>} : vector<16x128xi32>
    %c0_3 = arith.constant 0 : index
    %c0_4 = arith.constant 0 : index
    %3 = vector.load %arg2[%c0_3, %c0_4] : memref<16x1xi32, #tpu.memory_space<vmem>>, vector<16x1xi32>
    %4 = vector.broadcast %3 : vector<16x1xi32> to vector<16x128xi32>
    %5 = arith.cmpi eq, %2, %4 : vector<16x128xi32>
    %6 = arith.extui %5 : vector<16x128xi1> to vector<16x128xi32>
    %7 = arith.sitofp %6 : vector<16x128xi32> to vector<16x128xf32>
    %c0_5 = arith.constant 0 : index
    %c0_6 = arith.constant 0 : index
    %8 = vector.load %arg5[%c0_5, %c0_6] : memref<128x32xf32, #tpu.memory_space<vmem>>, vector<128x32xf32>
    %cst = arith.constant dense<0.000000e+00> : vector<16x32xf32>
    %9 = tpu.matmul %7, %8, %cst {dimension_numbers = #tpu.dot_dimension_numbers<[1], [0], [0], [1], [0, 0, 1, 1], [], []>} : vector<16x128xf32>, vector<128x32xf32>, vector<16x32xf32> -> vector<16x32xf32>
    %10 = tpu.iota {dimensions = array<i32: 1>} : vector<14x128xi32>
    %c0_7 = arith.constant 0 : index
    %c0_8 = arith.constant 0 : index
    %11 = vector.load %arg3[%c0_7, %c0_8] : memref<14x1xi32, #tpu.memory_space<vmem>>, vector<14x1xi32>
    %12 = vector.broadcast %11 : vector<14x1xi32> to vector<14x128xi32>
    %13 = arith.cmpi eq, %10, %12 : vector<14x128xi32>
    %14 = arith.extui %13 : vector<14x128xi1> to vector<14x128xi32>
    %15 = arith.sitofp %14 : vector<14x128xi32> to vector<14x128xf32>
    %c0_9 = arith.constant 0 : index
    %c0_10 = arith.constant 0 : index
    %16 = vector.load %arg6[%c0_9, %c0_10] : memref<128x32xf32, #tpu.memory_space<vmem>>, vector<128x32xf32>
    %cst_11 = arith.constant dense<0.000000e+00> : vector<14x32xf32>
    %17 = tpu.matmul %15, %16, %cst_11 {dimension_numbers = #tpu.dot_dimension_numbers<[1], [0], [0], [1], [0, 0, 1, 1], [], []>} : vector<14x128xf32>, vector<128x32xf32>, vector<14x32xf32> -> vector<14x32xf32>
    %c0_12 = arith.constant 0 : index
    %c0_13 = arith.constant 0 : index
    %18 = vector.load %arg8[%c0_12, %c0_13] : memref<1x128xf32, #tpu.memory_space<vmem>>, vector<1x128xf32>
    %19 = vector.shape_cast %18 : vector<1x128xf32> to vector<1x128xf32>
    %20 = vector.broadcast %19 : vector<1x128xf32> to vector<2x128xf32>
    %c0_14 = arith.constant 0 : index
    %c0_15 = arith.constant 0 : index
    %21 = vector.load %arg9[%c0_14, %c0_15] : memref<1x128xf32, #tpu.memory_space<vmem>>, vector<1x128xf32>
    %22 = vector.shape_cast %21 : vector<1x128xf32> to vector<1x128xf32>
    %23 = vector.broadcast %22 : vector<1x128xf32> to vector<2x128xf32>
    %24 = tpu.concatenate %20, %23 in 0 : vector<2x128xf32>, vector<2x128xf32> -> vector<4x128xf32>
    %25 = tpu.concatenate %0, %0 in 0 : vector<2x1xi32>, vector<2x1xi32> -> vector<4x1xi32>
    %26 = tpu.iota {dimensions = array<i32: 0>} : vector<4x1xi32>
    %c2_i32 = arith.constant 2 : i32
    %27 = vector.broadcast %c2_i32 : i32 to vector<4x1xi32>
    %28 = arith.cmpi slt, %26, %27 : vector<4x1xi32>
    %cst_16 = arith.constant 0.000000e+00 : f32
    %29 = vector.broadcast %cst_16 : f32 to vector<2x64xf32>
    %cst_17 = arith.constant 0.000000e+00 : f32
    %30 = vector.broadcast %cst_17 : f32 to vector<4x32xf32>
    %cst_18 = arith.constant 0.000000e+00 : f32
    %31 = vector.broadcast %cst_18 : f32 to vector<4x32xf32>
    %32 = vector.extract_strided_slice %9 {offsets = [0, 0], sizes = [2, 32], strides = [1, 1]} : vector<16x32xf32> to vector<2x32xf32>
    %33 = vector.extract_strided_slice %9 {offsets = [14, 0], sizes = [2, 32], strides = [1, 1]} : vector<16x32xf32> to vector<2x32xf32>
    %34 = vector.extract_strided_slice %30 {offsets = [0, 0], sizes = [2, 32], strides = [1, 1]} : vector<4x32xf32> to vector<2x32xf32>
    %35 = tpu.concatenate %32, %34, %29 in 1 : vector<2x32xf32>, vector<2x32xf32>, vector<2x64xf32> -> vector<2x128xf32>
    %36 = vector.extract_strided_slice %30 {offsets = [2, 0], sizes = [2, 32], strides = [1, 1]} : vector<4x32xf32> to vector<2x32xf32>
    %37 = tpu.concatenate %29, %33, %36 in 1 : vector<2x64xf32>, vector<2x32xf32>, vector<2x32xf32> -> vector<2x128xf32>
    %38 = tpu.concatenate %35, %37 in 0 : vector<2x128xf32>, vector<2x128xf32> -> vector<4x128xf32>
    %c0_19 = arith.constant 0 : index
    %c0_20 = arith.constant 0 : index
    %39 = vector.load %arg7[%c0_19, %c0_20] : memref<128x128xf32, #tpu.memory_space<vmem>>, vector<128x128xf32>
    %cst_21 = arith.constant dense<0.000000e+00> : vector<4x128xf32>
    %40 = tpu.matmul %38, %39, %cst_21 {dimension_numbers = #tpu.dot_dimension_numbers<[1], [0], [0], [1], [0, 0, 1, 1], [], []>} : vector<4x128xf32>, vector<128x128xf32>, vector<4x128xf32> -> vector<4x128xf32>
    %41 = arith.addf %40, %24 : vector<4x128xf32>
    %42 = arith.negf %41 : vector<4x128xf32>
    %43 = math.exp %42 : vector<4x128xf32>
    %cst_22 = arith.constant 1.000000e+00 : f32
    %44 = vector.broadcast %cst_22 : f32 to vector<4x128xf32>
    %45 = arith.addf %44, %43 : vector<4x128xf32>
    %46 = arith.divf %44, %45 : vector<4x128xf32>
    %47 = math.tanh %41 : vector<4x128xf32>
    %48 = vector.extract_strided_slice %46 {offsets = [0, 32], sizes = [4, 32], strides = [1, 1]} : vector<4x128xf32> to vector<4x32xf32>
    %49 = arith.mulf %48, %31 : vector<4x32xf32>
    %50 = vector.extract_strided_slice %46 {offsets = [0, 0], sizes = [4, 32], strides = [1, 1]} : vector<4x128xf32> to vector<4x32xf32>
    %51 = vector.extract_strided_slice %47 {offsets = [0, 64], sizes = [4, 32], strides = [1, 1]} : vector<4x128xf32> to vector<4x32xf32>
    %52 = arith.mulf %50, %51 : vector<4x32xf32>
    %53 = arith.addf %49, %52 : vector<4x32xf32>
    %54 = vector.extract_strided_slice %46 {offsets = [0, 96], sizes = [4, 32], strides = [1, 1]} : vector<4x128xf32> to vector<4x32xf32>
    %55 = math.tanh %53 : vector<4x32xf32>
    %56 = arith.mulf %54, %55 : vector<4x32xf32>
    %c0_i32 = arith.constant 0 : i32
    %c7_i32 = arith.constant 7 : i32
    %57 = vector.broadcast %c0_i32 : i32 to vector<4x1xi32>
    %58 = vector.broadcast %c7_i32 : i32 to vector<4x1xi32>
    %59 = arith.select %28, %57, %58 : vector<4x1xi1>, vector<4x1xi32>
    %60 = arith.cmpi sgt, %25, %59 : vector<4x1xi32>
    %61 = vector.shape_cast %60 : vector<4x1xi1> to vector<4x1xi1>
    %62 = vector.broadcast %61 : vector<4x1xi1> to vector<4x32xi1>
    %63 = arith.select %62, %56, %30 : vector<4x32xi1>, vector<4x32xf32>
    %64 = vector.shape_cast %60 : vector<4x1xi1> to vector<4x1xi1>
    %65 = vector.broadcast %64 : vector<4x1xi1> to vector<4x32xi1>
    %66 = arith.select %65, %53, %31 : vector<4x32xi1>, vector<4x32xf32>
    %cst_23 = arith.constant 0.000000e+00 : f32
    %67 = vector.shape_cast %60 : vector<4x1xi1> to vector<4x1xi1>
    %68 = vector.broadcast %67 : vector<4x1xi1> to vector<4x32xi1>
    %69 = vector.broadcast %cst_23 : f32 to vector<4x32xf32>
    %70 = arith.select %68, %56, %69 : vector<4x32xi1>, vector<4x32xf32>
    %71 = vector.extract_strided_slice %70 {offsets = [0, 0], sizes = [2, 32], strides = [1, 1]} : vector<4x32xf32> to vector<2x32xf32>
    %c0_24 = arith.constant 0 : index
    %c0_25 = arith.constant 0 : index
    %c0_26 = arith.constant 0 : index
    %c0_27 = arith.constant 0 : index
    %72 = vector.load %arg18[%c0_24, %c0_25, %c0_26, %c0_27] : memref<2x8x2x32xf32, #tpu.memory_space<vmem>>, vector<1x1x2x32xf32>
    %73 = vector.shape_cast %72 : vector<1x1x2x32xf32> to vector<2x32xf32>
    %74 = vector.shape_cast %71 : vector<2x32xf32> to vector<1x1x2x32xf32>
    tpu.vector_store %arg18[%c0_24, %c0_25, %c0_26, %c0_27], %74 {strides = array<i32>} : memref<2x8x2x32xf32, #tpu.memory_space<vmem>>, vector<1x1x2x32xf32>,
    %75 = vector.extract_strided_slice %70 {offsets = [2, 0], sizes = [2, 32], strides = [1, 1]} : vector<4x32xf32> to vector<2x32xf32>
    %c1 = arith.constant 1 : index
    %c7 = arith.constant 7 : index
    %c0_28 = arith.constant 0 : index
    %c0_29 = arith.constant 0 : index
    %76 = vector.load %arg18[%c1, %c7, %c0_28, %c0_29] : memref<2x8x2x32xf32, #tpu.memory_space<vmem>>, vector<1x1x2x32xf32>
    %77 = vector.shape_cast %76 : vector<1x1x2x32xf32> to vector<2x32xf32>
    %78 = vector.shape_cast %75 : vector<2x32xf32> to vector<1x1x2x32xf32>
    tpu.vector_store %arg18[%c1, %c7, %c0_28, %c0_29], %78 {strides = array<i32>} : memref<2x8x2x32xf32, #tpu.memory_space<vmem>>, vector<1x1x2x32xf32>,
    %79 = vector.extract_strided_slice %9 {offsets = [2, 0], sizes = [2, 32], strides = [1, 1]} : vector<16x32xf32> to vector<2x32xf32>
    %80 = vector.extract_strided_slice %9 {offsets = [12, 0], sizes = [2, 32], strides = [1, 1]} : vector<16x32xf32> to vector<2x32xf32>
    %81 = vector.extract_strided_slice %63 {offsets = [0, 0], sizes = [2, 32], strides = [1, 1]} : vector<4x32xf32> to vector<2x32xf32>
    %82 = tpu.concatenate %79, %81, %29 in 1 : vector<2x32xf32>, vector<2x32xf32>, vector<2x64xf32> -> vector<2x128xf32>
    %83 = vector.extract_strided_slice %63 {offsets = [2, 0], sizes = [2, 32], strides = [1, 1]} : vector<4x32xf32> to vector<2x32xf32>
    %84 = tpu.concatenate %29, %80, %83 in 1 : vector<2x64xf32>, vector<2x32xf32>, vector<2x32xf32> -> vector<2x128xf32>
    %85 = tpu.concatenate %82, %84 in 0 : vector<2x128xf32>, vector<2x128xf32> -> vector<4x128xf32>
    %c0_30 = arith.constant 0 : index
    %c0_31 = arith.constant 0 : index
    %86 = vector.load %arg7[%c0_30, %c0_31] : memref<128x128xf32, #tpu.memory_space<vmem>>, vector<128x128xf32>
    %cst_32 = arith.constant dense<0.000000e+00> : vector<4x128xf32>
    %87 = tpu.matmul %85, %86, %cst_32 {dimension_numbers = #tpu.dot_dimension_numbers<[1], [0], [0], [1], [0, 0, 1, 1], [], []>} : vector<4x128xf32>, vector<128x128xf32>, vector<4x128xf32> -> vector<4x128xf32>
    %88 = arith.addf %87, %24 : vector<4x128xf32>
    %89 = arith.negf %88 : vector<4x128xf32>
    %90 = math.exp %89 : vector<4x128xf32>
    %cst_33 = arith.constant 1.000000e+00 : f32
    %91 = vector.broadcast %cst_33 : f32 to vector<4x128xf32>
    %92 = arith.addf %91, %90 : vector<4x128xf32>
    %93 = arith.divf %91, %92 : vector<4x128xf32>
    %94 = math.tanh %88 : vector<4x128xf32>
    %95 = vector.extract_strided_slice %93 {offsets = [0, 32], sizes = [4, 32], strides = [1, 1]} : vector<4x128xf32> to vector<4x32xf32>
    %96 = arith.mulf %95, %66 : vector<4x32xf32>
    %97 = vector.extract_strided_slice %93 {offsets = [0, 0], sizes = [4, 32], strides = [1, 1]} : vector<4x128xf32> to vector<4x32xf32>
    %98 = vector.extract_strided_slice %94 {offsets = [0, 64], sizes = [4, 32], strides = [1, 1]} : vector<4x128xf32> to vector<4x32xf32>
    %99 = arith.mulf %97, %98 : vector<4x32xf32>
    %100 = arith.addf %96, %99 : vector<4x32xf32>
    %101 = vector.extract_strided_slice %93 {offsets = [0, 96], sizes = [4, 32], strides = [1, 1]} : vector<4x128xf32> to vector<4x32xf32>
    %102 = math.tanh %100 : vector<4x32xf32>
    %103 = arith.mulf %101, %102 : vector<4x32xf32>
    %c1_i32 = arith.constant 1 : i32
    %c6_i32 = arith.constant 6 : i32
    %104 = vector.broadcast %c1_i32 : i32 to vector<4x1xi32>
    %105 = vector.broadcast %c6_i32 : i32 to vector<4x1xi32>
    %106 = arith.select %28, %104, %105 : vector<4x1xi1>, vector<4x1xi32>
    %107 = arith.cmpi sgt, %25, %106 : vector<4x1xi32>
    %108 = vector.shape_cast %107 : vector<4x1xi1> to vector<4x1xi1>
    %109 = vector.broadcast %108 : vector<4x1xi1> to vector<4x32xi1>
    %110 = arith.select %109, %103, %63 : vector<4x32xi1>, vector<4x32xf32>
    %111 = vector.shape_cast %107 : vector<4x1xi1> to vector<4x1xi1>
    %112 = vector.broadcast %111 : vector<4x1xi1> to vector<4x32xi1>
    %113 = arith.select %112, %100, %66 : vector<4x32xi1>, vector<4x32xf32>
    %cst_34 = arith.constant 0.000000e+00 : f32
    %114 = vector.shape_cast %107 : vector<4x1xi1> to vector<4x1xi1>
    %115 = vector.broadcast %114 : vector<4x1xi1> to vector<4x32xi1>
    %116 = vector.broadcast %cst_34 : f32 to vector<4x32xf32>
    %117 = arith.select %115, %103, %116 : vector<4x32xi1>, vector<4x32xf32>
    %118 = vector.extract_strided_slice %117 {offsets = [0, 0], sizes = [2, 32], strides = [1, 1]} : vector<4x32xf32> to vector<2x32xf32>
    %c0_35 = arith.constant 0 : index
    %c1_36 = arith.constant 1 : index
    %c0_37 = arith.constant 0 : index
    %c0_38 = arith.constant 0 : index
    %119 = vector.load %arg18[%c0_35, %c1_36, %c0_37, %c0_38] : memref<2x8x2x32xf32, #tpu.memory_space<vmem>>, vector<1x1x2x32xf32>
    %120 = vector.shape_cast %119 : vector<1x1x2x32xf32> to vector<2x32xf32>
    %121 = vector.shape_cast %118 : vector<2x32xf32> to vector<1x1x2x32xf32>
    tpu.vector_store %arg18[%c0_35, %c1_36, %c0_37, %c0_38], %121 {strides = array<i32>} : memref<2x8x2x32xf32, #tpu.memory_space<vmem>>, vector<1x1x2x32xf32>,
    %122 = vector.extract_strided_slice %117 {offsets = [2, 0], sizes = [2, 32], strides = [1, 1]} : vector<4x32xf32> to vector<2x32xf32>
    %c1_39 = arith.constant 1 : index
    %c6 = arith.constant 6 : index
    %c0_40 = arith.constant 0 : index
    %c0_41 = arith.constant 0 : index
    %123 = vector.load %arg18[%c1_39, %c6, %c0_40, %c0_41] : memref<2x8x2x32xf32, #tpu.memory_space<vmem>>, vector<1x1x2x32xf32>
    %124 = vector.shape_cast %123 : vector<1x1x2x32xf32> to vector<2x32xf32>
    %125 = vector.shape_cast %122 : vector<2x32xf32> to vector<1x1x2x32xf32>
    tpu.vector_store %arg18[%c1_39, %c6, %c0_40, %c0_41], %125 {strides = array<i32>} : memref<2x8x2x32xf32, #tpu.memory_space<vmem>>, vector<1x1x2x32xf32>,
    %126 = vector.extract_strided_slice %9 {offsets = [4, 0], sizes = [2, 32], strides = [1, 1]} : vector<16x32xf32> to vector<2x32xf32>
    %127 = vector.extract_strided_slice %9 {offsets = [10, 0], sizes = [2, 32], strides = [1, 1]} : vector<16x32xf32> to vector<2x32xf32>
    %128 = vector.extract_strided_slice %110 {offsets = [0, 0], sizes = [2, 32], strides = [1, 1]} : vector<4x32xf32> to vector<2x32xf32>
    %129 = tpu.concatenate %126, %128, %29 in 1 : vector<2x32xf32>, vector<2x32xf32>, vector<2x64xf32> -> vector<2x128xf32>
    %130 = vector.extract_strided_slice %110 {offsets = [2, 0], sizes = [2, 32], strides = [1, 1]} : vector<4x32xf32> to vector<2x32xf32>
    %131 = tpu.concatenate %29, %127, %130 in 1 : vector<2x64xf32>, vector<2x32xf32>, vector<2x32xf32> -> vector<2x128xf32>
    %132 = tpu.concatenate %129, %131 in 0 : vector<2x128xf32>, vector<2x128xf32> -> vector<4x128xf32>
    %c0_42 = arith.constant 0 : index
    %c0_43 = arith.constant 0 : index
    %133 = vector.load %arg7[%c0_42, %c0_43] : memref<128x128xf32, #tpu.memory_space<vmem>>, vector<128x128xf32>
    %cst_44 = arith.constant dense<0.000000e+00> : vector<4x128xf32>
    %134 = tpu.matmul %132, %133, %cst_44 {dimension_numbers = #tpu.dot_dimension_numbers<[1], [0], [0], [1], [0, 0, 1, 1], [], []>} : vector<4x128xf32>, vector<128x128xf32>, vector<4x128xf32> -> vector<4x128xf32>
    %135 = arith.addf %134, %24 : vector<4x128xf32>
    %136 = arith.negf %135 : vector<4x128xf32>
    %137 = math.exp %136 : vector<4x128xf32>
    %cst_45 = arith.constant 1.000000e+00 : f32
    %138 = vector.broadcast %cst_45 : f32 to vector<4x128xf32>
    %139 = arith.addf %138, %137 : vector<4x128xf32>
    %140 = arith.divf %138, %139 : vector<4x128xf32>
    %141 = math.tanh %135 : vector<4x128xf32>
    %142 = vector.extract_strided_slice %140 {offsets = [0, 32], sizes = [4, 32], strides = [1, 1]} : vector<4x128xf32> to vector<4x32xf32>
    %143 = arith.mulf %142, %113 : vector<4x32xf32>
    %144 = vector.extract_strided_slice %140 {offsets = [0, 0], sizes = [4, 32], strides = [1, 1]} : vector<4x128xf32> to vector<4x32xf32>
    %145 = vector.extract_strided_slice %141 {offsets = [0, 64], sizes = [4, 32], strides = [1, 1]} : vector<4x128xf32> to vector<4x32xf32>
    %146 = arith.mulf %144, %145 : vector<4x32xf32>
    %147 = arith.addf %143, %146 : vector<4x32xf32>
    %148 = vector.extract_strided_slice %140 {offsets = [0, 96], sizes = [4, 32], strides = [1, 1]} : vector<4x128xf32> to vector<4x32xf32>
    %149 = math.tanh %147 : vector<4x32xf32>
    %150 = arith.mulf %148, %149 : vector<4x32xf32>
    %c2_i32_46 = arith.constant 2 : i32
    %c5_i32 = arith.constant 5 : i32
    %151 = vector.broadcast %c2_i32_46 : i32 to vector<4x1xi32>
    %152 = vector.broadcast %c5_i32 : i32 to vector<4x1xi32>
    %153 = arith.select %28, %151, %152 : vector<4x1xi1>, vector<4x1xi32>
    %154 = arith.cmpi sgt, %25, %153 : vector<4x1xi32>
    %155 = vector.shape_cast %154 : vector<4x1xi1> to vector<4x1xi1>
    %156 = vector.broadcast %155 : vector<4x1xi1> to vector<4x32xi1>
    %157 = arith.select %156, %150, %110 : vector<4x32xi1>, vector<4x32xf32>
    %158 = vector.shape_cast %154 : vector<4x1xi1> to vector<4x1xi1>
    %159 = vector.broadcast %158 : vector<4x1xi1> to vector<4x32xi1>
    %160 = arith.select %159, %147, %113 : vector<4x32xi1>, vector<4x32xf32>
    %cst_47 = arith.constant 0.000000e+00 : f32
    %161 = vector.shape_cast %154 : vector<4x1xi1> to vector<4x1xi1>
    %162 = vector.broadcast %161 : vector<4x1xi1> to vector<4x32xi1>
    %163 = vector.broadcast %cst_47 : f32 to vector<4x32xf32>
    %164 = arith.select %162, %150, %163 : vector<4x32xi1>, vector<4x32xf32>
    %165 = vector.extract_strided_slice %164 {offsets = [0, 0], sizes = [2, 32], strides = [1, 1]} : vector<4x32xf32> to vector<2x32xf32>
    %c0_48 = arith.constant 0 : index
    %c2 = arith.constant 2 : index
    %c0_49 = arith.constant 0 : index
    %c0_50 = arith.constant 0 : index
    %166 = vector.load %arg18[%c0_48, %c2, %c0_49, %c0_50] : memref<2x8x2x32xf32, #tpu.memory_space<vmem>>, vector<1x1x2x32xf32>
    %167 = vector.shape_cast %166 : vector<1x1x2x32xf32> to vector<2x32xf32>
    %168 = vector.shape_cast %165 : vector<2x32xf32> to vector<1x1x2x32xf32>
    tpu.vector_store %arg18[%c0_48, %c2, %c0_49, %c0_50], %168 {strides = array<i32>} : memref<2x8x2x32xf32, #tpu.memory_space<vmem>>, vector<1x1x2x32xf32>,
    %169 = vector.extract_strided_slice %164 {offsets = [2, 0], sizes = [2, 32], strides = [1, 1]} : vector<4x32xf32> to vector<2x32xf32>
    %c1_51 = arith.constant 1 : index
    %c5 = arith.constant 5 : index
    %c0_52 = arith.constant 0 : index
    %c0_53 = arith.constant 0 : index
    %170 = vector.load %arg18[%c1_51, %c5, %c0_52, %c0_53] : memref<2x8x2x32xf32, #tpu.memory_space<vmem>>, vector<1x1x2x32xf32>
    %171 = vector.shape_cast %170 : vector<1x1x2x32xf32> to vector<2x32xf32>
    %172 = vector.shape_cast %169 : vector<2x32xf32> to vector<1x1x2x32xf32>
    tpu.vector_store %arg18[%c1_51, %c5, %c0_52, %c0_53], %172 {strides = array<i32>} : memref<2x8x2x32xf32, #tpu.memory_space<vmem>>, vector<1x1x2x32xf32>,
    %173 = vector.extract_strided_slice %9 {offsets = [6, 0], sizes = [2, 32], strides = [1, 1]} : vector<16x32xf32> to vector<2x32xf32>
    %174 = vector.extract_strided_slice %9 {offsets = [8, 0], sizes = [2, 32], strides = [1, 1]} : vector<16x32xf32> to vector<2x32xf32>
    %175 = vector.extract_strided_slice %157 {offsets = [0, 0], sizes = [2, 32], strides = [1, 1]} : vector<4x32xf32> to vector<2x32xf32>
    %176 = tpu.concatenate %173, %175, %29 in 1 : vector<2x32xf32>, vector<2x32xf32>, vector<2x64xf32> -> vector<2x128xf32>
    %177 = vector.extract_strided_slice %157 {offsets = [2, 0], sizes = [2, 32], strides = [1, 1]} : vector<4x32xf32> to vector<2x32xf32>
    %178 = tpu.concatenate %29, %174, %177 in 1 : vector<2x64xf32>, vector<2x32xf32>, vector<2x32xf32> -> vector<2x128xf32>
    %179 = tpu.concatenate %176, %178 in 0 : vector<2x128xf32>, vector<2x128xf32> -> vector<4x128xf32>
    %c0_54 = arith.constant 0 : index
    %c0_55 = arith.constant 0 : index
    %180 = vector.load %arg7[%c0_54, %c0_55] : memref<128x128xf32, #tpu.memory_space<vmem>>, vector<128x128xf32>
    %cst_56 = arith.constant dense<0.000000e+00> : vector<4x128xf32>
    %181 = tpu.matmul %179, %180, %cst_56 {dimension_numbers = #tpu.dot_dimension_numbers<[1], [0], [0], [1], [0, 0, 1, 1], [], []>} : vector<4x128xf32>, vector<128x128xf32>, vector<4x128xf32> -> vector<4x128xf32>
    %182 = arith.addf %181, %24 : vector<4x128xf32>
    %183 = arith.negf %182 : vector<4x128xf32>
    %184 = math.exp %183 : vector<4x128xf32>
    %cst_57 = arith.constant 1.000000e+00 : f32
    %185 = vector.broadcast %cst_57 : f32 to vector<4x128xf32>
    %186 = arith.addf %185, %184 : vector<4x128xf32>
    %187 = arith.divf %185, %186 : vector<4x128xf32>
    %188 = math.tanh %182 : vector<4x128xf32>
    %189 = vector.extract_strided_slice %187 {offsets = [0, 32], sizes = [4, 32], strides = [1, 1]} : vector<4x128xf32> to vector<4x32xf32>
    %190 = arith.mulf %189, %160 : vector<4x32xf32>
    %191 = vector.extract_strided_slice %187 {offsets = [0, 0], sizes = [4, 32], strides = [1, 1]} : vector<4x128xf32> to vector<4x32xf32>
    %192 = vector.extract_strided_slice %188 {offsets = [0, 64], sizes = [4, 32], strides = [1, 1]} : vector<4x128xf32> to vector<4x32xf32>
    %193 = arith.mulf %191, %192 : vector<4x32xf32>
    %194 = arith.addf %190, %193 : vector<4x32xf32>
    %195 = vector.extract_strided_slice %187 {offsets = [0, 96], sizes = [4, 32], strides = [1, 1]} : vector<4x128xf32> to vector<4x32xf32>
    %196 = math.tanh %194 : vector<4x32xf32>
    %197 = arith.mulf %195, %196 : vector<4x32xf32>
    %c3_i32 = arith.constant 3 : i32
    %c4_i32 = arith.constant 4 : i32
    %198 = vector.broadcast %c3_i32 : i32 to vector<4x1xi32>
    %199 = vector.broadcast %c4_i32 : i32 to vector<4x1xi32>
    %200 = arith.select %28, %198, %199 : vector<4x1xi1>, vector<4x1xi32>
    %201 = arith.cmpi sgt, %25, %200 : vector<4x1xi32>
    %202 = vector.shape_cast %201 : vector<4x1xi1> to vector<4x1xi1>
    %203 = vector.broadcast %202 : vector<4x1xi1> to vector<4x32xi1>
    %204 = arith.select %203, %197, %157 : vector<4x32xi1>, vector<4x32xf32>
    %205 = vector.shape_cast %201 : vector<4x1xi1> to vector<4x1xi1>
    %206 = vector.broadcast %205 : vector<4x1xi1> to vector<4x32xi1>
    %207 = arith.select %206, %194, %160 : vector<4x32xi1>, vector<4x32xf32>
    %cst_58 = arith.constant 0.000000e+00 : f32
    %208 = vector.shape_cast %201 : vector<4x1xi1> to vector<4x1xi1>
    %209 = vector.broadcast %208 : vector<4x1xi1> to vector<4x32xi1>
    %210 = vector.broadcast %cst_58 : f32 to vector<4x32xf32>
    %211 = arith.select %209, %197, %210 : vector<4x32xi1>, vector<4x32xf32>
    %212 = vector.extract_strided_slice %211 {offsets = [0, 0], sizes = [2, 32], strides = [1, 1]} : vector<4x32xf32> to vector<2x32xf32>
    %c0_59 = arith.constant 0 : index
    %c3 = arith.constant 3 : index
    %c0_60 = arith.constant 0 : index
    %c0_61 = arith.constant 0 : index
    %213 = vector.load %arg18[%c0_59, %c3, %c0_60, %c0_61] : memref<2x8x2x32xf32, #tpu.memory_space<vmem>>, vector<1x1x2x32xf32>
    %214 = vector.shape_cast %213 : vector<1x1x2x32xf32> to vector<2x32xf32>
    %215 = vector.shape_cast %212 : vector<2x32xf32> to vector<1x1x2x32xf32>
    tpu.vector_store %arg18[%c0_59, %c3, %c0_60, %c0_61], %215 {strides = array<i32>} : memref<2x8x2x32xf32, #tpu.memory_space<vmem>>, vector<1x1x2x32xf32>,
    %216 = vector.extract_strided_slice %211 {offsets = [2, 0], sizes = [2, 32], strides = [1, 1]} : vector<4x32xf32> to vector<2x32xf32>
    %c1_62 = arith.constant 1 : index
    %c4 = arith.constant 4 : index
    %c0_63 = arith.constant 0 : index
    %c0_64 = arith.constant 0 : index
    %217 = vector.load %arg18[%c1_62, %c4, %c0_63, %c0_64] : memref<2x8x2x32xf32, #tpu.memory_space<vmem>>, vector<1x1x2x32xf32>
    %218 = vector.shape_cast %217 : vector<1x1x2x32xf32> to vector<2x32xf32>
    %219 = vector.shape_cast %216 : vector<2x32xf32> to vector<1x1x2x32xf32>
    tpu.vector_store %arg18[%c1_62, %c4, %c0_63, %c0_64], %219 {strides = array<i32>} : memref<2x8x2x32xf32, #tpu.memory_space<vmem>>, vector<1x1x2x32xf32>,
    %220 = vector.extract_strided_slice %9 {offsets = [8, 0], sizes = [2, 32], strides = [1, 1]} : vector<16x32xf32> to vector<2x32xf32>
    %221 = vector.extract_strided_slice %9 {offsets = [6, 0], sizes = [2, 32], strides = [1, 1]} : vector<16x32xf32> to vector<2x32xf32>
    %222 = vector.extract_strided_slice %204 {offsets = [0, 0], sizes = [2, 32], strides = [1, 1]} : vector<4x32xf32> to vector<2x32xf32>
    %223 = tpu.concatenate %220, %222, %29 in 1 : vector<2x32xf32>, vector<2x32xf32>, vector<2x64xf32> -> vector<2x128xf32>
    %224 = vector.extract_strided_slice %204 {offsets = [2, 0], sizes = [2, 32], strides = [1, 1]} : vector<4x32xf32> to vector<2x32xf32>
    %225 = tpu.concatenate %29, %221, %224 in 1 : vector<2x64xf32>, vector<2x32xf32>, vector<2x32xf32> -> vector<2x128xf32>
    %226 = tpu.concatenate %223, %225 in 0 : vector<2x128xf32>, vector<2x128xf32> -> vector<4x128xf32>
    %c0_65 = arith.constant 0 : index
    %c0_66 = arith.constant 0 : index
    %227 = vector.load %arg7[%c0_65, %c0_66] : memref<128x128xf32, #tpu.memory_space<vmem>>, vector<128x128xf32>
    %cst_67 = arith.constant dense<0.000000e+00> : vector<4x128xf32>
    %228 = tpu.matmul %226, %227, %cst_67 {dimension_numbers = #tpu.dot_dimension_numbers<[1], [0], [0], [1], [0, 0, 1, 1], [], []>} : vector<4x128xf32>, vector<128x128xf32>, vector<4x128xf32> -> vector<4x128xf32>
    %229 = arith.addf %228, %24 : vector<4x128xf32>
    %230 = arith.negf %229 : vector<4x128xf32>
    %231 = math.exp %230 : vector<4x128xf32>
    %cst_68 = arith.constant 1.000000e+00 : f32
    %232 = vector.broadcast %cst_68 : f32 to vector<4x128xf32>
    %233 = arith.addf %232, %231 : vector<4x128xf32>
    %234 = arith.divf %232, %233 : vector<4x128xf32>
    %235 = math.tanh %229 : vector<4x128xf32>
    %236 = vector.extract_strided_slice %234 {offsets = [0, 32], sizes = [4, 32], strides = [1, 1]} : vector<4x128xf32> to vector<4x32xf32>
    %237 = arith.mulf %236, %207 : vector<4x32xf32>
    %238 = vector.extract_strided_slice %234 {offsets = [0, 0], sizes = [4, 32], strides = [1, 1]} : vector<4x128xf32> to vector<4x32xf32>
    %239 = vector.extract_strided_slice %235 {offsets = [0, 64], sizes = [4, 32], strides = [1, 1]} : vector<4x128xf32> to vector<4x32xf32>
    %240 = arith.mulf %238, %239 : vector<4x32xf32>
    %241 = arith.addf %237, %240 : vector<4x32xf32>
    %242 = vector.extract_strided_slice %234 {offsets = [0, 96], sizes = [4, 32], strides = [1, 1]} : vector<4x128xf32> to vector<4x32xf32>
    %243 = math.tanh %241 : vector<4x32xf32>
    %244 = arith.mulf %242, %243 : vector<4x32xf32>
    %c4_i32_69 = arith.constant 4 : i32
    %c3_i32_70 = arith.constant 3 : i32
    %245 = vector.broadcast %c4_i32_69 : i32 to vector<4x1xi32>
    %246 = vector.broadcast %c3_i32_70 : i32 to vector<4x1xi32>
    %247 = arith.select %28, %245, %246 : vector<4x1xi1>, vector<4x1xi32>
    %248 = arith.cmpi sgt, %25, %247 : vector<4x1xi32>
    %249 = vector.shape_cast %248 : vector<4x1xi1> to vector<4x1xi1>
    %250 = vector.broadcast %249 : vector<4x1xi1> to vector<4x32xi1>
    %251 = arith.select %250, %244, %204 : vector<4x32xi1>, vector<4x32xf32>
    %252 = vector.shape_cast %248 : vector<4x1xi1> to vector<4x1xi1>
    %253 = vector.broadcast %252 : vector<4x1xi1> to vector<4x32xi1>
    %254 = arith.select %253, %241, %207 : vector<4x32xi1>, vector<4x32xf32>
    %cst_71 = arith.constant 0.000000e+00 : f32
    %255 = vector.shape_cast %248 : vector<4x1xi1> to vector<4x1xi1>
    %256 = vector.broadcast %255 : vector<4x1xi1> to vector<4x32xi1>
    %257 = vector.broadcast %cst_71 : f32 to vector<4x32xf32>
    %258 = arith.select %256, %244, %257 : vector<4x32xi1>, vector<4x32xf32>
    %259 = vector.extract_strided_slice %258 {offsets = [0, 0], sizes = [2, 32], strides = [1, 1]} : vector<4x32xf32> to vector<2x32xf32>
    %c0_72 = arith.constant 0 : index
    %c4_73 = arith.constant 4 : index
    %c0_74 = arith.constant 0 : index
    %c0_75 = arith.constant 0 : index
    %260 = vector.load %arg18[%c0_72, %c4_73, %c0_74, %c0_75] : memref<2x8x2x32xf32, #tpu.memory_space<vmem>>, vector<1x1x2x32xf32>
    %261 = vector.shape_cast %260 : vector<1x1x2x32xf32> to vector<2x32xf32>
    %262 = vector.shape_cast %259 : vector<2x32xf32> to vector<1x1x2x32xf32>
    tpu.vector_store %arg18[%c0_72, %c4_73, %c0_74, %c0_75], %262 {strides = array<i32>} : memref<2x8x2x32xf32, #tpu.memory_space<vmem>>, vector<1x1x2x32xf32>,
    %263 = vector.extract_strided_slice %258 {offsets = [2, 0], sizes = [2, 32], strides = [1, 1]} : vector<4x32xf32> to vector<2x32xf32>
    %c1_76 = arith.constant 1 : index
    %c3_77 = arith.constant 3 : index
    %c0_78 = arith.constant 0 : index
    %c0_79 = arith.constant 0 : index
    %264 = vector.load %arg18[%c1_76, %c3_77, %c0_78, %c0_79] : memref<2x8x2x32xf32, #tpu.memory_space<vmem>>, vector<1x1x2x32xf32>
    %265 = vector.shape_cast %264 : vector<1x1x2x32xf32> to vector<2x32xf32>
    %266 = vector.shape_cast %263 : vector<2x32xf32> to vector<1x1x2x32xf32>
    tpu.vector_store %arg18[%c1_76, %c3_77, %c0_78, %c0_79], %266 {strides = array<i32>} : memref<2x8x2x32xf32, #tpu.memory_space<vmem>>, vector<1x1x2x32xf32>,
    %267 = vector.extract_strided_slice %9 {offsets = [10, 0], sizes = [2, 32], strides = [1, 1]} : vector<16x32xf32> to vector<2x32xf32>
    %268 = vector.extract_strided_slice %9 {offsets = [4, 0], sizes = [2, 32], strides = [1, 1]} : vector<16x32xf32> to vector<2x32xf32>
    %269 = vector.extract_strided_slice %251 {offsets = [0, 0], sizes = [2, 32], strides = [1, 1]} : vector<4x32xf32> to vector<2x32xf32>
    %270 = tpu.concatenate %267, %269, %29 in 1 : vector<2x32xf32>, vector<2x32xf32>, vector<2x64xf32> -> vector<2x128xf32>
    %271 = vector.extract_strided_slice %251 {offsets = [2, 0], sizes = [2, 32], strides = [1, 1]} : vector<4x32xf32> to vector<2x32xf32>
    %272 = tpu.concatenate %29, %268, %271 in 1 : vector<2x64xf32>, vector<2x32xf32>, vector<2x32xf32> -> vector<2x128xf32>
    %273 = tpu.concatenate %270, %272 in 0 : vector<2x128xf32>, vector<2x128xf32> -> vector<4x128xf32>
    %c0_80 = arith.constant 0 : index
    %c0_81 = arith.constant 0 : index
    %274 = vector.load %arg7[%c0_80, %c0_81] : memref<128x128xf32, #tpu.memory_space<vmem>>, vector<128x128xf32>
    %cst_82 = arith.constant dense<0.000000e+00> : vector<4x128xf32>
    %275 = tpu.matmul %273, %274, %cst_82 {dimension_numbers = #tpu.dot_dimension_numbers<[1], [0], [0], [1], [0, 0, 1, 1], [], []>} : vector<4x128xf32>, vector<128x128xf32>, vector<4x128xf32> -> vector<4x128xf32>
    %276 = arith.addf %275, %24 : vector<4x128xf32>
    %277 = arith.negf %276 : vector<4x128xf32>
    %278 = math.exp %277 : vector<4x128xf32>
    %cst_83 = arith.constant 1.000000e+00 : f32
    %279 = vector.broadcast %cst_83 : f32 to vector<4x128xf32>
    %280 = arith.addf %279, %278 : vector<4x128xf32>
    %281 = arith.divf %279, %280 : vector<4x128xf32>
    %282 = math.tanh %276 : vector<4x128xf32>
    %283 = vector.extract_strided_slice %281 {offsets = [0, 32], sizes = [4, 32], strides = [1, 1]} : vector<4x128xf32> to vector<4x32xf32>
    %284 = arith.mulf %283, %254 : vector<4x32xf32>
    %285 = vector.extract_strided_slice %281 {offsets = [0, 0], sizes = [4, 32], strides = [1, 1]} : vector<4x128xf32> to vector<4x32xf32>
    %286 = vector.extract_strided_slice %282 {offsets = [0, 64], sizes = [4, 32], strides = [1, 1]} : vector<4x128xf32> to vector<4x32xf32>
    %287 = arith.mulf %285, %286 : vector<4x32xf32>
    %288 = arith.addf %284, %287 : vector<4x32xf32>
    %289 = vector.extract_strided_slice %281 {offsets = [0, 96], sizes = [4, 32], strides = [1, 1]} : vector<4x128xf32> to vector<4x32xf32>
    %290 = math.tanh %288 : vector<4x32xf32>
    %291 = arith.mulf %289, %290 : vector<4x32xf32>
    %c5_i32_84 = arith.constant 5 : i32
    %c2_i32_85 = arith.constant 2 : i32
    %292 = vector.broadcast %c5_i32_84 : i32 to vector<4x1xi32>
    %293 = vector.broadcast %c2_i32_85 : i32 to vector<4x1xi32>
    %294 = arith.select %28, %292, %293 : vector<4x1xi1>, vector<4x1xi32>
    %295 = arith.cmpi sgt, %25, %294 : vector<4x1xi32>
    %296 = vector.shape_cast %295 : vector<4x1xi1> to vector<4x1xi1>
    %297 = vector.broadcast %296 : vector<4x1xi1> to vector<4x32xi1>
    %298 = arith.select %297, %291, %251 : vector<4x32xi1>, vector<4x32xf32>
    %299 = vector.shape_cast %295 : vector<4x1xi1> to vector<4x1xi1>
    %300 = vector.broadcast %299 : vector<4x1xi1> to vector<4x32xi1>
    %301 = arith.select %300, %288, %254 : vector<4x32xi1>, vector<4x32xf32>
    %cst_86 = arith.constant 0.000000e+00 : f32
    %302 = vector.shape_cast %295 : vector<4x1xi1> to vector<4x1xi1>
    %303 = vector.broadcast %302 : vector<4x1xi1> to vector<4x32xi1>
    %304 = vector.broadcast %cst_86 : f32 to vector<4x32xf32>
    %305 = arith.select %303, %291, %304 : vector<4x32xi1>, vector<4x32xf32>
    %306 = vector.extract_strided_slice %305 {offsets = [0, 0], sizes = [2, 32], strides = [1, 1]} : vector<4x32xf32> to vector<2x32xf32>
    %c0_87 = arith.constant 0 : index
    %c5_88 = arith.constant 5 : index
    %c0_89 = arith.constant 0 : index
    %c0_90 = arith.constant 0 : index
    %307 = vector.load %arg18[%c0_87, %c5_88, %c0_89, %c0_90] : memref<2x8x2x32xf32, #tpu.memory_space<vmem>>, vector<1x1x2x32xf32>
    %308 = vector.shape_cast %307 : vector<1x1x2x32xf32> to vector<2x32xf32>
    %309 = vector.shape_cast %306 : vector<2x32xf32> to vector<1x1x2x32xf32>
    tpu.vector_store %arg18[%c0_87, %c5_88, %c0_89, %c0_90], %309 {strides = array<i32>} : memref<2x8x2x32xf32, #tpu.memory_space<vmem>>, vector<1x1x2x32xf32>,
    %310 = vector.extract_strided_slice %305 {offsets = [2, 0], sizes = [2, 32], strides = [1, 1]} : vector<4x32xf32> to vector<2x32xf32>
    %c1_91 = arith.constant 1 : index
    %c2_92 = arith.constant 2 : index
    %c0_93 = arith.constant 0 : index
    %c0_94 = arith.constant 0 : index
    %311 = vector.load %arg18[%c1_91, %c2_92, %c0_93, %c0_94] : memref<2x8x2x32xf32, #tpu.memory_space<vmem>>, vector<1x1x2x32xf32>
    %312 = vector.shape_cast %311 : vector<1x1x2x32xf32> to vector<2x32xf32>
    %313 = vector.shape_cast %310 : vector<2x32xf32> to vector<1x1x2x32xf32>
    tpu.vector_store %arg18[%c1_91, %c2_92, %c0_93, %c0_94], %313 {strides = array<i32>} : memref<2x8x2x32xf32, #tpu.memory_space<vmem>>, vector<1x1x2x32xf32>,
    %314 = vector.extract_strided_slice %9 {offsets = [12, 0], sizes = [2, 32], strides = [1, 1]} : vector<16x32xf32> to vector<2x32xf32>
    %315 = vector.extract_strided_slice %9 {offsets = [2, 0], sizes = [2, 32], strides = [1, 1]} : vector<16x32xf32> to vector<2x32xf32>
    %316 = vector.extract_strided_slice %298 {offsets = [0, 0], sizes = [2, 32], strides = [1, 1]} : vector<4x32xf32> to vector<2x32xf32>
    %317 = tpu.concatenate %314, %316, %29 in 1 : vector<2x32xf32>, vector<2x32xf32>, vector<2x64xf32> -> vector<2x128xf32>
    %318 = vector.extract_strided_slice %298 {offsets = [2, 0], sizes = [2, 32], strides = [1, 1]} : vector<4x32xf32> to vector<2x32xf32>
    %319 = tpu.concatenate %29, %315, %318 in 1 : vector<2x64xf32>, vector<2x32xf32>, vector<2x32xf32> -> vector<2x128xf32>
    %320 = tpu.concatenate %317, %319 in 0 : vector<2x128xf32>, vector<2x128xf32> -> vector<4x128xf32>
    %c0_95 = arith.constant 0 : index
    %c0_96 = arith.constant 0 : index
    %321 = vector.load %arg7[%c0_95, %c0_96] : memref<128x128xf32, #tpu.memory_space<vmem>>, vector<128x128xf32>
    %cst_97 = arith.constant dense<0.000000e+00> : vector<4x128xf32>
    %322 = tpu.matmul %320, %321, %cst_97 {dimension_numbers = #tpu.dot_dimension_numbers<[1], [0], [0], [1], [0, 0, 1, 1], [], []>} : vector<4x128xf32>, vector<128x128xf32>, vector<4x128xf32> -> vector<4x128xf32>
    %323 = arith.addf %322, %24 : vector<4x128xf32>
    %324 = arith.negf %323 : vector<4x128xf32>
    %325 = math.exp %324 : vector<4x128xf32>
    %cst_98 = arith.constant 1.000000e+00 : f32
    %326 = vector.broadcast %cst_98 : f32 to vector<4x128xf32>
    %327 = arith.addf %326, %325 : vector<4x128xf32>
    %328 = arith.divf %326, %327 : vector<4x128xf32>
    %329 = math.tanh %323 : vector<4x128xf32>
    %330 = vector.extract_strided_slice %328 {offsets = [0, 32], sizes = [4, 32], strides = [1, 1]} : vector<4x128xf32> to vector<4x32xf32>
    %331 = arith.mulf %330, %301 : vector<4x32xf32>
    %332 = vector.extract_strided_slice %328 {offsets = [0, 0], sizes = [4, 32], strides = [1, 1]} : vector<4x128xf32> to vector<4x32xf32>
    %333 = vector.extract_strided_slice %329 {offsets = [0, 64], sizes = [4, 32], strides = [1, 1]} : vector<4x128xf32> to vector<4x32xf32>
    %334 = arith.mulf %332, %333 : vector<4x32xf32>
    %335 = arith.addf %331, %334 : vector<4x32xf32>
    %336 = vector.extract_strided_slice %328 {offsets = [0, 96], sizes = [4, 32], strides = [1, 1]} : vector<4x128xf32> to vector<4x32xf32>
    %337 = math.tanh %335 : vector<4x32xf32>
    %338 = arith.mulf %336, %337 : vector<4x32xf32>
    %c6_i32_99 = arith.constant 6 : i32
    %c1_i32_100 = arith.constant 1 : i32
    %339 = vector.broadcast %c6_i32_99 : i32 to vector<4x1xi32>
    %340 = vector.broadcast %c1_i32_100 : i32 to vector<4x1xi32>
    %341 = arith.select %28, %339, %340 : vector<4x1xi1>, vector<4x1xi32>
    %342 = arith.cmpi sgt, %25, %341 : vector<4x1xi32>
    %343 = vector.shape_cast %342 : vector<4x1xi1> to vector<4x1xi1>
    %344 = vector.broadcast %343 : vector<4x1xi1> to vector<4x32xi1>
    %345 = arith.select %344, %338, %298 : vector<4x32xi1>, vector<4x32xf32>
    %346 = vector.shape_cast %342 : vector<4x1xi1> to vector<4x1xi1>
    %347 = vector.broadcast %346 : vector<4x1xi1> to vector<4x32xi1>
    %348 = arith.select %347, %335, %301 : vector<4x32xi1>, vector<4x32xf32>
    %cst_101 = arith.constant 0.000000e+00 : f32
    %349 = vector.shape_cast %342 : vector<4x1xi1> to vector<4x1xi1>
    %350 = vector.broadcast %349 : vector<4x1xi1> to vector<4x32xi1>
    %351 = vector.broadcast %cst_101 : f32 to vector<4x32xf32>
    %352 = arith.select %350, %338, %351 : vector<4x32xi1>, vector<4x32xf32>
    %353 = vector.extract_strided_slice %352 {offsets = [0, 0], sizes = [2, 32], strides = [1, 1]} : vector<4x32xf32> to vector<2x32xf32>
    %c0_102 = arith.constant 0 : index
    %c6_103 = arith.constant 6 : index
    %c0_104 = arith.constant 0 : index
    %c0_105 = arith.constant 0 : index
    %354 = vector.load %arg18[%c0_102, %c6_103, %c0_104, %c0_105] : memref<2x8x2x32xf32, #tpu.memory_space<vmem>>, vector<1x1x2x32xf32>
    %355 = vector.shape_cast %354 : vector<1x1x2x32xf32> to vector<2x32xf32>
    %356 = vector.shape_cast %353 : vector<2x32xf32> to vector<1x1x2x32xf32>
    tpu.vector_store %arg18[%c0_102, %c6_103, %c0_104, %c0_105], %356 {strides = array<i32>} : memref<2x8x2x32xf32, #tpu.memory_space<vmem>>, vector<1x1x2x32xf32>,
    %357 = vector.extract_strided_slice %352 {offsets = [2, 0], sizes = [2, 32], strides = [1, 1]} : vector<4x32xf32> to vector<2x32xf32>
    %c1_106 = arith.constant 1 : index
    %c1_107 = arith.constant 1 : index
    %c0_108 = arith.constant 0 : index
    %c0_109 = arith.constant 0 : index
    %358 = vector.load %arg18[%c1_106, %c1_107, %c0_108, %c0_109] : memref<2x8x2x32xf32, #tpu.memory_space<vmem>>, vector<1x1x2x32xf32>
    %359 = vector.shape_cast %358 : vector<1x1x2x32xf32> to vector<2x32xf32>
    %360 = vector.shape_cast %357 : vector<2x32xf32> to vector<1x1x2x32xf32>
    tpu.vector_store %arg18[%c1_106, %c1_107, %c0_108, %c0_109], %360 {strides = array<i32>} : memref<2x8x2x32xf32, #tpu.memory_space<vmem>>, vector<1x1x2x32xf32>,
    %361 = vector.extract_strided_slice %9 {offsets = [14, 0], sizes = [2, 32], strides = [1, 1]} : vector<16x32xf32> to vector<2x32xf32>
    %362 = vector.extract_strided_slice %9 {offsets = [0, 0], sizes = [2, 32], strides = [1, 1]} : vector<16x32xf32> to vector<2x32xf32>
    %363 = vector.extract_strided_slice %345 {offsets = [0, 0], sizes = [2, 32], strides = [1, 1]} : vector<4x32xf32> to vector<2x32xf32>
    %364 = tpu.concatenate %361, %363, %29 in 1 : vector<2x32xf32>, vector<2x32xf32>, vector<2x64xf32> -> vector<2x128xf32>
    %365 = vector.extract_strided_slice %345 {offsets = [2, 0], sizes = [2, 32], strides = [1, 1]} : vector<4x32xf32> to vector<2x32xf32>
    %366 = tpu.concatenate %29, %362, %365 in 1 : vector<2x64xf32>, vector<2x32xf32>, vector<2x32xf32> -> vector<2x128xf32>
    %367 = tpu.concatenate %364, %366 in 0 : vector<2x128xf32>, vector<2x128xf32> -> vector<4x128xf32>
    %c0_110 = arith.constant 0 : index
    %c0_111 = arith.constant 0 : index
    %368 = vector.load %arg7[%c0_110, %c0_111] : memref<128x128xf32, #tpu.memory_space<vmem>>, vector<128x128xf32>
    %cst_112 = arith.constant dense<0.000000e+00> : vector<4x128xf32>
    %369 = tpu.matmul %367, %368, %cst_112 {dimension_numbers = #tpu.dot_dimension_numbers<[1], [0], [0], [1], [0, 0, 1, 1], [], []>} : vector<4x128xf32>, vector<128x128xf32>, vector<4x128xf32> -> vector<4x128xf32>
    %370 = arith.addf %369, %24 : vector<4x128xf32>
    %371 = arith.negf %370 : vector<4x128xf32>
    %372 = math.exp %371 : vector<4x128xf32>
    %cst_113 = arith.constant 1.000000e+00 : f32
    %373 = vector.broadcast %cst_113 : f32 to vector<4x128xf32>
    %374 = arith.addf %373, %372 : vector<4x128xf32>
    %375 = arith.divf %373, %374 : vector<4x128xf32>
    %376 = math.tanh %370 : vector<4x128xf32>
    %377 = vector.extract_strided_slice %375 {offsets = [0, 32], sizes = [4, 32], strides = [1, 1]} : vector<4x128xf32> to vector<4x32xf32>
    %378 = arith.mulf %377, %348 : vector<4x32xf32>
    %379 = vector.extract_strided_slice %375 {offsets = [0, 0], sizes = [4, 32], strides = [1, 1]} : vector<4x128xf32> to vector<4x32xf32>
    %380 = vector.extract_strided_slice %376 {offsets = [0, 64], sizes = [4, 32], strides = [1, 1]} : vector<4x128xf32> to vector<4x32xf32>
    %381 = arith.mulf %379, %380 : vector<4x32xf32>
    %382 = arith.addf %378, %381 : vector<4x32xf32>
    %383 = vector.extract_strided_slice %375 {offsets = [0, 96], sizes = [4, 32], strides = [1, 1]} : vector<4x128xf32> to vector<4x32xf32>
    %384 = math.tanh %382 : vector<4x32xf32>
    %385 = arith.mulf %383, %384 : vector<4x32xf32>
    %c7_i32_114 = arith.constant 7 : i32
    %c0_i32_115 = arith.constant 0 : i32
    %386 = vector.broadcast %c7_i32_114 : i32 to vector<4x1xi32>
    %387 = vector.broadcast %c0_i32_115 : i32 to vector<4x1xi32>
    %388 = arith.select %28, %386, %387 : vector<4x1xi1>, vector<4x1xi32>
    %389 = arith.cmpi sgt, %25, %388 : vector<4x1xi32>
    %390 = vector.shape_cast %389 : vector<4x1xi1> to vector<4x1xi1>
    %391 = vector.broadcast %390 : vector<4x1xi1> to vector<4x32xi1>
    %392 = arith.select %391, %385, %345 : vector<4x32xi1>, vector<4x32xf32>
    %393 = vector.shape_cast %389 : vector<4x1xi1> to vector<4x1xi1>
    %394 = vector.broadcast %393 : vector<4x1xi1> to vector<4x32xi1>
    %395 = arith.select %394, %382, %348 : vector<4x32xi1>, vector<4x32xf32>
    %cst_116 = arith.constant 0.000000e+00 : f32
    %396 = vector.shape_cast %389 : vector<4x1xi1> to vector<4x1xi1>
    %397 = vector.broadcast %396 : vector<4x1xi1> to vector<4x32xi1>
    %398 = vector.broadcast %cst_116 : f32 to vector<4x32xf32>
    %399 = arith.select %397, %385, %398 : vector<4x32xi1>, vector<4x32xf32>
    %400 = vector.extract_strided_slice %399 {offsets = [0, 0], sizes = [2, 32], strides = [1, 1]} : vector<4x32xf32> to vector<2x32xf32>
    %c0_117 = arith.constant 0 : index
    %c7_118 = arith.constant 7 : index
    %c0_119 = arith.constant 0 : index
    %c0_120 = arith.constant 0 : index
    %401 = vector.load %arg18[%c0_117, %c7_118, %c0_119, %c0_120] : memref<2x8x2x32xf32, #tpu.memory_space<vmem>>, vector<1x1x2x32xf32>
    %402 = vector.shape_cast %401 : vector<1x1x2x32xf32> to vector<2x32xf32>
    %403 = vector.shape_cast %400 : vector<2x32xf32> to vector<1x1x2x32xf32>
    tpu.vector_store %arg18[%c0_117, %c7_118, %c0_119, %c0_120], %403 {strides = array<i32>} : memref<2x8x2x32xf32, #tpu.memory_space<vmem>>, vector<1x1x2x32xf32>,
    %404 = vector.extract_strided_slice %399 {offsets = [2, 0], sizes = [2, 32], strides = [1, 1]} : vector<4x32xf32> to vector<2x32xf32>
    %c1_121 = arith.constant 1 : index
    %c0_122 = arith.constant 0 : index
    %c0_123 = arith.constant 0 : index
    %c0_124 = arith.constant 0 : index
    %405 = vector.load %arg18[%c1_121, %c0_122, %c0_123, %c0_124] : memref<2x8x2x32xf32, #tpu.memory_space<vmem>>, vector<1x1x2x32xf32>
    %406 = vector.shape_cast %405 : vector<1x1x2x32xf32> to vector<2x32xf32>
    %407 = vector.shape_cast %404 : vector<2x32xf32> to vector<1x1x2x32xf32>
    tpu.vector_store %arg18[%c1_121, %c0_122, %c0_123, %c0_124], %407 {strides = array<i32>} : memref<2x8x2x32xf32, #tpu.memory_space<vmem>>, vector<1x1x2x32xf32>,
    %408 = vector.extract_strided_slice %392 {offsets = [0, 0], sizes = [2, 32], strides = [1, 1]} : vector<4x32xf32> to vector<2x32xf32>
    %409 = vector.extract_strided_slice %392 {offsets = [2, 0], sizes = [2, 32], strides = [1, 1]} : vector<4x32xf32> to vector<2x32xf32>
    %410 = tpu.concatenate %408, %409 in 1 : vector<2x32xf32>, vector<2x32xf32> -> vector<2x64xf32>
    %c0_125 = arith.constant 0 : index
    %c0_126 = arith.constant 0 : index
    %411 = vector.load %arg12[%c0_125, %c0_126] : memref<64x32xf32, #tpu.memory_space<vmem>>, vector<64x32xf32>
    %cst_127 = arith.constant dense<0.000000e+00> : vector<2x32xf32>
    %412 = tpu.matmul %410, %411, %cst_127 {dimension_numbers = #tpu.dot_dimension_numbers<[1], [0], [0], [1], [0, 0, 1, 1], [], []>} : vector<2x64xf32>, vector<64x32xf32>, vector<2x32xf32> -> vector<2x32xf32>
    %413 = vector.extract_strided_slice %395 {offsets = [0, 0], sizes = [2, 32], strides = [1, 1]} : vector<4x32xf32> to vector<2x32xf32>
    %414 = vector.extract_strided_slice %395 {offsets = [2, 0], sizes = [2, 32], strides = [1, 1]} : vector<4x32xf32> to vector<2x32xf32>
    %415 = tpu.concatenate %413, %414 in 1 : vector<2x32xf32>, vector<2x32xf32> -> vector<2x64xf32>
    %c0_128 = arith.constant 0 : index
    %c0_129 = arith.constant 0 : index
    %416 = vector.load %arg13[%c0_128, %c0_129] : memref<64x32xf32, #tpu.memory_space<vmem>>, vector<64x32xf32>
    %cst_130 = arith.constant dense<0.000000e+00> : vector<2x32xf32>
    %417 = tpu.matmul %415, %416, %cst_130 {dimension_numbers = #tpu.dot_dimension_numbers<[1], [0], [0], [1], [0, 0, 1, 1], [], []>} : vector<2x64xf32>, vector<64x32xf32>, vector<2x32xf32> -> vector<2x32xf32>
    %c0_131 = arith.constant 0 : index
    %c0_132 = arith.constant 0 : index
    %c0_133 = arith.constant 0 : index
    %c0_134 = arith.constant 0 : index
    %418 = vector.load %arg18[%c0_131, %c0_132, %c0_133, %c0_134] : memref<2x8x2x32xf32, #tpu.memory_space<vmem>>, vector<1x8x2x32xf32>
    %419 = vector.shape_cast %418 : vector<1x8x2x32xf32> to vector<8x2x32xf32>
    %c1_135 = arith.constant 1 : index
    %c0_136 = arith.constant 0 : index
    %c0_137 = arith.constant 0 : index
    %c0_138 = arith.constant 0 : index
    %420 = vector.load %arg18[%c1_135, %c0_136, %c0_137, %c0_138] : memref<2x8x2x32xf32, #tpu.memory_space<vmem>>, vector<1x8x2x32xf32>
    %421 = vector.shape_cast %420 : vector<1x8x2x32xf32> to vector<8x2x32xf32>
    %422 = tpu.iota {dimensions = array<i32: 0>} : vector<8x2xi32>
    %423 = vector.broadcast %1 : vector<1x2xi32> to vector<8x2xi32>
    %424 = arith.cmpi sge, %422, %423 : vector<8x2xi32>
    %c0_139 = arith.constant 0 : index
    %c0_140 = arith.constant 0 : index
    %425 = vector.load %arg11[%c0_139, %c0_140] : memref<1x128xf32, #tpu.memory_space<vmem>>, vector<1x128xf32>
    %426 = vector.shape_cast %425 : vector<1x128xf32> to vector<1x128xf32>
    %427 = vector.broadcast %426 : vector<1x128xf32> to vector<2x128xf32>
    %cst_141 = arith.constant 0.000000e+00 : f32
    %428 = vector.broadcast %cst_141 : f32 to vector<2x32xf32>
    %429 = vector.extract_strided_slice %17 {offsets = [0, 0], sizes = [2, 32], strides = [1, 1]} : vector<14x32xf32> to vector<2x32xf32>
    %430 = tpu.concatenate %429, %428, %412 in 1 : vector<2x32xf32>, vector<2x32xf32>, vector<2x32xf32> -> vector<2x96xf32>
    %c0_142 = arith.constant 0 : index
    %c0_143 = arith.constant 0 : index
    %431 = vector.load %arg10[%c0_142, %c0_143] : memref<96x128xf32, #tpu.memory_space<vmem>>, vector<96x128xf32>
    %cst_144 = arith.constant dense<0.000000e+00> : vector<2x128xf32>
    %432 = tpu.matmul %430, %431, %cst_144 {dimension_numbers = #tpu.dot_dimension_numbers<[1], [0], [0], [1], [0, 0, 1, 1], [], []>} : vector<2x96xf32>, vector<96x128xf32>, vector<2x128xf32> -> vector<2x128xf32>
    %433 = arith.addf %432, %427 : vector<2x128xf32>
    %434 = arith.negf %433 : vector<2x128xf32>
    %435 = math.exp %434 : vector<2x128xf32>
    %cst_145 = arith.constant 1.000000e+00 : f32
    %436 = vector.broadcast %cst_145 : f32 to vector<2x128xf32>
    %437 = arith.addf %436, %435 : vector<2x128xf32>
    %438 = arith.divf %436, %437 : vector<2x128xf32>
    %439 = math.tanh %433 : vector<2x128xf32>
    %440 = vector.extract_strided_slice %438 {offsets = [0, 32], sizes = [2, 32], strides = [1, 1]} : vector<2x128xf32> to vector<2x32xf32>
    %441 = arith.mulf %440, %417 : vector<2x32xf32>
    %442 = vector.extract_strided_slice %438 {offsets = [0, 0], sizes = [2, 32], strides = [1, 1]} : vector<2x128xf32> to vector<2x32xf32>
    %443 = vector.extract_strided_slice %439 {offsets = [0, 64], sizes = [2, 32], strides = [1, 1]} : vector<2x128xf32> to vector<2x32xf32>
    %444 = arith.mulf %442, %443 : vector<2x32xf32>
    %445 = arith.addf %441, %444 : vector<2x32xf32>
    %446 = vector.extract_strided_slice %438 {offsets = [0, 96], sizes = [2, 32], strides = [1, 1]} : vector<2x128xf32> to vector<2x32xf32>
    %447 = math.tanh %445 : vector<2x32xf32>
    %448 = arith.mulf %446, %447 : vector<2x32xf32>
    %c0_146 = arith.constant 0 : index
    %c0_147 = arith.constant 0 : index
    %449 = vector.load %arg14[%c0_146, %c0_147] : memref<32x64xf32, #tpu.memory_space<vmem>>, vector<32x64xf32>
    %cst_148 = arith.constant dense<0.000000e+00> : vector<2x64xf32>
    %450 = tpu.matmul %448, %449, %cst_148 {dimension_numbers = #tpu.dot_dimension_numbers<[1], [0], [0], [1], [0, 0, 1, 1], [], []>} : vector<2x32xf32>, vector<32x64xf32>, vector<2x64xf32> -> vector<2x64xf32>
    %451 = vector.extract_strided_slice %450 {offsets = [0, 0], sizes = [2, 32], strides = [1, 1]} : vector<2x64xf32> to vector<2x32xf32>
    %452 = vector.shape_cast %451 : vector<2x32xf32> to vector<1x2x32xf32>
    %453 = vector.broadcast %452 : vector<1x2x32xf32> to vector<8x2x32xf32>
    %454 = arith.mulf %419, %453 : vector<8x2x32xf32>
    %cst_149 = arith.constant dense<0.000000e+00> : vector<8x2xf32>
    %455 = vector.multi_reduction <add>, %454, %cst_149 [2] : vector<8x2x32xf32> to vector<8x2xf32>
    %456 = vector.extract_strided_slice %450 {offsets = [0, 32], sizes = [2, 32], strides = [1, 1]} : vector<2x64xf32> to vector<2x32xf32>
    %457 = vector.shape_cast %456 : vector<2x32xf32> to vector<1x2x32xf32>
    %458 = vector.broadcast %457 : vector<1x2x32xf32> to vector<8x2x32xf32>
    %459 = arith.mulf %421, %458 : vector<8x2x32xf32>
    %cst_150 = arith.constant dense<0.000000e+00> : vector<8x2xf32>
    %460 = vector.multi_reduction <add>, %459, %cst_150 [2] : vector<8x2x32xf32> to vector<8x2xf32>
    %461 = arith.addf %455, %460 : vector<8x2xf32>
    %cst_151 = arith.constant -1.000000e+30 : f32
    %462 = vector.broadcast %cst_151 : f32 to vector<8x2xf32>
    %463 = arith.select %424, %462, %461 : vector<8x2xi1>, vector<8x2xf32>
    %cst_152 = arith.constant dense<0xFF800000> : vector<2xf32>
    %464 = vector.multi_reduction <maximumf>, %463, %cst_152 [0] : vector<8x2xf32> to vector<2xf32>
    %465 = vector.shape_cast %464 : vector<2xf32> to vector<1x2xf32>
    %466 = vector.broadcast %465 : vector<1x2xf32> to vector<8x2xf32>
    %467 = arith.subf %463, %466 : vector<8x2xf32>
    %468 = math.exp %467 : vector<8x2xf32>
    %cst_153 = arith.constant dense<0.000000e+00> : vector<2xf32>
    %469 = vector.multi_reduction <add>, %468, %cst_153 [0] : vector<8x2xf32> to vector<2xf32>
    %470 = vector.shape_cast %469 : vector<2xf32> to vector<1x2xf32>
    %471 = vector.broadcast %470 : vector<1x2xf32> to vector<8x2xf32>
    %472 = arith.divf %468, %471 : vector<8x2xf32>
    %473 = vector.shape_cast %472 : vector<8x2xf32> to vector<8x2x1xf32>
    %474 = vector.broadcast %473 : vector<8x2x1xf32> to vector<8x2x32xf32>
    %475 = arith.mulf %474, %419 : vector<8x2x32xf32>
    %cst_154 = arith.constant dense<0.000000e+00> : vector<2x32xf32>
    %476 = vector.multi_reduction <add>, %475, %cst_154 [0] : vector<8x2x32xf32> to vector<2x32xf32>
    %477 = vector.broadcast %473 : vector<8x2x1xf32> to vector<8x2x32xf32>
    %478 = arith.mulf %477, %421 : vector<8x2x32xf32>
    %cst_155 = arith.constant dense<0.000000e+00> : vector<2x32xf32>
    %479 = vector.multi_reduction <add>, %478, %cst_155 [0] : vector<8x2x32xf32> to vector<2x32xf32>
    %480 = tpu.concatenate %476, %479, %448 in 1 : vector<2x32xf32>, vector<2x32xf32>, vector<2x32xf32> -> vector<2x96xf32>
    %c0_156 = arith.constant 0 : index
    %c0_157 = arith.constant 0 : index
    %481 = vector.load %arg15[%c0_156, %c0_157] : memref<96x32xf32, #tpu.memory_space<vmem>>, vector<96x32xf32>
    %cst_158 = arith.constant dense<0.000000e+00> : vector<2x32xf32>
    %482 = tpu.matmul %480, %481, %cst_158 {dimension_numbers = #tpu.dot_dimension_numbers<[1], [0], [0], [1], [0, 0, 1, 1], [], []>} : vector<2x96xf32>, vector<96x32xf32>, vector<2x32xf32> -> vector<2x32xf32>
    %483 = math.tanh %482 : vector<2x32xf32>
    %484 = vector.extract_strided_slice %17 {offsets = [2, 0], sizes = [2, 32], strides = [1, 1]} : vector<14x32xf32> to vector<2x32xf32>
    %485 = tpu.concatenate %484, %483, %448 in 1 : vector<2x32xf32>, vector<2x32xf32>, vector<2x32xf32> -> vector<2x96xf32>
    %c0_159 = arith.constant 0 : index
    %c0_160 = arith.constant 0 : index
    %486 = vector.load %arg10[%c0_159, %c0_160] : memref<96x128xf32, #tpu.memory_space<vmem>>, vector<96x128xf32>
    %cst_161 = arith.constant dense<0.000000e+00> : vector<2x128xf32>
    %487 = tpu.matmul %485, %486, %cst_161 {dimension_numbers = #tpu.dot_dimension_numbers<[1], [0], [0], [1], [0, 0, 1, 1], [], []>} : vector<2x96xf32>, vector<96x128xf32>, vector<2x128xf32> -> vector<2x128xf32>
    %488 = arith.addf %487, %427 : vector<2x128xf32>
    %489 = arith.negf %488 : vector<2x128xf32>
    %490 = math.exp %489 : vector<2x128xf32>
    %cst_162 = arith.constant 1.000000e+00 : f32
    %491 = vector.broadcast %cst_162 : f32 to vector<2x128xf32>
    %492 = arith.addf %491, %490 : vector<2x128xf32>
    %493 = arith.divf %491, %492 : vector<2x128xf32>
    %494 = math.tanh %488 : vector<2x128xf32>
    %495 = vector.extract_strided_slice %493 {offsets = [0, 32], sizes = [2, 32], strides = [1, 1]} : vector<2x128xf32> to vector<2x32xf32>
    %496 = arith.mulf %495, %445 : vector<2x32xf32>
    %497 = vector.extract_strided_slice %493 {offsets = [0, 0], sizes = [2, 32], strides = [1, 1]} : vector<2x128xf32> to vector<2x32xf32>
    %498 = vector.extract_strided_slice %494 {offsets = [0, 64], sizes = [2, 32], strides = [1, 1]} : vector<2x128xf32> to vector<2x32xf32>
    %499 = arith.mulf %497, %498 : vector<2x32xf32>
    %500 = arith.addf %496, %499 : vector<2x32xf32>
    %501 = vector.extract_strided_slice %493 {offsets = [0, 96], sizes = [2, 32], strides = [1, 1]} : vector<2x128xf32> to vector<2x32xf32>
    %502 = math.tanh %500 : vector<2x32xf32>
    %503 = arith.mulf %501, %502 : vector<2x32xf32>
    %c0_163 = arith.constant 0 : index
    %c0_164 = arith.constant 0 : index
    %504 = vector.load %arg14[%c0_163, %c0_164] : memref<32x64xf32, #tpu.memory_space<vmem>>, vector<32x64xf32>
    %cst_165 = arith.constant dense<0.000000e+00> : vector<2x64xf32>
    %505 = tpu.matmul %503, %504, %cst_165 {dimension_numbers = #tpu.dot_dimension_numbers<[1], [0], [0], [1], [0, 0, 1, 1], [], []>} : vector<2x32xf32>, vector<32x64xf32>, vector<2x64xf32> -> vector<2x64xf32>
    %506 = vector.extract_strided_slice %505 {offsets = [0, 0], sizes = [2, 32], strides = [1, 1]} : vector<2x64xf32> to vector<2x32xf32>
    %507 = vector.shape_cast %506 : vector<2x32xf32> to vector<1x2x32xf32>
    %508 = vector.broadcast %507 : vector<1x2x32xf32> to vector<8x2x32xf32>
    %509 = arith.mulf %419, %508 : vector<8x2x32xf32>
    %cst_166 = arith.constant dense<0.000000e+00> : vector<8x2xf32>
    %510 = vector.multi_reduction <add>, %509, %cst_166 [2] : vector<8x2x32xf32> to vector<8x2xf32>
    %511 = vector.extract_strided_slice %505 {offsets = [0, 32], sizes = [2, 32], strides = [1, 1]} : vector<2x64xf32> to vector<2x32xf32>
    %512 = vector.shape_cast %511 : vector<2x32xf32> to vector<1x2x32xf32>
    %513 = vector.broadcast %512 : vector<1x2x32xf32> to vector<8x2x32xf32>
    %514 = arith.mulf %421, %513 : vector<8x2x32xf32>
    %cst_167 = arith.constant dense<0.000000e+00> : vector<8x2xf32>
    %515 = vector.multi_reduction <add>, %514, %cst_167 [2] : vector<8x2x32xf32> to vector<8x2xf32>
    %516 = arith.addf %510, %515 : vector<8x2xf32>
    %cst_168 = arith.constant -1.000000e+30 : f32
    %517 = vector.broadcast %cst_168 : f32 to vector<8x2xf32>
    %518 = arith.select %424, %517, %516 : vector<8x2xi1>, vector<8x2xf32>
    %cst_169 = arith.constant dense<0xFF800000> : vector<2xf32>
    %519 = vector.multi_reduction <maximumf>, %518, %cst_169 [0] : vector<8x2xf32> to vector<2xf32>
    %520 = vector.shape_cast %519 : vector<2xf32> to vector<1x2xf32>
    %521 = vector.broadcast %520 : vector<1x2xf32> to vector<8x2xf32>
    %522 = arith.subf %518, %521 : vector<8x2xf32>
    %523 = math.exp %522 : vector<8x2xf32>
    %cst_170 = arith.constant dense<0.000000e+00> : vector<2xf32>
    %524 = vector.multi_reduction <add>, %523, %cst_170 [0] : vector<8x2xf32> to vector<2xf32>
    %525 = vector.shape_cast %524 : vector<2xf32> to vector<1x2xf32>
    %526 = vector.broadcast %525 : vector<1x2xf32> to vector<8x2xf32>
    %527 = arith.divf %523, %526 : vector<8x2xf32>
    %528 = vector.shape_cast %527 : vector<8x2xf32> to vector<8x2x1xf32>
    %529 = vector.broadcast %528 : vector<8x2x1xf32> to vector<8x2x32xf32>
    %530 = arith.mulf %529, %419 : vector<8x2x32xf32>
    %cst_171 = arith.constant dense<0.000000e+00> : vector<2x32xf32>
    %531 = vector.multi_reduction <add>, %530, %cst_171 [0] : vector<8x2x32xf32> to vector<2x32xf32>
    %532 = vector.broadcast %528 : vector<8x2x1xf32> to vector<8x2x32xf32>
    %533 = arith.mulf %532, %421 : vector<8x2x32xf32>
    %cst_172 = arith.constant dense<0.000000e+00> : vector<2x32xf32>
    %534 = vector.multi_reduction <add>, %533, %cst_172 [0] : vector<8x2x32xf32> to vector<2x32xf32>
    %535 = tpu.concatenate %531, %534, %503 in 1 : vector<2x32xf32>, vector<2x32xf32>, vector<2x32xf32> -> vector<2x96xf32>
    %c0_173 = arith.constant 0 : index
    %c0_174 = arith.constant 0 : index
    %536 = vector.load %arg15[%c0_173, %c0_174] : memref<96x32xf32, #tpu.memory_space<vmem>>, vector<96x32xf32>
    %cst_175 = arith.constant dense<0.000000e+00> : vector<2x32xf32>
    %537 = tpu.matmul %535, %536, %cst_175 {dimension_numbers = #tpu.dot_dimension_numbers<[1], [0], [0], [1], [0, 0, 1, 1], [], []>} : vector<2x96xf32>, vector<96x32xf32>, vector<2x32xf32> -> vector<2x32xf32>
    %538 = math.tanh %537 : vector<2x32xf32>
    %539 = vector.extract_strided_slice %17 {offsets = [4, 0], sizes = [2, 32], strides = [1, 1]} : vector<14x32xf32> to vector<2x32xf32>
    %540 = tpu.concatenate %539, %538, %503 in 1 : vector<2x32xf32>, vector<2x32xf32>, vector<2x32xf32> -> vector<2x96xf32>
    %c0_176 = arith.constant 0 : index
    %c0_177 = arith.constant 0 : index
    %541 = vector.load %arg10[%c0_176, %c0_177] : memref<96x128xf32, #tpu.memory_space<vmem>>, vector<96x128xf32>
    %cst_178 = arith.constant dense<0.000000e+00> : vector<2x128xf32>
    %542 = tpu.matmul %540, %541, %cst_178 {dimension_numbers = #tpu.dot_dimension_numbers<[1], [0], [0], [1], [0, 0, 1, 1], [], []>} : vector<2x96xf32>, vector<96x128xf32>, vector<2x128xf32> -> vector<2x128xf32>
    %543 = arith.addf %542, %427 : vector<2x128xf32>
    %544 = arith.negf %543 : vector<2x128xf32>
    %545 = math.exp %544 : vector<2x128xf32>
    %cst_179 = arith.constant 1.000000e+00 : f32
    %546 = vector.broadcast %cst_179 : f32 to vector<2x128xf32>
    %547 = arith.addf %546, %545 : vector<2x128xf32>
    %548 = arith.divf %546, %547 : vector<2x128xf32>
    %549 = math.tanh %543 : vector<2x128xf32>
    %550 = vector.extract_strided_slice %548 {offsets = [0, 32], sizes = [2, 32], strides = [1, 1]} : vector<2x128xf32> to vector<2x32xf32>
    %551 = arith.mulf %550, %500 : vector<2x32xf32>
    %552 = vector.extract_strided_slice %548 {offsets = [0, 0], sizes = [2, 32], strides = [1, 1]} : vector<2x128xf32> to vector<2x32xf32>
    %553 = vector.extract_strided_slice %549 {offsets = [0, 64], sizes = [2, 32], strides = [1, 1]} : vector<2x128xf32> to vector<2x32xf32>
    %554 = arith.mulf %552, %553 : vector<2x32xf32>
    %555 = arith.addf %551, %554 : vector<2x32xf32>
    %556 = vector.extract_strided_slice %548 {offsets = [0, 96], sizes = [2, 32], strides = [1, 1]} : vector<2x128xf32> to vector<2x32xf32>
    %557 = math.tanh %555 : vector<2x32xf32>
    %558 = arith.mulf %556, %557 : vector<2x32xf32>
    %c0_180 = arith.constant 0 : index
    %c0_181 = arith.constant 0 : index
    %559 = vector.load %arg14[%c0_180, %c0_181] : memref<32x64xf32, #tpu.memory_space<vmem>>, vector<32x64xf32>
    %cst_182 = arith.constant dense<0.000000e+00> : vector<2x64xf32>
    %560 = tpu.matmul %558, %559, %cst_182 {dimension_numbers = #tpu.dot_dimension_numbers<[1], [0], [0], [1], [0, 0, 1, 1], [], []>} : vector<2x32xf32>, vector<32x64xf32>, vector<2x64xf32> -> vector<2x64xf32>
    %561 = vector.extract_strided_slice %560 {offsets = [0, 0], sizes = [2, 32], strides = [1, 1]} : vector<2x64xf32> to vector<2x32xf32>
    %562 = vector.shape_cast %561 : vector<2x32xf32> to vector<1x2x32xf32>
    %563 = vector.broadcast %562 : vector<1x2x32xf32> to vector<8x2x32xf32>
    %564 = arith.mulf %419, %563 : vector<8x2x32xf32>
    %cst_183 = arith.constant dense<0.000000e+00> : vector<8x2xf32>
    %565 = vector.multi_reduction <add>, %564, %cst_183 [2] : vector<8x2x32xf32> to vector<8x2xf32>
    %566 = vector.extract_strided_slice %560 {offsets = [0, 32], sizes = [2, 32], strides = [1, 1]} : vector<2x64xf32> to vector<2x32xf32>
    %567 = vector.shape_cast %566 : vector<2x32xf32> to vector<1x2x32xf32>
    %568 = vector.broadcast %567 : vector<1x2x32xf32> to vector<8x2x32xf32>
    %569 = arith.mulf %421, %568 : vector<8x2x32xf32>
    %cst_184 = arith.constant dense<0.000000e+00> : vector<8x2xf32>
    %570 = vector.multi_reduction <add>, %569, %cst_184 [2] : vector<8x2x32xf32> to vector<8x2xf32>
    %571 = arith.addf %565, %570 : vector<8x2xf32>
    %cst_185 = arith.constant -1.000000e+30 : f32
    %572 = vector.broadcast %cst_185 : f32 to vector<8x2xf32>
    %573 = arith.select %424, %572, %571 : vector<8x2xi1>, vector<8x2xf32>
    %cst_186 = arith.constant dense<0xFF800000> : vector<2xf32>
    %574 = vector.multi_reduction <maximumf>, %573, %cst_186 [0] : vector<8x2xf32> to vector<2xf32>
    %575 = vector.shape_cast %574 : vector<2xf32> to vector<1x2xf32>
    %576 = vector.broadcast %575 : vector<1x2xf32> to vector<8x2xf32>
    %577 = arith.subf %573, %576 : vector<8x2xf32>
    %578 = math.exp %577 : vector<8x2xf32>
    %cst_187 = arith.constant dense<0.000000e+00> : vector<2xf32>
    %579 = vector.multi_reduction <add>, %578, %cst_187 [0] : vector<8x2xf32> to vector<2xf32>
    %580 = vector.shape_cast %579 : vector<2xf32> to vector<1x2xf32>
    %581 = vector.broadcast %580 : vector<1x2xf32> to vector<8x2xf32>
    %582 = arith.divf %578, %581 : vector<8x2xf32>
    %583 = vector.shape_cast %582 : vector<8x2xf32> to vector<8x2x1xf32>
    %584 = vector.broadcast %583 : vector<8x2x1xf32> to vector<8x2x32xf32>
    %585 = arith.mulf %584, %419 : vector<8x2x32xf32>
    %cst_188 = arith.constant dense<0.000000e+00> : vector<2x32xf32>
    %586 = vector.multi_reduction <add>, %585, %cst_188 [0] : vector<8x2x32xf32> to vector<2x32xf32>
    %587 = vector.broadcast %583 : vector<8x2x1xf32> to vector<8x2x32xf32>
    %588 = arith.mulf %587, %421 : vector<8x2x32xf32>
    %cst_189 = arith.constant dense<0.000000e+00> : vector<2x32xf32>
    %589 = vector.multi_reduction <add>, %588, %cst_189 [0] : vector<8x2x32xf32> to vector<2x32xf32>
    %590 = tpu.concatenate %586, %589, %558 in 1 : vector<2x32xf32>, vector<2x32xf32>, vector<2x32xf32> -> vector<2x96xf32>
    %c0_190 = arith.constant 0 : index
    %c0_191 = arith.constant 0 : index
    %591 = vector.load %arg15[%c0_190, %c0_191] : memref<96x32xf32, #tpu.memory_space<vmem>>, vector<96x32xf32>
    %cst_192 = arith.constant dense<0.000000e+00> : vector<2x32xf32>
    %592 = tpu.matmul %590, %591, %cst_192 {dimension_numbers = #tpu.dot_dimension_numbers<[1], [0], [0], [1], [0, 0, 1, 1], [], []>} : vector<2x96xf32>, vector<96x32xf32>, vector<2x32xf32> -> vector<2x32xf32>
    %593 = math.tanh %592 : vector<2x32xf32>
    %594 = vector.extract_strided_slice %17 {offsets = [6, 0], sizes = [2, 32], strides = [1, 1]} : vector<14x32xf32> to vector<2x32xf32>
    %595 = tpu.concatenate %594, %593, %558 in 1 : vector<2x32xf32>, vector<2x32xf32>, vector<2x32xf32> -> vector<2x96xf32>
    %c0_193 = arith.constant 0 : index
    %c0_194 = arith.constant 0 : index
    %596 = vector.load %arg10[%c0_193, %c0_194] : memref<96x128xf32, #tpu.memory_space<vmem>>, vector<96x128xf32>
    %cst_195 = arith.constant dense<0.000000e+00> : vector<2x128xf32>
    %597 = tpu.matmul %595, %596, %cst_195 {dimension_numbers = #tpu.dot_dimension_numbers<[1], [0], [0], [1], [0, 0, 1, 1], [], []>} : vector<2x96xf32>, vector<96x128xf32>, vector<2x128xf32> -> vector<2x128xf32>
    %598 = arith.addf %597, %427 : vector<2x128xf32>
    %599 = arith.negf %598 : vector<2x128xf32>
    %600 = math.exp %599 : vector<2x128xf32>
    %cst_196 = arith.constant 1.000000e+00 : f32
    %601 = vector.broadcast %cst_196 : f32 to vector<2x128xf32>
    %602 = arith.addf %601, %600 : vector<2x128xf32>
    %603 = arith.divf %601, %602 : vector<2x128xf32>
    %604 = math.tanh %598 : vector<2x128xf32>
    %605 = vector.extract_strided_slice %603 {offsets = [0, 32], sizes = [2, 32], strides = [1, 1]} : vector<2x128xf32> to vector<2x32xf32>
    %606 = arith.mulf %605, %555 : vector<2x32xf32>
    %607 = vector.extract_strided_slice %603 {offsets = [0, 0], sizes = [2, 32], strides = [1, 1]} : vector<2x128xf32> to vector<2x32xf32>
    %608 = vector.extract_strided_slice %604 {offsets = [0, 64], sizes = [2, 32], strides = [1, 1]} : vector<2x128xf32> to vector<2x32xf32>
    %609 = arith.mulf %607, %608 : vector<2x32xf32>
    %610 = arith.addf %606, %609 : vector<2x32xf32>
    %611 = vector.extract_strided_slice %603 {offsets = [0, 96], sizes = [2, 32], strides = [1, 1]} : vector<2x128xf32> to vector<2x32xf32>
    %612 = math.tanh %610 : vector<2x32xf32>
    %613 = arith.mulf %611, %612 : vector<2x32xf32>
    %c0_197 = arith.constant 0 : index
    %c0_198 = arith.constant 0 : index
    %614 = vector.load %arg14[%c0_197, %c0_198] : memref<32x64xf32, #tpu.memory_space<vmem>>, vector<32x64xf32>
    %cst_199 = arith.constant dense<0.000000e+00> : vector<2x64xf32>
    %615 = tpu.matmul %613, %614, %cst_199 {dimension_numbers = #tpu.dot_dimension_numbers<[1], [0], [0], [1], [0, 0, 1, 1], [], []>} : vector<2x32xf32>, vector<32x64xf32>, vector<2x64xf32> -> vector<2x64xf32>
    %616 = vector.extract_strided_slice %615 {offsets = [0, 0], sizes = [2, 32], strides = [1, 1]} : vector<2x64xf32> to vector<2x32xf32>
    %617 = vector.shape_cast %616 : vector<2x32xf32> to vector<1x2x32xf32>
    %618 = vector.broadcast %617 : vector<1x2x32xf32> to vector<8x2x32xf32>
    %619 = arith.mulf %419, %618 : vector<8x2x32xf32>
    %cst_200 = arith.constant dense<0.000000e+00> : vector<8x2xf32>
    %620 = vector.multi_reduction <add>, %619, %cst_200 [2] : vector<8x2x32xf32> to vector<8x2xf32>
    %621 = vector.extract_strided_slice %615 {offsets = [0, 32], sizes = [2, 32], strides = [1, 1]} : vector<2x64xf32> to vector<2x32xf32>
    %622 = vector.shape_cast %621 : vector<2x32xf32> to vector<1x2x32xf32>
    %623 = vector.broadcast %622 : vector<1x2x32xf32> to vector<8x2x32xf32>
    %624 = arith.mulf %421, %623 : vector<8x2x32xf32>
    %cst_201 = arith.constant dense<0.000000e+00> : vector<8x2xf32>
    %625 = vector.multi_reduction <add>, %624, %cst_201 [2] : vector<8x2x32xf32> to vector<8x2xf32>
    %626 = arith.addf %620, %625 : vector<8x2xf32>
    %cst_202 = arith.constant -1.000000e+30 : f32
    %627 = vector.broadcast %cst_202 : f32 to vector<8x2xf32>
    %628 = arith.select %424, %627, %626 : vector<8x2xi1>, vector<8x2xf32>
    %cst_203 = arith.constant dense<0xFF800000> : vector<2xf32>
    %629 = vector.multi_reduction <maximumf>, %628, %cst_203 [0] : vector<8x2xf32> to vector<2xf32>
    %630 = vector.shape_cast %629 : vector<2xf32> to vector<1x2xf32>
    %631 = vector.broadcast %630 : vector<1x2xf32> to vector<8x2xf32>
    %632 = arith.subf %628, %631 : vector<8x2xf32>
    %633 = math.exp %632 : vector<8x2xf32>
    %cst_204 = arith.constant dense<0.000000e+00> : vector<2xf32>
    %634 = vector.multi_reduction <add>, %633, %cst_204 [0] : vector<8x2xf32> to vector<2xf32>
    %635 = vector.shape_cast %634 : vector<2xf32> to vector<1x2xf32>
    %636 = vector.broadcast %635 : vector<1x2xf32> to vector<8x2xf32>
    %637 = arith.divf %633, %636 : vector<8x2xf32>
    %638 = vector.shape_cast %637 : vector<8x2xf32> to vector<8x2x1xf32>
    %639 = vector.broadcast %638 : vector<8x2x1xf32> to vector<8x2x32xf32>
    %640 = arith.mulf %639, %419 : vector<8x2x32xf32>
    %cst_205 = arith.constant dense<0.000000e+00> : vector<2x32xf32>
    %641 = vector.multi_reduction <add>, %640, %cst_205 [0] : vector<8x2x32xf32> to vector<2x32xf32>
    %642 = vector.broadcast %638 : vector<8x2x1xf32> to vector<8x2x32xf32>
    %643 = arith.mulf %642, %421 : vector<8x2x32xf32>
    %cst_206 = arith.constant dense<0.000000e+00> : vector<2x32xf32>
    %644 = vector.multi_reduction <add>, %643, %cst_206 [0] : vector<8x2x32xf32> to vector<2x32xf32>
    %645 = tpu.concatenate %641, %644, %613 in 1 : vector<2x32xf32>, vector<2x32xf32>, vector<2x32xf32> -> vector<2x96xf32>
    %c0_207 = arith.constant 0 : index
    %c0_208 = arith.constant 0 : index
    %646 = vector.load %arg15[%c0_207, %c0_208] : memref<96x32xf32, #tpu.memory_space<vmem>>, vector<96x32xf32>
    %cst_209 = arith.constant dense<0.000000e+00> : vector<2x32xf32>
    %647 = tpu.matmul %645, %646, %cst_209 {dimension_numbers = #tpu.dot_dimension_numbers<[1], [0], [0], [1], [0, 0, 1, 1], [], []>} : vector<2x96xf32>, vector<96x32xf32>, vector<2x32xf32> -> vector<2x32xf32>
    %648 = math.tanh %647 : vector<2x32xf32>
    %649 = vector.extract_strided_slice %17 {offsets = [8, 0], sizes = [2, 32], strides = [1, 1]} : vector<14x32xf32> to vector<2x32xf32>
    %650 = tpu.concatenate %649, %648, %613 in 1 : vector<2x32xf32>, vector<2x32xf32>, vector<2x32xf32> -> vector<2x96xf32>
    %c0_210 = arith.constant 0 : index
    %c0_211 = arith.constant 0 : index
    %651 = vector.load %arg10[%c0_210, %c0_211] : memref<96x128xf32, #tpu.memory_space<vmem>>, vector<96x128xf32>
    %cst_212 = arith.constant dense<0.000000e+00> : vector<2x128xf32>
    %652 = tpu.matmul %650, %651, %cst_212 {dimension_numbers = #tpu.dot_dimension_numbers<[1], [0], [0], [1], [0, 0, 1, 1], [], []>} : vector<2x96xf32>, vector<96x128xf32>, vector<2x128xf32> -> vector<2x128xf32>
    %653 = arith.addf %652, %427 : vector<2x128xf32>
    %654 = arith.negf %653 : vector<2x128xf32>
    %655 = math.exp %654 : vector<2x128xf32>
    %cst_213 = arith.constant 1.000000e+00 : f32
    %656 = vector.broadcast %cst_213 : f32 to vector<2x128xf32>
    %657 = arith.addf %656, %655 : vector<2x128xf32>
    %658 = arith.divf %656, %657 : vector<2x128xf32>
    %659 = math.tanh %653 : vector<2x128xf32>
    %660 = vector.extract_strided_slice %658 {offsets = [0, 32], sizes = [2, 32], strides = [1, 1]} : vector<2x128xf32> to vector<2x32xf32>
    %661 = arith.mulf %660, %610 : vector<2x32xf32>
    %662 = vector.extract_strided_slice %658 {offsets = [0, 0], sizes = [2, 32], strides = [1, 1]} : vector<2x128xf32> to vector<2x32xf32>
    %663 = vector.extract_strided_slice %659 {offsets = [0, 64], sizes = [2, 32], strides = [1, 1]} : vector<2x128xf32> to vector<2x32xf32>
    %664 = arith.mulf %662, %663 : vector<2x32xf32>
    %665 = arith.addf %661, %664 : vector<2x32xf32>
    %666 = vector.extract_strided_slice %658 {offsets = [0, 96], sizes = [2, 32], strides = [1, 1]} : vector<2x128xf32> to vector<2x32xf32>
    %667 = math.tanh %665 : vector<2x32xf32>
    %668 = arith.mulf %666, %667 : vector<2x32xf32>
    %c0_214 = arith.constant 0 : index
    %c0_215 = arith.constant 0 : index
    %669 = vector.load %arg14[%c0_214, %c0_215] : memref<32x64xf32, #tpu.memory_space<vmem>>, vector<32x64xf32>
    %cst_216 = arith.constant dense<0.000000e+00> : vector<2x64xf32>
    %670 = tpu.matmul %668, %669, %cst_216 {dimension_numbers = #tpu.dot_dimension_numbers<[1], [0], [0], [1], [0, 0, 1, 1], [], []>} : vector<2x32xf32>, vector<32x64xf32>, vector<2x64xf32> -> vector<2x64xf32>
    %671 = vector.extract_strided_slice %670 {offsets = [0, 0], sizes = [2, 32], strides = [1, 1]} : vector<2x64xf32> to vector<2x32xf32>
    %672 = vector.shape_cast %671 : vector<2x32xf32> to vector<1x2x32xf32>
    %673 = vector.broadcast %672 : vector<1x2x32xf32> to vector<8x2x32xf32>
    %674 = arith.mulf %419, %673 : vector<8x2x32xf32>
    %cst_217 = arith.constant dense<0.000000e+00> : vector<8x2xf32>
    %675 = vector.multi_reduction <add>, %674, %cst_217 [2] : vector<8x2x32xf32> to vector<8x2xf32>
    %676 = vector.extract_strided_slice %670 {offsets = [0, 32], sizes = [2, 32], strides = [1, 1]} : vector<2x64xf32> to vector<2x32xf32>
    %677 = vector.shape_cast %676 : vector<2x32xf32> to vector<1x2x32xf32>
    %678 = vector.broadcast %677 : vector<1x2x32xf32> to vector<8x2x32xf32>
    %679 = arith.mulf %421, %678 : vector<8x2x32xf32>
    %cst_218 = arith.constant dense<0.000000e+00> : vector<8x2xf32>
    %680 = vector.multi_reduction <add>, %679, %cst_218 [2] : vector<8x2x32xf32> to vector<8x2xf32>
    %681 = arith.addf %675, %680 : vector<8x2xf32>
    %cst_219 = arith.constant -1.000000e+30 : f32
    %682 = vector.broadcast %cst_219 : f32 to vector<8x2xf32>
    %683 = arith.select %424, %682, %681 : vector<8x2xi1>, vector<8x2xf32>
    %cst_220 = arith.constant dense<0xFF800000> : vector<2xf32>
    %684 = vector.multi_reduction <maximumf>, %683, %cst_220 [0] : vector<8x2xf32> to vector<2xf32>
    %685 = vector.shape_cast %684 : vector<2xf32> to vector<1x2xf32>
    %686 = vector.broadcast %685 : vector<1x2xf32> to vector<8x2xf32>
    %687 = arith.subf %683, %686 : vector<8x2xf32>
    %688 = math.exp %687 : vector<8x2xf32>
    %cst_221 = arith.constant dense<0.000000e+00> : vector<2xf32>
    %689 = vector.multi_reduction <add>, %688, %cst_221 [0] : vector<8x2xf32> to vector<2xf32>
    %690 = vector.shape_cast %689 : vector<2xf32> to vector<1x2xf32>
    %691 = vector.broadcast %690 : vector<1x2xf32> to vector<8x2xf32>
    %692 = arith.divf %688, %691 : vector<8x2xf32>
    %693 = vector.shape_cast %692 : vector<8x2xf32> to vector<8x2x1xf32>
    %694 = vector.broadcast %693 : vector<8x2x1xf32> to vector<8x2x32xf32>
    %695 = arith.mulf %694, %419 : vector<8x2x32xf32>
    %cst_222 = arith.constant dense<0.000000e+00> : vector<2x32xf32>
    %696 = vector.multi_reduction <add>, %695, %cst_222 [0] : vector<8x2x32xf32> to vector<2x32xf32>
    %697 = vector.broadcast %693 : vector<8x2x1xf32> to vector<8x2x32xf32>
    %698 = arith.mulf %697, %421 : vector<8x2x32xf32>
    %cst_223 = arith.constant dense<0.000000e+00> : vector<2x32xf32>
    %699 = vector.multi_reduction <add>, %698, %cst_223 [0] : vector<8x2x32xf32> to vector<2x32xf32>
    %700 = tpu.concatenate %696, %699, %668 in 1 : vector<2x32xf32>, vector<2x32xf32>, vector<2x32xf32> -> vector<2x96xf32>
    %c0_224 = arith.constant 0 : index
    %c0_225 = arith.constant 0 : index
    %701 = vector.load %arg15[%c0_224, %c0_225] : memref<96x32xf32, #tpu.memory_space<vmem>>, vector<96x32xf32>
    %cst_226 = arith.constant dense<0.000000e+00> : vector<2x32xf32>
    %702 = tpu.matmul %700, %701, %cst_226 {dimension_numbers = #tpu.dot_dimension_numbers<[1], [0], [0], [1], [0, 0, 1, 1], [], []>} : vector<2x96xf32>, vector<96x32xf32>, vector<2x32xf32> -> vector<2x32xf32>
    %703 = math.tanh %702 : vector<2x32xf32>
    %704 = vector.extract_strided_slice %17 {offsets = [10, 0], sizes = [2, 32], strides = [1, 1]} : vector<14x32xf32> to vector<2x32xf32>
    %705 = tpu.concatenate %704, %703, %668 in 1 : vector<2x32xf32>, vector<2x32xf32>, vector<2x32xf32> -> vector<2x96xf32>
    %c0_227 = arith.constant 0 : index
    %c0_228 = arith.constant 0 : index
    %706 = vector.load %arg10[%c0_227, %c0_228] : memref<96x128xf32, #tpu.memory_space<vmem>>, vector<96x128xf32>
    %cst_229 = arith.constant dense<0.000000e+00> : vector<2x128xf32>
    %707 = tpu.matmul %705, %706, %cst_229 {dimension_numbers = #tpu.dot_dimension_numbers<[1], [0], [0], [1], [0, 0, 1, 1], [], []>} : vector<2x96xf32>, vector<96x128xf32>, vector<2x128xf32> -> vector<2x128xf32>
    %708 = arith.addf %707, %427 : vector<2x128xf32>
    %709 = arith.negf %708 : vector<2x128xf32>
    %710 = math.exp %709 : vector<2x128xf32>
    %cst_230 = arith.constant 1.000000e+00 : f32
    %711 = vector.broadcast %cst_230 : f32 to vector<2x128xf32>
    %712 = arith.addf %711, %710 : vector<2x128xf32>
    %713 = arith.divf %711, %712 : vector<2x128xf32>
    %714 = math.tanh %708 : vector<2x128xf32>
    %715 = vector.extract_strided_slice %713 {offsets = [0, 32], sizes = [2, 32], strides = [1, 1]} : vector<2x128xf32> to vector<2x32xf32>
    %716 = arith.mulf %715, %665 : vector<2x32xf32>
    %717 = vector.extract_strided_slice %713 {offsets = [0, 0], sizes = [2, 32], strides = [1, 1]} : vector<2x128xf32> to vector<2x32xf32>
    %718 = vector.extract_strided_slice %714 {offsets = [0, 64], sizes = [2, 32], strides = [1, 1]} : vector<2x128xf32> to vector<2x32xf32>
    %719 = arith.mulf %717, %718 : vector<2x32xf32>
    %720 = arith.addf %716, %719 : vector<2x32xf32>
    %721 = vector.extract_strided_slice %713 {offsets = [0, 96], sizes = [2, 32], strides = [1, 1]} : vector<2x128xf32> to vector<2x32xf32>
    %722 = math.tanh %720 : vector<2x32xf32>
    %723 = arith.mulf %721, %722 : vector<2x32xf32>
    %c0_231 = arith.constant 0 : index
    %c0_232 = arith.constant 0 : index
    %724 = vector.load %arg14[%c0_231, %c0_232] : memref<32x64xf32, #tpu.memory_space<vmem>>, vector<32x64xf32>
    %cst_233 = arith.constant dense<0.000000e+00> : vector<2x64xf32>
    %725 = tpu.matmul %723, %724, %cst_233 {dimension_numbers = #tpu.dot_dimension_numbers<[1], [0], [0], [1], [0, 0, 1, 1], [], []>} : vector<2x32xf32>, vector<32x64xf32>, vector<2x64xf32> -> vector<2x64xf32>
    %726 = vector.extract_strided_slice %725 {offsets = [0, 0], sizes = [2, 32], strides = [1, 1]} : vector<2x64xf32> to vector<2x32xf32>
    %727 = vector.shape_cast %726 : vector<2x32xf32> to vector<1x2x32xf32>
    %728 = vector.broadcast %727 : vector<1x2x32xf32> to vector<8x2x32xf32>
    %729 = arith.mulf %419, %728 : vector<8x2x32xf32>
    %cst_234 = arith.constant dense<0.000000e+00> : vector<8x2xf32>
    %730 = vector.multi_reduction <add>, %729, %cst_234 [2] : vector<8x2x32xf32> to vector<8x2xf32>
    %731 = vector.extract_strided_slice %725 {offsets = [0, 32], sizes = [2, 32], strides = [1, 1]} : vector<2x64xf32> to vector<2x32xf32>
    %732 = vector.shape_cast %731 : vector<2x32xf32> to vector<1x2x32xf32>
    %733 = vector.broadcast %732 : vector<1x2x32xf32> to vector<8x2x32xf32>
    %734 = arith.mulf %421, %733 : vector<8x2x32xf32>
    %cst_235 = arith.constant dense<0.000000e+00> : vector<8x2xf32>
    %735 = vector.multi_reduction <add>, %734, %cst_235 [2] : vector<8x2x32xf32> to vector<8x2xf32>
    %736 = arith.addf %730, %735 : vector<8x2xf32>
    %cst_236 = arith.constant -1.000000e+30 : f32
    %737 = vector.broadcast %cst_236 : f32 to vector<8x2xf32>
    %738 = arith.select %424, %737, %736 : vector<8x2xi1>, vector<8x2xf32>
    %cst_237 = arith.constant dense<0xFF800000> : vector<2xf32>
    %739 = vector.multi_reduction <maximumf>, %738, %cst_237 [0] : vector<8x2xf32> to vector<2xf32>
    %740 = vector.shape_cast %739 : vector<2xf32> to vector<1x2xf32>
    %741 = vector.broadcast %740 : vector<1x2xf32> to vector<8x2xf32>
    %742 = arith.subf %738, %741 : vector<8x2xf32>
    %743 = math.exp %742 : vector<8x2xf32>
    %cst_238 = arith.constant dense<0.000000e+00> : vector<2xf32>
    %744 = vector.multi_reduction <add>, %743, %cst_238 [0] : vector<8x2xf32> to vector<2xf32>
    %745 = vector.shape_cast %744 : vector<2xf32> to vector<1x2xf32>
    %746 = vector.broadcast %745 : vector<1x2xf32> to vector<8x2xf32>
    %747 = arith.divf %743, %746 : vector<8x2xf32>
    %748 = vector.shape_cast %747 : vector<8x2xf32> to vector<8x2x1xf32>
    %749 = vector.broadcast %748 : vector<8x2x1xf32> to vector<8x2x32xf32>
    %750 = arith.mulf %749, %419 : vector<8x2x32xf32>
    %cst_239 = arith.constant dense<0.000000e+00> : vector<2x32xf32>
    %751 = vector.multi_reduction <add>, %750, %cst_239 [0] : vector<8x2x32xf32> to vector<2x32xf32>
    %752 = vector.broadcast %748 : vector<8x2x1xf32> to vector<8x2x32xf32>
    %753 = arith.mulf %752, %421 : vector<8x2x32xf32>
    %cst_240 = arith.constant dense<0.000000e+00> : vector<2x32xf32>
    %754 = vector.multi_reduction <add>, %753, %cst_240 [0] : vector<8x2x32xf32> to vector<2x32xf32>
    %755 = tpu.concatenate %751, %754, %723 in 1 : vector<2x32xf32>, vector<2x32xf32>, vector<2x32xf32> -> vector<2x96xf32>
    %c0_241 = arith.constant 0 : index
    %c0_242 = arith.constant 0 : index
    %756 = vector.load %arg15[%c0_241, %c0_242] : memref<96x32xf32, #tpu.memory_space<vmem>>, vector<96x32xf32>
    %cst_243 = arith.constant dense<0.000000e+00> : vector<2x32xf32>
    %757 = tpu.matmul %755, %756, %cst_243 {dimension_numbers = #tpu.dot_dimension_numbers<[1], [0], [0], [1], [0, 0, 1, 1], [], []>} : vector<2x96xf32>, vector<96x32xf32>, vector<2x32xf32> -> vector<2x32xf32>
    %758 = math.tanh %757 : vector<2x32xf32>
    %759 = vector.extract_strided_slice %17 {offsets = [12, 0], sizes = [2, 32], strides = [1, 1]} : vector<14x32xf32> to vector<2x32xf32>
    %760 = tpu.concatenate %759, %758, %723 in 1 : vector<2x32xf32>, vector<2x32xf32>, vector<2x32xf32> -> vector<2x96xf32>
    %c0_244 = arith.constant 0 : index
    %c0_245 = arith.constant 0 : index
    %761 = vector.load %arg10[%c0_244, %c0_245] : memref<96x128xf32, #tpu.memory_space<vmem>>, vector<96x128xf32>
    %cst_246 = arith.constant dense<0.000000e+00> : vector<2x128xf32>
    %762 = tpu.matmul %760, %761, %cst_246 {dimension_numbers = #tpu.dot_dimension_numbers<[1], [0], [0], [1], [0, 0, 1, 1], [], []>} : vector<2x96xf32>, vector<96x128xf32>, vector<2x128xf32> -> vector<2x128xf32>
    %763 = arith.addf %762, %427 : vector<2x128xf32>
    %764 = arith.negf %763 : vector<2x128xf32>
    %765 = math.exp %764 : vector<2x128xf32>
    %cst_247 = arith.constant 1.000000e+00 : f32
    %766 = vector.broadcast %cst_247 : f32 to vector<2x128xf32>
    %767 = arith.addf %766, %765 : vector<2x128xf32>
    %768 = arith.divf %766, %767 : vector<2x128xf32>
    %769 = math.tanh %763 : vector<2x128xf32>
    %770 = vector.extract_strided_slice %768 {offsets = [0, 32], sizes = [2, 32], strides = [1, 1]} : vector<2x128xf32> to vector<2x32xf32>
    %771 = arith.mulf %770, %720 : vector<2x32xf32>
    %772 = vector.extract_strided_slice %768 {offsets = [0, 0], sizes = [2, 32], strides = [1, 1]} : vector<2x128xf32> to vector<2x32xf32>
    %773 = vector.extract_strided_slice %769 {offsets = [0, 64], sizes = [2, 32], strides = [1, 1]} : vector<2x128xf32> to vector<2x32xf32>
    %774 = arith.mulf %772, %773 : vector<2x32xf32>
    %775 = arith.addf %771, %774 : vector<2x32xf32>
    %776 = vector.extract_strided_slice %768 {offsets = [0, 96], sizes = [2, 32], strides = [1, 1]} : vector<2x128xf32> to vector<2x32xf32>
    %777 = math.tanh %775 : vector<2x32xf32>
    %778 = arith.mulf %776, %777 : vector<2x32xf32>
    %c0_248 = arith.constant 0 : index
    %c0_249 = arith.constant 0 : index
    %779 = vector.load %arg14[%c0_248, %c0_249] : memref<32x64xf32, #tpu.memory_space<vmem>>, vector<32x64xf32>
    %cst_250 = arith.constant dense<0.000000e+00> : vector<2x64xf32>
    %780 = tpu.matmul %778, %779, %cst_250 {dimension_numbers = #tpu.dot_dimension_numbers<[1], [0], [0], [1], [0, 0, 1, 1], [], []>} : vector<2x32xf32>, vector<32x64xf32>, vector<2x64xf32> -> vector<2x64xf32>
    %781 = vector.extract_strided_slice %780 {offsets = [0, 0], sizes = [2, 32], strides = [1, 1]} : vector<2x64xf32> to vector<2x32xf32>
    %782 = vector.shape_cast %781 : vector<2x32xf32> to vector<1x2x32xf32>
    %783 = vector.broadcast %782 : vector<1x2x32xf32> to vector<8x2x32xf32>
    %784 = arith.mulf %419, %783 : vector<8x2x32xf32>
    %cst_251 = arith.constant dense<0.000000e+00> : vector<8x2xf32>
    %785 = vector.multi_reduction <add>, %784, %cst_251 [2] : vector<8x2x32xf32> to vector<8x2xf32>
    %786 = vector.extract_strided_slice %780 {offsets = [0, 32], sizes = [2, 32], strides = [1, 1]} : vector<2x64xf32> to vector<2x32xf32>
    %787 = vector.shape_cast %786 : vector<2x32xf32> to vector<1x2x32xf32>
    %788 = vector.broadcast %787 : vector<1x2x32xf32> to vector<8x2x32xf32>
    %789 = arith.mulf %421, %788 : vector<8x2x32xf32>
    %cst_252 = arith.constant dense<0.000000e+00> : vector<8x2xf32>
    %790 = vector.multi_reduction <add>, %789, %cst_252 [2] : vector<8x2x32xf32> to vector<8x2xf32>
    %791 = arith.addf %785, %790 : vector<8x2xf32>
    %cst_253 = arith.constant -1.000000e+30 : f32
    %792 = vector.broadcast %cst_253 : f32 to vector<8x2xf32>
    %793 = arith.select %424, %792, %791 : vector<8x2xi1>, vector<8x2xf32>
    %cst_254 = arith.constant dense<0xFF800000> : vector<2xf32>
    %794 = vector.multi_reduction <maximumf>, %793, %cst_254 [0] : vector<8x2xf32> to vector<2xf32>
    %795 = vector.shape_cast %794 : vector<2xf32> to vector<1x2xf32>
    %796 = vector.broadcast %795 : vector<1x2xf32> to vector<8x2xf32>
    %797 = arith.subf %793, %796 : vector<8x2xf32>
    %798 = math.exp %797 : vector<8x2xf32>
    %cst_255 = arith.constant dense<0.000000e+00> : vector<2xf32>
    %799 = vector.multi_reduction <add>, %798, %cst_255 [0] : vector<8x2xf32> to vector<2xf32>
    %800 = vector.shape_cast %799 : vector<2xf32> to vector<1x2xf32>
    %801 = vector.broadcast %800 : vector<1x2xf32> to vector<8x2xf32>
    %802 = arith.divf %798, %801 : vector<8x2xf32>
    %803 = vector.shape_cast %802 : vector<8x2xf32> to vector<8x2x1xf32>
    %804 = vector.broadcast %803 : vector<8x2x1xf32> to vector<8x2x32xf32>
    %805 = arith.mulf %804, %419 : vector<8x2x32xf32>
    %cst_256 = arith.constant dense<0.000000e+00> : vector<2x32xf32>
    %806 = vector.multi_reduction <add>, %805, %cst_256 [0] : vector<8x2x32xf32> to vector<2x32xf32>
    %807 = vector.broadcast %803 : vector<8x2x1xf32> to vector<8x2x32xf32>
    %808 = arith.mulf %807, %421 : vector<8x2x32xf32>
    %cst_257 = arith.constant dense<0.000000e+00> : vector<2x32xf32>
    %809 = vector.multi_reduction <add>, %808, %cst_257 [0] : vector<8x2x32xf32> to vector<2x32xf32>
    %810 = tpu.concatenate %806, %809, %778 in 1 : vector<2x32xf32>, vector<2x32xf32>, vector<2x32xf32> -> vector<2x96xf32>
    %c0_258 = arith.constant 0 : index
    %c0_259 = arith.constant 0 : index
    %811 = vector.load %arg15[%c0_258, %c0_259] : memref<96x32xf32, #tpu.memory_space<vmem>>, vector<96x32xf32>
    %cst_260 = arith.constant dense<0.000000e+00> : vector<2x32xf32>
    %812 = tpu.matmul %810, %811, %cst_260 {dimension_numbers = #tpu.dot_dimension_numbers<[1], [0], [0], [1], [0, 0, 1, 1], [], []>} : vector<2x96xf32>, vector<96x32xf32>, vector<2x32xf32> -> vector<2x32xf32>
    %813 = math.tanh %812 : vector<2x32xf32>
    %814 = tpu.concatenate %483, %538, %593, %648, %703, %758, %813 in 0 : vector<2x32xf32>, vector<2x32xf32>, vector<2x32xf32>, vector<2x32xf32>, vector<2x32xf32>, vector<2x32xf32>, vector<2x32xf32> -> vector<14x32xf32>
    %c0_261 = arith.constant 0 : index
    %c0_262 = arith.constant 0 : index
    %815 = vector.load %arg16[%c0_261, %c0_262] : memref<32x128xf32, #tpu.memory_space<vmem>>, vector<32x128xf32>
    %cst_263 = arith.constant dense<0.000000e+00> : vector<14x128xf32>
    %816 = tpu.matmul %814, %815, %cst_263 {dimension_numbers = #tpu.dot_dimension_numbers<[1], [0], [0], [1], [0, 0, 1, 1], [], []>} : vector<14x32xf32>, vector<32x128xf32>, vector<14x128xf32> -> vector<14x128xf32>
    %817 = tpu.iota {dimensions = array<i32: 1>} : vector<14x128xi32>
    %c48_i32 = arith.constant 48 : i32
    %818 = vector.broadcast %c48_i32 : i32 to vector<14x128xi32>
    %819 = arith.cmpi sge, %817, %818 : vector<14x128xi32>
    %cst_264 = arith.constant -1.000000e+30 : f32
    %820 = vector.broadcast %cst_264 : f32 to vector<14x128xf32>
    %821 = arith.select %819, %820, %816 : vector<14x128xi1>, vector<14x128xf32>
    %cst_265 = arith.constant dense<0xFF800000> : vector<14xf32>
    %822 = vector.multi_reduction <maximumf>, %821, %cst_265 [1] : vector<14x128xf32> to vector<14xf32>
    %823 = vector.shape_cast %822 : vector<14xf32> to vector<14x1xf32>
    %824 = vector.broadcast %823 : vector<14x1xf32> to vector<14x128xf32>
    %825 = arith.subf %821, %824 : vector<14x128xf32>
    %826 = math.exp %825 : vector<14x128xf32>
    %cst_266 = arith.constant dense<0.000000e+00> : vector<14xf32>
    %827 = vector.multi_reduction <add>, %826, %cst_266 [1] : vector<14x128xf32> to vector<14xf32>
    %828 = vector.shape_cast %827 : vector<14xf32> to vector<14x1xf32>
    %829 = math.log %828 : vector<14x1xf32>
    %830 = arith.addf %829, %823 : vector<14x1xf32>
    %c0_267 = arith.constant 0 : index
    %c0_268 = arith.constant 0 : index
    %831 = vector.load %arg4[%c0_267, %c0_268] : memref<14x1xi32, #tpu.memory_space<vmem>>, vector<14x1xi32>
    %832 = vector.broadcast %831 : vector<14x1xi32> to vector<14x128xi32>
    %833 = arith.cmpi eq, %817, %832 : vector<14x128xi32>
    %cst_269 = arith.constant 0.000000e+00 : f32
    %834 = vector.broadcast %cst_269 : f32 to vector<14x128xf32>
    %835 = arith.select %833, %821, %834 : vector<14x128xi1>, vector<14x128xf32>
    %cst_270 = arith.constant dense<0.000000e+00> : vector<14xf32>
    %836 = vector.multi_reduction <add>, %835, %cst_270 [1] : vector<14x128xf32> to vector<14xf32>
    %837 = vector.shape_cast %836 : vector<14xf32> to vector<14x1xf32>
    %c0_i32_271 = arith.constant 0 : i32
    %838 = vector.broadcast %c0_i32_271 : i32 to vector<14x1xi32>
    %839 = arith.cmpi ne, %831, %838 : vector<14x1xi32>
    %840 = arith.extui %839 : vector<14x1xi1> to vector<14x1xi32>
    %841 = arith.sitofp %840 : vector<14x1xi32> to vector<14x1xf32>
    %842 = arith.subf %837, %830 : vector<14x1xf32>
    %843 = arith.mulf %842, %841 : vector<14x1xf32>
    %cst_272 = arith.constant 0.000000e+00 : f32
    %844 = vector.broadcast %cst_272 : f32 to vector<2x1xf32>
    %845 = vector.extract_strided_slice %843 {offsets = [0, 0], sizes = [2, 1], strides = [1, 1]} : vector<14x1xf32> to vector<2x1xf32>
    %846 = arith.addf %844, %845 : vector<2x1xf32>
    %847 = vector.extract_strided_slice %843 {offsets = [2, 0], sizes = [2, 1], strides = [1, 1]} : vector<14x1xf32> to vector<2x1xf32>
    %848 = arith.addf %846, %847 : vector<2x1xf32>
    %849 = vector.extract_strided_slice %843 {offsets = [4, 0], sizes = [2, 1], strides = [1, 1]} : vector<14x1xf32> to vector<2x1xf32>
    %850 = arith.addf %848, %849 : vector<2x1xf32>
    %851 = vector.extract_strided_slice %843 {offsets = [6, 0], sizes = [2, 1], strides = [1, 1]} : vector<14x1xf32> to vector<2x1xf32>
    %852 = arith.addf %850, %851 : vector<2x1xf32>
    %853 = vector.extract_strided_slice %843 {offsets = [8, 0], sizes = [2, 1], strides = [1, 1]} : vector<14x1xf32> to vector<2x1xf32>
    %854 = arith.addf %852, %853 : vector<2x1xf32>
    %855 = vector.extract_strided_slice %843 {offsets = [10, 0], sizes = [2, 1], strides = [1, 1]} : vector<14x1xf32> to vector<2x1xf32>
    %856 = arith.addf %854, %855 : vector<2x1xf32>
    %857 = vector.extract_strided_slice %843 {offsets = [12, 0], sizes = [2, 1], strides = [1, 1]} : vector<14x1xf32> to vector<2x1xf32>
    %858 = arith.addf %856, %857 : vector<2x1xf32>
    %c0_273 = arith.constant 0 : index
    %c0_274 = arith.constant 0 : index
    %859 = vector.load %arg17[%c0_273, %c0_274] : memref<2x1xf32, #tpu.memory_space<vmem>>, vector<2x1xf32>
    tpu.vector_store %arg17[%c0_273, %c0_274], %858 {strides = array<i32>} : memref<2x1xf32, #tpu.memory_space<vmem>>, vector<2x1xf32>,
    return
  }
}

</mosaic_0001>

<llo_original>
// kernel: nmt_forward_pallas.1
$region0: #{nmt_forward_pallas.1}
  #allocation0 [shape = 'u32[]', space=smem, size = 0x4, offset = 0x4, fixed_abs, tag = 'smem constant byte address 0x4 - core index']
  #allocation1 [shape = 'u32[72,128]{1,0:T(1,128)}', space=vmem, size = 0x9000, scoped, tag = 'internal scratch']
  #allocation2 [shape = 'f32[2,8,2,32]{3,2,1,0:T(2,128)}', space=vmem, size = 0x4000, scoped, tag = 'scratch operand']
  %s0 = inlined_call_operand.vmem [shape: s32[2,1], index: 0, kind: input, shape index: {}]
  %s1 = inlined_call_operand.vmem [shape: s32[1,2], index: 1, kind: input, shape index: {}]
  %s2 = inlined_call_operand.vmem [shape: s32[16,1], index: 2, kind: input, shape index: {}]
  %s3 = inlined_call_operand.vmem [shape: s32[14,1], index: 3, kind: input, shape index: {}]
  %s4 = inlined_call_operand.vmem [shape: s32[14,1], index: 4, kind: input, shape index: {}]
  %s5 = inlined_call_operand.vmem [shape: f32[128,32], index: 5, kind: input, shape index: {}]
  %s6 = inlined_call_operand.vmem [shape: f32[128,32], index: 6, kind: input, shape index: {}]
  %s7 = inlined_call_operand.vmem [shape: f32[128,128], index: 7, kind: input, shape index: {}]
  %s8 = inlined_call_operand.vmem [shape: f32[1,128], index: 8, kind: input, shape index: {}]
  %s9 = inlined_call_operand.vmem [shape: f32[1,128], index: 9, kind: input, shape index: {}]
  %s10 = inlined_call_operand.vmem [shape: f32[96,128], index: 10, kind: input, shape index: {}]
  %s11 = inlined_call_operand.vmem [shape: f32[1,128], index: 11, kind: input, shape index: {}]
  %s12 = inlined_call_operand.vmem [shape: f32[64,32], index: 12, kind: input, shape index: {}]
  %s13 = inlined_call_operand.vmem [shape: f32[64,32], index: 13, kind: input, shape index: {}]
  %s14 = inlined_call_operand.vmem [shape: f32[32,64], index: 14, kind: input, shape index: {}]
  %s15 = inlined_call_operand.vmem [shape: f32[96,32], index: 15, kind: input, shape index: {}]
  %s16 = inlined_call_operand.vmem [shape: f32[32,128], index: 16, kind: input, shape index: {}]
  %s17 = inlined_call_operand.vmem [shape: f32[2,1], index: 17, kind: output, shape index: {}]
  %s18 = sld [smem:[#allocation0]]
  $region78: #{nmt_forward_pallas.1} parent=0
    _
  %s20 = ssub.s32 1, %s18
  %s21 = scalar_select 0, %s20, %s18
  // Predicated region
  $region2: #{nmt_forward_pallas.1} parent=0 // pred_check
    _
  $region3: #{nmt_forward_pallas.1} parent=0 // pred_check_branch
    %23 = sbr.rel (0) target = $region5
  $region4: #{nmt_forward_pallas.1} parent=0 // pred_region
    _
  $region5: #{nmt_forward_pallas.1} parent=0 // pred_fallthru
    _
  // Predicated region
  $region6: #{nmt_forward_pallas.1} parent=0 // pred_check
    _
  $region7: #{nmt_forward_pallas.1} parent=0 // pred_check_branch
    %25 = sbr.rel (0) target = $region9
  $region8: #{nmt_forward_pallas.1} parent=0 // pred_region
    _
  $region9: #{nmt_forward_pallas.1} parent=0 // pred_fallthru
    _
  // Predicated region
  $region10: #{nmt_forward_pallas.1} parent=0 // pred_check
    _
  $region11: #{nmt_forward_pallas.1} parent=0 // pred_check_branch
    %27 = sbr.rel (0) target = $region13
  $region12: #{nmt_forward_pallas.1} parent=0 // pred_region
    _
  $region13: #{nmt_forward_pallas.1} parent=0 // pred_fallthru
    _
  // Predicated region
  $region14: #{nmt_forward_pallas.1} parent=0 // pred_check
    _
  $region15: #{nmt_forward_pallas.1} parent=0 // pred_check_branch
    %29 = sbr.rel (0) target = $region17
  $region16: #{nmt_forward_pallas.1} parent=0 // pred_region
    _
  $region17: #{nmt_forward_pallas.1} parent=0 // pred_fallthru
    _
  // Predicated region
  $region18: #{nmt_forward_pallas.1} parent=0 // pred_check
    _
  $region19: #{nmt_forward_pallas.1} parent=0 // pred_check_branch
    %31 = sbr.rel (0) target = $region21
  $region20: #{nmt_forward_pallas.1} parent=0 // pred_region
    _
  $region21: #{nmt_forward_pallas.1} parent=0 // pred_fallthru
    _
  // Predicated region
  $region22: #{nmt_forward_pallas.1} parent=0 // pred_check
    _
  $region23: #{nmt_forward_pallas.1} parent=0 // pred_check_branch
    %33 = sbr.rel (0) target = $region25
  $region24: #{nmt_forward_pallas.1} parent=0 // pred_region
    _
  $region25: #{nmt_forward_pallas.1} parent=0 // pred_fallthru
    _
  // Predicated region
  $region26: #{nmt_forward_pallas.1} parent=0 // pred_check
    _
  $region27: #{nmt_forward_pallas.1} parent=0 // pred_check_branch
    %35 = sbr.rel (0) target = $region29
  $region28: #{nmt_forward_pallas.1} parent=0 // pred_region
    _
  $region29: #{nmt_forward_pallas.1} parent=0 // pred_fallthru
    _
  // Predicated region
  $region30: #{nmt_forward_pallas.1} parent=0 // pred_check
    _
  $region31: #{nmt_forward_pallas.1} parent=0 // pred_check_branch
    %37 = sbr.rel (0) target = $region33
  $region32: #{nmt_forward_pallas.1} parent=0 // pred_region
    _
  $region33: #{nmt_forward_pallas.1} parent=0 // pred_fallthru
    _
  // Predicated region
  $region34: #{nmt_forward_pallas.1} parent=0 // pred_check
    _
  $region35: #{nmt_forward_pallas.1} parent=0 // pred_check_branch
    %39 = sbr.rel (0) target = $region37
  $region36: #{nmt_forward_pallas.1} parent=0 // pred_region
    _
  $region37: #{nmt_forward_pallas.1} parent=0 // pred_fallthru
    _
  // Predicated region
  $region38: #{nmt_forward_pallas.1} parent=0 // pred_check
    _
  $region39: #{nmt_forward_pallas.1} parent=0 // pred_check_branch
    %41 = sbr.rel (0) target = $region41
  $region40: #{nmt_forward_pallas.1} parent=0 // pred_region
    _
  $region41: #{nmt_forward_pallas.1} parent=0 // pred_fallthru
    _
  // Predicated region
  $region42: #{nmt_forward_pallas.1} parent=0 // pred_check
    _
  $region43: #{nmt_forward_pallas.1} parent=0 // pred_check_branch
    %43 = sbr.rel (0) target = $region45
  $region44: #{nmt_forward_pallas.1} parent=0 // pred_region
    _
  $region45: #{nmt_forward_pallas.1} parent=0 // pred_fallthru
    _
  // Predicated region
  $region46: #{nmt_forward_pallas.1} parent=0 // pred_check
    _
  $region47: #{nmt_forward_pallas.1} parent=0 // pred_check_branch
    %45 = sbr.rel (0) target = $region49
  $region48: #{nmt_forward_pallas.1} parent=0 // pred_region
    _
  $region49: #{nmt_forward_pallas.1} parent=0 // pred_fallthru
    _
  // Predicated region
  $region50: #{nmt_forward_pallas.1} parent=0 // pred_check
    _
  $region51: #{nmt_forward_pallas.1} parent=0 // pred_check_branch
    %47 = sbr.rel (0) target = $region53
  $region52: #{nmt_forward_pallas.1} parent=0 // pred_region
    _
  $region53: #{nmt_forward_pallas.1} parent=0 // pred_fallthru
    _
  // Predicated region
  $region54: #{nmt_forward_pallas.1} parent=0 // pred_check
    _
  $region55: #{nmt_forward_pallas.1} parent=0 // pred_check_branch
    %49 = sbr.rel (0) target = $region57
  $region56: #{nmt_forward_pallas.1} parent=0 // pred_region
    _
  $region57: #{nmt_forward_pallas.1} parent=0 // pred_fallthru
    _
  // Predicated region
  $region58: #{nmt_forward_pallas.1} parent=0 // pred_check
    _
  $region59: #{nmt_forward_pallas.1} parent=0 // pred_check_branch
    %51 = sbr.rel (0) target = $region61
  $region60: #{nmt_forward_pallas.1} parent=0 // pred_region
    _
  $region61: #{nmt_forward_pallas.1} parent=0 // pred_fallthru
    _
  // Predicated region
  $region62: #{nmt_forward_pallas.1} parent=0 // pred_check
    _
  $region63: #{nmt_forward_pallas.1} parent=0 // pred_check_branch
    %53 = sbr.rel (0) target = $region65
  $region64: #{nmt_forward_pallas.1} parent=0 // pred_region
    _
  $region65: #{nmt_forward_pallas.1} parent=0 // pred_fallthru
    _
  // Predicated region
  $region66: #{nmt_forward_pallas.1} parent=0 // pred_check
    _
  $region67: #{nmt_forward_pallas.1} parent=0 // pred_check_branch
    %55 = sbr.rel (0) target = $region69
  $region68: #{nmt_forward_pallas.1} parent=0 // pred_region
    _
  $region69: #{nmt_forward_pallas.1} parent=0 // pred_fallthru
    _
  %v56 = vld [vmem:[%s0] sm:$0x3]
  %v57 = vld [vmem:[%s1] sm:$0x1]
  %v58 = vlaneseq
  %v59 = vand.u32 %v58, 127
  %v60 = vld [vmem:[%s2] sm:$0xff]
  %v61 = vld [vmem:[%s2 + $0x8] sm:$0xff]
  %62 = vset.pattern.permute.xlu0 0
  %63 = vperm.xlu0 %62, %v60
  %v64 = vpop.permute.xlu0 %63
  %65 = vset.pattern.permute.xlu0 0
  %66 = vperm.xlu0 %65, %v61
  %v67 = vpop.permute.xlu0 %66
  %vm68 = vcmp.eq.s32.totalorder %v59, %v64
  %vm69 = vcmp.eq.s32.totalorder %v59, %v67
  %v70 = vsel %vm68, 1, 0
  %v71 = vsel %vm69, 1, 0
  %v72 = vcvt.s32.f32 %v70
  %v73 = vcvt.s32.f32 %v71
  %v74 = vld [vmem:[%s5] sm:$0xff]
  %v75 = vld [vmem:[%s5 + $0x8] sm:$0xff]
  %v76 = vld [vmem:[%s5 + $0x10] sm:$0xff]
  %v77 = vld [vmem:[%s5 + $0x18] sm:$0xff]
  %v78 = vld [vmem:[%s5 + $0x20] sm:$0xff]
  %v79 = vld [vmem:[%s5 + $0x28] sm:$0xff]
  %v80 = vld [vmem:[%s5 + $0x30] sm:$0xff]
  %v81 = vld [vmem:[%s5 + $0x38] sm:$0xff]
  %v82 = vld [vmem:[%s5 + $0x40] sm:$0xff]
  %v83 = vld [vmem:[%s5 + $0x48] sm:$0xff]
  %v84 = vld [vmem:[%s5 + $0x50] sm:$0xff]
  %v85 = vld [vmem:[%s5 + $0x58] sm:$0xff]
  %v86 = vld [vmem:[%s5 + $0x60] sm:$0xff]
  %v87 = vld [vmem:[%s5 + $0x68] sm:$0xff]
  %v88 = vld [vmem:[%s5 + $0x70] sm:$0xff]
  %v89 = vld [vmem:[%s5 + $0x78] sm:$0xff]
  %90 = vmatpush.msra.mxu0 %v89
  %91 = vmatpush.msra.mxu0 %v88
  %92 = vmatpush.msra.mxu0 %v87
  %93 = vmatpush.msra.mxu0 %v86
  %94 = vmatpush.msra.mxu0 %v85
  %95 = vmatpush.msra.mxu0 %v84
  %96 = vmatpush.msra.mxu0 %v83
  %97 = vmatpush.msra.mxu0 %v82
  %98 = vmatpush.msra.mxu0 %v81
  %99 = vmatpush.msra.mxu0 %v80
  %100 = vmatpush.msra.mxu0 %v79
  %101 = vmatpush.msra.mxu0 %v78
  %102 = vmatpush.msra.mxu0 %v77
  %103 = vmatpush.msra.mxu0 %v76
  %104 = vmatpush.msra.mxu0 %v75
  %105 = vmatpush.msra.mxu0 %v74
  %106 = vmatmul.f32.gmra.mxu0 %v72
  %v107 = vpop.f32.mrf.mxu0
  %v108 = vadd.f32 0.0, %v107
  %109 = vmatmul.f32.gmra.mxu0 %v73
  %v110 = vpop.f32.mrf.mxu0
  %v111 = vadd.f32 0.0, %v110
  %112 = vdwg.mxu0
  %v113 = vld [vmem:[%s3] sm:$0xff]
  %v114 = vld [vmem:[%s3 + $0x8] sm:$0x3f]
  %115 = vset.pattern.permute.xlu0 0
  %116 = vperm.xlu0 %115, %v113
  %v117 = vpop.permute.xlu0 %116
  %118 = vset.pattern.permute.xlu0 0
  %119 = vperm.xlu0 %118, %v114
  %v120 = vpop.permute.xlu0 %119
  %vm121 = vcmp.eq.s32.totalorder %v59, %v117
  %vm122 = vcmp.eq.s32.totalorder %v59, %v120
  %v123 = vsel %vm121, 1, 0
  %v124 = vsel %vm122, 1, 0
  %v125 = vcvt.s32.f32 %v123
  %v126 = vcvt.s32.f32 %v124
  %v127 = vld [vmem:[%s6] sm:$0xff]
  %v128 = vld [vmem:[%s6 + $0x8] sm:$0xff]
  %v129 = vld [vmem:[%s6 + $0x10] sm:$0xff]
  %v130 = vld [vmem:[%s6 + $0x18] sm:$0xff]
  %v131 = vld [vmem:[%s6 + $0x20] sm:$0xff]
  %v132 = vld [vmem:[%s6 + $0x28] sm:$0xff]
  %v133 = vld [vmem:[%s6 + $0x30] sm:$0xff]
  %v134 = vld [vmem:[%s6 + $0x38] sm:$0xff]
  %v135 = vld [vmem:[%s6 + $0x40] sm:$0xff]
  %v136 = vld [vmem:[%s6 + $0x48] sm:$0xff]
  %v137 = vld [vmem:[%s6 + $0x50] sm:$0xff]
  %v138 = vld [vmem:[%s6 + $0x58] sm:$0xff]
  %v139 = vld [vmem:[%s6 + $0x60] sm:$0xff]
  %v140 = vld [vmem:[%s6 + $0x68] sm:$0xff]
  %v141 = vld [vmem:[%s6 + $0x70] sm:$0xff]
  %v142 = vld [vmem:[%s6 + $0x78] sm:$0xff]
  %143 = vmatpush.msra.mxu0 %v142
  %144 = vmatpush.msra.mxu0 %v141
  %145 = vmatpush.msra.mxu0 %v140
  %146 = vmatpush.msra.mxu0 %v139
  %147 = vmatpush.msra.mxu0 %v138
  %148 = vmatpush.msra.mxu0 %v137
  %149 = vmatpush.msra.mxu0 %v136
  %150 = vmatpush.msra.mxu0 %v135
  %151 = vmatpush.msra.mxu0 %v134
  %152 = vmatpush.msra.mxu0 %v133
  %153 = vmatpush.msra.mxu0 %v132
  %154 = vmatpush.msra.mxu0 %v131
  %155 = vmatpush.msra.mxu0 %v130
  %156 = vmatpush.msra.mxu0 %v129
  %157 = vmatpush.msra.mxu0 %v128
  %158 = vmatpush.msra.mxu0 %v127
  %159 = vmatmul.f32.gmra.mxu0 %v125
  %v160 = vpop.f32.mrf.mxu0
  %v161 = vadd.f32 0.0, %v160
  %162 = vmatmul.f32.gmra.mxu0 %v126
  %v163 = vpop.f32.mrf.mxu0
  %v164 = vadd.f32 0.0, %v163
  %165 = vdwg.mxu0
  %v166 = vld [vmem:[%s8] sm:$0x1]
  %v168 = vperm.slane %v166, 0
  %v170 = vld [vmem:[%s9] sm:$0x1]
  %v172 = vperm.slane %v170, 0
  %vm174 = vcmask 1041408
  %v175 = vsel %vm174, %v168, %v172
  %v176 = vrot.slane %v56, 6
  %v177 = vsel %vm174, %v56, %v176
  %v178 = vlaneseq
  %v179 = vshrl.u32 %v178, 7
  %vm180 = vcmp.lt.s32.totalorder %v179, 2
  %vm181 = vcmask 261120
  %v182 = vsel %vm181, %v108, 0.0
  %vm183 = vcmask 523264
  %v184 = vsel %vm183, %v182, 0.0
  %v186 = vrot.slane %v111, 6
  %187 = vrot.lane.b32.xlu0 %v186, 64
  %v188 = vpop.permute.xlu0 %187
  %v190 = vsel %vm183, 0.0, %v188
  %vm191 = vcmask 785408
  %v192 = vsel %vm191, %v190, 0.0
  %v194 = vrot.slane %v192, 6
  %v196 = vsel %vm174, %v184, %v194
  %v197 = vld [vmem:[%s7] sm:$0xff]
  %v198 = vld [vmem:[%s7 + $0x8] sm:$0xff]
  %v199 = vld [vmem:[%s7 + $0x10] sm:$0xff]
  %v200 = vld [vmem:[%s7 + $0x18] sm:$0xff]
  %v201 = vld [vmem:[%s7 + $0x20] sm:$0xff]
  %v202 = vld [vmem:[%s7 + $0x28] sm:$0xff]
  %v203 = vld [vmem:[%s7 + $0x30] sm:$0xff]
  %v204 = vld [vmem:[%s7 + $0x38] sm:$0xff]
  %v205 = vld [vmem:[%s7 + $0x40] sm:$0xff]
  %v206 = vld [vmem:[%s7 + $0x48] sm:$0xff]
  %v207 = vld [vmem:[%s7 + $0x50] sm:$0xff]
  %v208 = vld [vmem:[%s7 + $0x58] sm:$0xff]
  %v209 = vld [vmem:[%s7 + $0x60] sm:$0xff]
  %v210 = vld [vmem:[%s7 + $0x68] sm:$0xff]
  %v211 = vld [vmem:[%s7 + $0x70] sm:$0xff]
  %v212 = vld [vmem:[%s7 + $0x78] sm:$0xff]
  %213 = vmatpush.msra.mxu0 %v212
  %214 = vmatpush.msra.mxu0 %v211
  %215 = vmatpush.msra.mxu0 %v210
  %216 = vmatpush.msra.mxu0 %v209
  %217 = vmatpush.msra.mxu0 %v208
  %218 = vmatpush.msra.mxu0 %v207
  %219 = vmatpush.msra.mxu0 %v206
  %220 = vmatpush.msra.mxu0 %v205
  %221 = vmatpush.msra.mxu0 %v204
  %222 = vmatpush.msra.mxu0 %v203
  %223 = vmatpush.msra.mxu0 %v202
  %224 = vmatpush.msra.mxu0 %v201
  %225 = vmatpush.msra.mxu0 %v200
  %226 = vmatpush.msra.mxu0 %v199
  %227 = vmatpush.msra.mxu0 %v198
  %228 = vmatpush.msra.mxu0 %v197
  %229 = vmatmul.f32.gmra.mxu0 %v196
  %v230 = vpop.f32.mrf.mxu0
  %v231 = vadd.f32 %v175, %v230
  %232 = vdwg.mxu0
  %v233 = vxor.u32 %v231, 2147483648
  %v234 = vmul.f32 %v233, 1.442695
  %v235 = vpow.pop %v234
  %v236 = vadd.f32 %v235, 1.0
  %v237 = vrcp.pop %v236
  %v238 = vmul.f32 %v236, %v237
  %v239 = vsub.f32 1.0, %v238
  %v240 = vmul.f32 %v237, %v239
  %v241 = vadd.f32 %v237, %v240
  %vm242 = vweird.f32 %v236
  %vm243 = vweird.f32 %v237
  %vm244 = vmor %vm242, %vm243
  %v245 = vsel %vm244, %v237, %v241
  %v246 = vand.u32 2147483647, %v236
  %vm247 = vcmp.eq.f32.partialorder %v246, 8.507059e+37
  %v248 = vand.u32 %v236, 2147483648
  %v249 = vor.u32 1.1754944e-38, %v248
  %v250 = vsel %vm247, %v249, %v245
  %v251 = vmul.f32 1.0, %v250
  %v252 = vtanh.pop %v231
  %v253 = vmul.f32 %v251, 0.0
  %255 = vrot.lane.b32.xlu0 %v252, 64
  %v256 = vpop.permute.xlu0 %255
  %v258 = vmul.f32 %v251, %v256
  %260 = vrot.lane.b32.xlu0 %v258, 32
  %v261 = vpop.permute.xlu0 %260
  %v263 = vadd.f32 %v253, %v261
  %v264 = vtanh.pop %v263
  %266 = vrot.lane.b32.xlu0 %v264, 64
  %v267 = vpop.permute.xlu0 %266
  %v269 = vmul.f32 %v251, %v267
  %v270 = vsel %vm180, 0, 7
  %vm271 = vcmp.gt.s32.totalorder %v177, %v270
  %v272 = vsel %vm271, 1, 0
  %273 = vset.pattern.permute.xlu0 0
  %274 = vperm.xlu0 %273, %v272
  %v275 = vpop.permute.xlu0 %274
  %vm276 = vcmp.eq.s32.totalorder %v275, 1
  %v277 = vsel %vm276, %v269, 0.0
  %v278 = vsel %vm276, %v263, 0.0
  %280 = vrot.lane.b32.xlu0 %v277, 32
  %v281 = vpop.permute.xlu0 %280
  %vm283 = vcmask 254976
  %284 = vst.msk [vmem:[#allocation2] sm:$0x3] %vm283, %v281
  %s285 = scalar_lea.vmem [#allocation2], 30
  %vm286 = vcmask 257026
  %287 = vst.msk [vmem:[%s285 - $0x2] sm:$0xc] %vm286, %v281
  %v288 = vrot.slane %v277, 6
  %289 = vrot.lane.b32.xlu0 %v288, 64
  %v290 = vpop.permute.xlu0 %289
  %v292 = vsel %vm181, %v108, %v290
  %v293 = vsel %vm183, %v292, 0.0
  %v294 = vrot.slane %v111, 4
  %295 = vrot.lane.b32.xlu0 %v294, 64
  %v296 = vpop.permute.xlu0 %295
  %v298 = vrot.slane %v277, 2
  %v300 = vsel %vm183, 0.0, %v296
  %v301 = vsel %vm191, %v300, %v298
  %v303 = vrot.slane %v293, 2
  %v306 = vrot.slane %v301, 6
  %v308 = vsel %vm174, %v303, %v306
  %v309 = vld [vmem:[%s7] sm:$0xff]
  %v310 = vld [vmem:[%s7 + $0x8] sm:$0xff]
  %v311 = vld [vmem:[%s7 + $0x10] sm:$0xff]
  %v312 = vld [vmem:[%s7 + $0x18] sm:$0xff]
  %v313 = vld [vmem:[%s7 + $0x20] sm:$0xff]
  %v314 = vld [vmem:[%s7 + $0x28] sm:$0xff]
  %v315 = vld [vmem:[%s7 + $0x30] sm:$0xff]
  %v316 = vld [vmem:[%s7 + $0x38] sm:$0xff]
  %v317 = vld [vmem:[%s7 + $0x40] sm:$0xff]
  %v318 = vld [vmem:[%s7 + $0x48] sm:$0xff]
  %v319 = vld [vmem:[%s7 + $0x50] sm:$0xff]
  %v320 = vld [vmem:[%s7 + $0x58] sm:$0xff]
  %v321 = vld [vmem:[%s7 + $0x60] sm:$0xff]
  %v322 = vld [vmem:[%s7 + $0x68] sm:$0xff]
  %v323 = vld [vmem:[%s7 + $0x70] sm:$0xff]
  %v324 = vld [vmem:[%s7 + $0x78] sm:$0xff]
  %325 = vmatpush.msra.mxu0 %v324
  %326 = vmatpush.msra.mxu0 %v323
  %327 = vmatpush.msra.mxu0 %v322
  %328 = vmatpush.msra.mxu0 %v321
  %329 = vmatpush.msra.mxu0 %v320
  %330 = vmatpush.msra.mxu0 %v319
  %331 = vmatpush.msra.mxu0 %v318
  %332 = vmatpush.msra.mxu0 %v317
  %333 = vmatpush.msra.mxu0 %v316
  %334 = vmatpush.msra.mxu0 %v315
  %335 = vmatpush.msra.mxu0 %v314
  %336 = vmatpush.msra.mxu0 %v313
  %337 = vmatpush.msra.mxu0 %v312
  %338 = vmatpush.msra.mxu0 %v311
  %339 = vmatpush.msra.mxu0 %v310
  %340 = vmatpush.msra.mxu0 %v309
  %341 = vmatmul.f32.gmra.mxu0 %v308
  %v342 = vpop.f32.mrf.mxu0
  %v343 = vadd.f32 %v175, %v342
  %344 = vdwg.mxu0
  %v345 = vxor.u32 %v343, 2147483648
  %v346 = vmul.f32 %v345, 1.442695
  %v347 = vpow.pop %v346
  %v348 = vadd.f32 %v347, 1.0
  %v349 = vrcp.pop %v348
  %v350 = vmul.f32 %v348, %v349
  %v351 = vsub.f32 1.0, %v350
  %v352 = vmul.f32 %v349, %v351
  %v353 = vadd.f32 %v349, %v352
  %vm354 = vweird.f32 %v348
  %vm355 = vweird.f32 %v349
  %vm356 = vmor %vm354, %vm355
  %v357 = vsel %vm356, %v349, %v353
  %v358 = vand.u32 2147483647, %v348
  %vm359 = vcmp.eq.f32.partialorder %v358, 8.507059e+37
  %v360 = vand.u32 %v348, 2147483648
  %v361 = vor.u32 1.1754944e-38, %v360
  %v362 = vsel %vm359, %v361, %v357
  %v363 = vmul.f32 1.0, %v362
  %v364 = vtanh.pop %v343
  %v365 = vmul.f32 %v363, %v278
  %367 = vrot.lane.b32.xlu0 %v364, 64
  %v368 = vpop.permute.xlu0 %367
  %v370 = vmul.f32 %v363, %v368
  %372 = vrot.lane.b32.xlu0 %v370, 32
  %v373 = vpop.permute.xlu0 %372
  %v375 = vadd.f32 %v365, %v373
  %v376 = vtanh.pop %v375
  %378 = vrot.lane.b32.xlu0 %v376, 64
  %v379 = vpop.permute.xlu0 %378
  %v381 = vmul.f32 %v363, %v379
  %v382 = vsel %vm180, 1, 6
  %vm383 = vcmp.gt.s32.totalorder %v177, %v382
  %v384 = vsel %vm383, 1, 0
  %385 = vset.pattern.permute.xlu0 0
  %386 = vperm.xlu0 %385, %v384
  %v387 = vpop.permute.xlu0 %386
  %vm388 = vcmp.eq.s32.totalorder %v387, 1
  %v389 = vsel %vm388, %v381, %v277
  %v390 = vsel %vm388, %v375, %v278
  %v391 = vsel %vm388, %v381, 0.0
  %393 = vrot.lane.b32.xlu0 %v391, 32
  %v394 = vpop.permute.xlu0 %393
  %s396 = scalar_lea.vmem [#allocation2], 2
  %397 = vst.msk [vmem:[%s396] sm:$0x3] %vm283, %v394
  %s398 = scalar_lea.vmem [#allocation2], 28
  %399 = vst.msk [vmem:[%s398 - $0x2] sm:$0xc] %vm286, %v394
  %v401 = vrot.slane %v389, 4
  %402 = vrot.lane.b32.xlu0 %v401, 64
  %v403 = vpop.permute.xlu0 %402
  %v405 = vsel %vm181, %v108, %v403
  %v406 = vsel %vm183, %v405, 0.0
  %v407 = vrot.slane %v111, 2
  %408 = vrot.lane.b32.xlu0 %v407, 64
  %v409 = vpop.permute.xlu0 %408
  %v411 = vrot.slane %v389, 2
  %v413 = vsel %vm183, 0.0, %v409
  %v414 = vsel %vm191, %v413, %v411
  %v416 = vrot.slane %v406, 4
  %v419 = vrot.slane %v414, 6
  %v421 = vsel %vm174, %v416, %v419
  %v422 = vld [vmem:[%s7] sm:$0xff]
  %v423 = vld [vmem:[%s7 + $0x8] sm:$0xff]
  %v424 = vld [vmem:[%s7 + $0x10] sm:$0xff]
  %v425 = vld [vmem:[%s7 + $0x18] sm:$0xff]
  %v426 = vld [vmem:[%s7 + $0x20] sm:$0xff]
  %v427 = vld [vmem:[%s7 + $0x28] sm:$0xff]
  %v428 = vld [vmem:[%s7 + $0x30] sm:$0xff]
  %v429 = vld [vmem:[%s7 + $0x38] sm:$0xff]
  %v430 = vld [vmem:[%s7 + $0x40] sm:$0xff]
  %v431 = vld [vmem:[%s7 + $0x48] sm:$0xff]
  %v432 = vld [vmem:[%s7 + $0x50] sm:$0xff]
  %v433 = vld [vmem:[%s7 + $0x58] sm:$0xff]
  %v434 = vld [vmem:[%s7 + $0x60] sm:$0xff]
  %v435 = vld [vmem:[%s7 + $0x68] sm:$0xff]
  %v436 = vld [vmem:[%s7 + $0x70] sm:$0xff]
  %v437 = vld [vmem:[%s7 + $0x78] sm:$0xff]
  %438 = vmatpush.msra.mxu0 %v437
  %439 = vmatpush.msra.mxu0 %v436
  %440 = vmatpush.msra.mxu0 %v435
  %441 = vmatpush.msra.mxu0 %v434
  %442 = vmatpush.msra.mxu0 %v433
  %443 = vmatpush.msra.mxu0 %v432
  %444 = vmatpush.msra.mxu0 %v431
  %445 = vmatpush.msra.mxu0 %v430
  %446 = vmatpush.msra.mxu0 %v429
  %447 = vmatpush.msra.mxu0 %v428
  %448 = vmatpush.msra.mxu0 %v427
  %449 = vmatpush.msra.mxu0 %v426
  %450 = vmatpush.msra.mxu0 %v425
  %451 = vmatpush.msra.mxu0 %v424
  %452 = vmatpush.msra.mxu0 %v423
  %453 = vmatpush.msra.mxu0 %v422
  %454 = vmatmul.f32.gmra.mxu0 %v421
  %v455 = vpop.f32.mrf.mxu0
  %v456 = vadd.f32 %v175, %v455
  %457 = vdwg.mxu0
  %v458 = vxor.u32 %v456, 2147483648
  %v459 = vmul.f32 %v458, 1.442695
  %v460 = vpow.pop %v459
  %v461 = vadd.f32 %v460, 1.0
  %v462 = vrcp.pop %v461
  %v463 = vmul.f32 %v461, %v462
  %v464 = vsub.f32 1.0, %v463
  %v465 = vmul.f32 %v462, %v464
  %v466 = vadd.f32 %v462, %v465
  %vm467 = vweird.f32 %v461
  %vm468 = vweird.f32 %v462
  %vm469 = vmor %vm467, %vm468
  %v470 = vsel %vm469, %v462, %v466
  %v471 = vand.u32 2147483647, %v461
  %vm472 = vcmp.eq.f32.partialorder %v471, 8.507059e+37
  %v473 = vand.u32 %v461, 2147483648
  %v474 = vor.u32 1.1754944e-38, %v473
  %v475 = vsel %vm472, %v474, %v470
  %v476 = vmul.f32 1.0, %v475
  %v477 = vtanh.pop %v456
  %v478 = vmul.f32 %v476, %v390
  %480 = vrot.lane.b32.xlu0 %v477, 64
  %v481 = vpop.permute.xlu0 %480
  %v483 = vmul.f32 %v476, %v481
  %485 = vrot.lane.b32.xlu0 %v483, 32
  %v486 = vpop.permute.xlu0 %485
  %v488 = vadd.f32 %v478, %v486
  %v489 = vtanh.pop %v488
  %491 = vrot.lane.b32.xlu0 %v489, 64
  %v492 = vpop.permute.xlu0 %491
  %v494 = vmul.f32 %v476, %v492
  %v495 = vsel %vm180, 2, 5
  %vm496 = vcmp.gt.s32.totalorder %v177, %v495
  %v497 = vsel %vm496, 1, 0
  %498 = vset.pattern.permute.xlu0 0
  %499 = vperm.xlu0 %498, %v497
  %v500 = vpop.permute.xlu0 %499
  %vm501 = vcmp.eq.s32.totalorder %v500, 1
  %v502 = vsel %vm501, %v494, %v389
  %v503 = vsel %vm501, %v488, %v390
  %v504 = vsel %vm501, %v494, 0.0
  %506 = vrot.lane.b32.xlu0 %v504, 32
  %v507 = vpop.permute.xlu0 %506
  %s509 = scalar_lea.vmem [#allocation2], 4
  %510 = vst.msk [vmem:[%s509] sm:$0x3] %vm283, %v507
  %s511 = scalar_lea.vmem [#allocation2], 26
  %512 = vst.msk [vmem:[%s511 - $0x2] sm:$0xc] %vm286, %v507
  %v514 = vrot.slane %v502, 2
  %515 = vrot.lane.b32.xlu0 %v514, 64
  %v516 = vpop.permute.xlu0 %515
  %v518 = vsel %vm181, %v108, %v516
  %v519 = vsel %vm183, %v518, 0.0
  %520 = vrot.lane.b32.xlu0 %v111, 64
  %v521 = vpop.permute.xlu0 %520
  %v524 = vsel %vm183, 0.0, %v521
  %v525 = vsel %vm191, %v524, %v514
  %v527 = vrot.slane %v519, 6
  %v530 = vrot.slane %v525, 6
  %v532 = vsel %vm174, %v527, %v530
  %v533 = vld [vmem:[%s7] sm:$0xff]
  %v534 = vld [vmem:[%s7 + $0x8] sm:$0xff]
  %v535 = vld [vmem:[%s7 + $0x10] sm:$0xff]
  %v536 = vld [vmem:[%s7 + $0x18] sm:$0xff]
  %v537 = vld [vmem:[%s7 + $0x20] sm:$0xff]
  %v538 = vld [vmem:[%s7 + $0x28] sm:$0xff]
  %v539 = vld [vmem:[%s7 + $0x30] sm:$0xff]
  %v540 = vld [vmem:[%s7 + $0x38] sm:$0xff]
  %v541 = vld [vmem:[%s7 + $0x40] sm:$0xff]
  %v542 = vld [vmem:[%s7 + $0x48] sm:$0xff]
  %v543 = vld [vmem:[%s7 + $0x50] sm:$0xff]
  %v544 = vld [vmem:[%s7 + $0x58] sm:$0xff]
  %v545 = vld [vmem:[%s7 + $0x60] sm:$0xff]
  %v546 = vld [vmem:[%s7 + $0x68] sm:$0xff]
  %v547 = vld [vmem:[%s7 + $0x70] sm:$0xff]
  %v548 = vld [vmem:[%s7 + $0x78] sm:$0xff]
  %549 = vmatpush.msra.mxu0 %v548
  %550 = vmatpush.msra.mxu0 %v547
  %551 = vmatpush.msra.mxu0 %v546
  %552 = vmatpush.msra.mxu0 %v545
  %553 = vmatpush.msra.mxu0 %v544
  %554 = vmatpush.msra.mxu0 %v543
  %555 = vmatpush.msra.mxu0 %v542
  %556 = vmatpush.msra.mxu0 %v541
  %557 = vmatpush.msra.mxu0 %v540
  %558 = vmatpush.msra.mxu0 %v539
  %559 = vmatpush.msra.mxu0 %v538
  %560 = vmatpush.msra.mxu0 %v537
  %561 = vmatpush.msra.mxu0 %v536
  %562 = vmatpush.msra.mxu0 %v535
  %563 = vmatpush.msra.mxu0 %v534
  %564 = vmatpush.msra.mxu0 %v533
  %565 = vmatmul.f32.gmra.mxu0 %v532
  %v566 = vpop.f32.mrf.mxu0
  %v567 = vadd.f32 %v175, %v566
  %568 = vdwg.mxu0
  %v569 = vxor.u32 %v567, 2147483648
  %v570 = vmul.f32 %v569, 1.442695
  %v571 = vpow.pop %v570
  %v572 = vadd.f32 %v571, 1.0
  %v573 = vrcp.pop %v572
  %v574 = vmul.f32 %v572, %v573
  %v575 = vsub.f32 1.0, %v574
  %v576 = vmul.f32 %v573, %v575
  %v577 = vadd.f32 %v573, %v576
  %vm578 = vweird.f32 %v572
  %vm579 = vweird.f32 %v573
  %vm580 = vmor %vm578, %vm579
  %v581 = vsel %vm580, %v573, %v577
  %v582 = vand.u32 2147483647, %v572
  %vm583 = vcmp.eq.f32.partialorder %v582, 8.507059e+37
  %v584 = vand.u32 %v572, 2147483648
  %v585 = vor.u32 1.1754944e-38, %v584
  %v586 = vsel %vm583, %v585, %v581
  %v587 = vmul.f32 1.0, %v586
  %v588 = vtanh.pop %v567
  %v589 = vmul.f32 %v587, %v503
  %591 = vrot.lane.b32.xlu0 %v588, 64
  %v592 = vpop.permute.xlu0 %591
  %v594 = vmul.f32 %v587, %v592
  %596 = vrot.lane.b32.xlu0 %v594, 32
  %v597 = vpop.permute.xlu0 %596
  %v599 = vadd.f32 %v589, %v597
  %v600 = vtanh.pop %v599
  %602 = vrot.lane.b32.xlu0 %v600, 64
  %v603 = vpop.permute.xlu0 %602
  %v605 = vmul.f32 %v587, %v603
  %v606 = vsel %vm180, 3, 4
  %vm607 = vcmp.gt.s32.totalorder %v177, %v606
  %v608 = vsel %vm607, 1, 0
  %609 = vset.pattern.permute.xlu0 0
  %610 = vperm.xlu0 %609, %v608
  %v611 = vpop.permute.xlu0 %610
  %vm612 = vcmp.eq.s32.totalorder %v611, 1
  %v613 = vsel %vm612, %v605, %v502
  %v614 = vsel %vm612, %v599, %v503
  %v615 = vsel %vm612, %v605, 0.0
  %617 = vrot.lane.b32.xlu0 %v615, 32
  %v618 = vpop.permute.xlu0 %617
  %s620 = scalar_lea.vmem [#allocation2], 6
  %621 = vst.msk [vmem:[%s620] sm:$0x3] %vm283, %v618
  %s622 = scalar_lea.vmem [#allocation2], 24
  %623 = vst.msk [vmem:[%s622 - $0x2] sm:$0xc] %vm286, %v618
  %625 = vrot.lane.b32.xlu0 %v613, 64
  %v626 = vpop.permute.xlu0 %625
  %v628 = vsel %vm181, %v111, %v626
  %v629 = vsel %vm183, %v628, 0.0
  %v631 = vrot.slane %v108, 6
  %632 = vrot.lane.b32.xlu0 %v631, 64
  %v633 = vpop.permute.xlu0 %632
  %v635 = vrot.slane %v613, 2
  %v637 = vsel %vm183, 0.0, %v633
  %v638 = vsel %vm191, %v637, %v635
  %v640 = vrot.slane %v638, 6
  %v642 = vsel %vm174, %v629, %v640
  %v643 = vld [vmem:[%s7] sm:$0xff]
  %v644 = vld [vmem:[%s7 + $0x8] sm:$0xff]
  %v645 = vld [vmem:[%s7 + $0x10] sm:$0xff]
  %v646 = vld [vmem:[%s7 + $0x18] sm:$0xff]
  %v647 = vld [vmem:[%s7 + $0x20] sm:$0xff]
  %v648 = vld [vmem:[%s7 + $0x28] sm:$0xff]
  %v649 = vld [vmem:[%s7 + $0x30] sm:$0xff]
  %v650 = vld [vmem:[%s7 + $0x38] sm:$0xff]
  %v651 = vld [vmem:[%s7 + $0x40] sm:$0xff]
  %v652 = vld [vmem:[%s7 + $0x48] sm:$0xff]
  %v653 = vld [vmem:[%s7 + $0x50] sm:$0xff]
  %v654 = vld [vmem:[%s7 + $0x58] sm:$0xff]
  %v655 = vld [vmem:[%s7 + $0x60] sm:$0xff]
  %v656 = vld [vmem:[%s7 + $0x68] sm:$0xff]
  %v657 = vld [vmem:[%s7 + $0x70] sm:$0xff]
  %v658 = vld [vmem:[%s7 + $0x78] sm:$0xff]
  %659 = vmatpush.msra.mxu0 %v658
  %660 = vmatpush.msra.mxu0 %v657
  %661 = vmatpush.msra.mxu0 %v656
  %662 = vmatpush.msra.mxu0 %v655
  %663 = vmatpush.msra.mxu0 %v654
  %664 = vmatpush.msra.mxu0 %v653
  %665 = vmatpush.msra.mxu0 %v652
  %666 = vmatpush.msra.mxu0 %v651
  %667 = vmatpush.msra.mxu0 %v650
  %668 = vmatpush.msra.mxu0 %v649
  %669 = vmatpush.msra.mxu0 %v648
  %670 = vmatpush.msra.mxu0 %v647
  %671 = vmatpush.msra.mxu0 %v646
  %672 = vmatpush.msra.mxu0 %v645
  %673 = vmatpush.msra.mxu0 %v644
  %674 = vmatpush.msra.mxu0 %v643
  %675 = vmatmul.f32.gmra.mxu0 %v642
  %v676 = vpop.f32.mrf.mxu0
  %v677 = vadd.f32 %v175, %v676
  %678 = vdwg.mxu0
  %v679 = vxor.u32 %v677, 2147483648
  %v680 = vmul.f32 %v679, 1.442695
  %v681 = vpow.pop %v680
  %v682 = vadd.f32 %v681, 1.0
  %v683 = vrcp.pop %v682
  %v684 = vmul.f32 %v682, %v683
  %v685 = vsub.f32 1.0, %v684
  %v686 = vmul.f32 %v683, %v685
  %v687 = vadd.f32 %v683, %v686
  %vm688 = vweird.f32 %v682
  %vm689 = vweird.f32 %v683
  %vm690 = vmor %vm688, %vm689
  %v691 = vsel %vm690, %v683, %v687
  %v692 = vand.u32 2147483647, %v682
  %vm693 = vcmp.eq.f32.partialorder %v692, 8.507059e+37
  %v694 = vand.u32 %v682, 2147483648
  %v695 = vor.u32 1.1754944e-38, %v694
  %v696 = vsel %vm693, %v695, %v691
  %v697 = vmul.f32 1.0, %v696
  %v698 = vtanh.pop %v677
  %v699 = vmul.f32 %v697, %v614
  %701 = vrot.lane.b32.xlu0 %v698, 64
  %v702 = vpop.permute.xlu0 %701
  %v704 = vmul.f32 %v697, %v702
  %706 = vrot.lane.b32.xlu0 %v704, 32
  %v707 = vpop.permute.xlu0 %706
  %v709 = vadd.f32 %v699, %v707
  %v710 = vtanh.pop %v709
  %712 = vrot.lane.b32.xlu0 %v710, 64
  %v713 = vpop.permute.xlu0 %712
  %v715 = vmul.f32 %v697, %v713
  %v716 = vsel %vm180, 4, 3
  %vm717 = vcmp.gt.s32.totalorder %v177, %v716
  %v718 = vsel %vm717, 1, 0
  %719 = vset.pattern.permute.xlu0 0
  %720 = vperm.xlu0 %719, %v718
  %v721 = vpop.permute.xlu0 %720
  %vm722 = vcmp.eq.s32.totalorder %v721, 1
  %v723 = vsel %vm722, %v715, %v613
  %v724 = vsel %vm722, %v709, %v614
  %v725 = vsel %vm722, %v715, 0.0
  %727 = vrot.lane.b32.xlu0 %v725, 32
  %v728 = vpop.permute.xlu0 %727
  %s730 = scalar_lea.vmem [#allocation2], 8
  %731 = vst.msk [vmem:[%s730] sm:$0x3] %vm283, %v728
  %s732 = scalar_lea.vmem [#allocation2], 22
  %733 = vst.msk [vmem:[%s732 - $0x2] sm:$0xc] %vm286, %v728
  %v735 = vrot.slane %v723, 6
  %736 = vrot.lane.b32.xlu0 %v735, 64
  %v737 = vpop.permute.xlu0 %736
  %v739 = vsel %vm181, %v111, %v737
  %v740 = vsel %vm183, %v739, 0.0
  %v741 = vrot.slane %v108, 4
  %742 = vrot.lane.b32.xlu0 %v741, 64
  %v743 = vpop.permute.xlu0 %742
  %v745 = vrot.slane %v723, 2
  %v747 = vsel %vm183, 0.0, %v743
  %v748 = vsel %vm191, %v747, %v745
  %v750 = vrot.slane %v740, 2
  %v753 = vrot.slane %v748, 6
  %v755 = vsel %vm174, %v750, %v753
  %v756 = vld [vmem:[%s7] sm:$0xff]
  %v757 = vld [vmem:[%s7 + $0x8] sm:$0xff]
  %v758 = vld [vmem:[%s7 + $0x10] sm:$0xff]
  %v759 = vld [vmem:[%s7 + $0x18] sm:$0xff]
  %v760 = vld [vmem:[%s7 + $0x20] sm:$0xff]
  %v761 = vld [vmem:[%s7 + $0x28] sm:$0xff]
  %v762 = vld [vmem:[%s7 + $0x30] sm:$0xff]
  %v763 = vld [vmem:[%s7 + $0x38] sm:$0xff]
  %v764 = vld [vmem:[%s7 + $0x40] sm:$0xff]
  %v765 = vld [vmem:[%s7 + $0x48] sm:$0xff]
  %v766 = vld [vmem:[%s7 + $0x50] sm:$0xff]
  %v767 = vld [vmem:[%s7 + $0x58] sm:$0xff]
  %v768 = vld [vmem:[%s7 + $0x60] sm:$0xff]
  %v769 = vld [vmem:[%s7 + $0x68] sm:$0xff]
  %v770 = vld [vmem:[%s7 + $0x70] sm:$0xff]
  %v771 = vld [vmem:[%s7 + $0x78] sm:$0xff]
  %772 = vmatpush.msra.mxu0 %v771
  %773 = vmatpush.msra.mxu0 %v770
  %774 = vmatpush.msra.mxu0 %v769
  %775 = vmatpush.msra.mxu0 %v768
  %776 = vmatpush.msra.mxu0 %v767
  %777 = vmatpush.msra.mxu0 %v766
  %778 = vmatpush.msra.mxu0 %v765
  %779 = vmatpush.msra.mxu0 %v764
  %780 = vmatpush.msra.mxu0 %v763
  %781 = vmatpush.msra.mxu0 %v762
  %782 = vmatpush.msra.mxu0 %v761
  %783 = vmatpush.msra.mxu0 %v760
  %784 = vmatpush.msra.mxu0 %v759
  %785 = vmatpush.msra.mxu0 %v758
  %786 = vmatpush.msra.mxu0 %v757
  %787 = vmatpush.msra.mxu0 %v756
  %788 = vmatmul.f32.gmra.mxu0 %v755
  %v789 = vpop.f32.mrf.mxu0
  %v790 = vadd.f32 %v175, %v789
  %791 = vdwg.mxu0
  %v792 = vxor.u32 %v790, 2147483648
  %v793 = vmul.f32 %v792, 1.442695
  %v794 = vpow.pop %v793
  %v795 = vadd.f32 %v794, 1.0
  %v796 = vrcp.pop %v795
  %v797 = vmul.f32 %v795, %v796
  %v798 = vsub.f32 1.0, %v797
  %v799 = vmul.f32 %v796, %v798
  %v800 = vadd.f32 %v796, %v799
  %vm801 = vweird.f32 %v795
  %vm802 = vweird.f32 %v796
  %vm803 = vmor %vm801, %vm802
  %v804 = vsel %vm803, %v796, %v800
  %v805 = vand.u32 2147483647, %v795
  %vm806 = vcmp.eq.f32.partialorder %v805, 8.507059e+37
  %v807 = vand.u32 %v795, 2147483648
  %v808 = vor.u32 1.1754944e-38, %v807
  %v809 = vsel %vm806, %v808, %v804
  %v810 = vmul.f32 1.0, %v809
  %v811 = vtanh.pop %v790
  %v812 = vmul.f32 %v810, %v724
  %814 = vrot.lane.b32.xlu0 %v811, 64
  %v815 = vpop.permute.xlu0 %814
  %v817 = vmul.f32 %v810, %v815
  %819 = vrot.lane.b32.xlu0 %v817, 32
  %v820 = vpop.permute.xlu0 %819
  %v822 = vadd.f32 %v812, %v820
  %v823 = vtanh.pop %v822
  %825 = vrot.lane.b32.xlu0 %v823, 64
  %v826 = vpop.permute.xlu0 %825
  %v828 = vmul.f32 %v810, %v826
  %v829 = vsel %vm180, 5, 2
  %vm830 = vcmp.gt.s32.totalorder %v177, %v829
  %v831 = vsel %vm830, 1, 0
  %832 = vset.pattern.permute.xlu0 0
  %833 = vperm.xlu0 %832, %v831
  %v834 = vpop.permute.xlu0 %833
  %vm835 = vcmp.eq.s32.totalorder %v834, 1
  %v836 = vsel %vm835, %v828, %v723
  %v837 = vsel %vm835, %v822, %v724
  %v838 = vsel %vm835, %v828, 0.0
  %840 = vrot.lane.b32.xlu0 %v838, 32
  %v841 = vpop.permute.xlu0 %840
  %s843 = scalar_lea.vmem [#allocation2], 10
  %844 = vst.msk [vmem:[%s843] sm:$0x3] %vm283, %v841
  %s845 = scalar_lea.vmem [#allocation2], 20
  %846 = vst.msk [vmem:[%s845 - $0x2] sm:$0xc] %vm286, %v841
  %v848 = vrot.slane %v836, 4
  %849 = vrot.lane.b32.xlu0 %v848, 64
  %v850 = vpop.permute.xlu0 %849
  %v852 = vsel %vm181, %v111, %v850
  %v853 = vsel %vm183, %v852, 0.0
  %v854 = vrot.slane %v108, 2
  %855 = vrot.lane.b32.xlu0 %v854, 64
  %v856 = vpop.permute.xlu0 %855
  %v858 = vrot.slane %v836, 2
  %v860 = vsel %vm183, 0.0, %v856
  %v861 = vsel %vm191, %v860, %v858
  %v863 = vrot.slane %v853, 4
  %v866 = vrot.slane %v861, 6
  %v868 = vsel %vm174, %v863, %v866
  %v869 = vld [vmem:[%s7] sm:$0xff]
  %v870 = vld [vmem:[%s7 + $0x8] sm:$0xff]
  %v871 = vld [vmem:[%s7 + $0x10] sm:$0xff]
  %v872 = vld [vmem:[%s7 + $0x18] sm:$0xff]
  %v873 = vld [vmem:[%s7 + $0x20] sm:$0xff]
  %v874 = vld [vmem:[%s7 + $0x28] sm:$0xff]
  %v875 = vld [vmem:[%s7 + $0x30] sm:$0xff]
  %v876 = vld [vmem:[%s7 + $0x38] sm:$0xff]
  %v877 = vld [vmem:[%s7 + $0x40] sm:$0xff]
  %v878 = vld [vmem:[%s7 + $0x48] sm:$0xff]
  %v879 = vld [vmem:[%s7 + $0x50] sm:$0xff]
  %v880 = vld [vmem:[%s7 + $0x58] sm:$0xff]
  %v881 = vld [vmem:[%s7 + $0x60] sm:$0xff]
  %v882 = vld [vmem:[%s7 + $0x68] sm:$0xff]
  %v883 = vld [vmem:[%s7 + $0x70] sm:$0xff]
  %v884 = vld [vmem:[%s7 + $0x78] sm:$0xff]
  %885 = vmatpush.msra.mxu0 %v884
  %886 = vmatpush.msra.mxu0 %v883
  %887 = vmatpush.msra.mxu0 %v882
  %888 = vmatpush.msra.mxu0 %v881
  %889 = vmatpush.msra.mxu0 %v880
  %890 = vmatpush.msra.mxu0 %v879
  %891 = vmatpush.msra.mxu0 %v878
  %892 = vmatpush.msra.mxu0 %v877
  %893 = vmatpush.msra.mxu0 %v876
  %894 = vmatpush.msra.mxu0 %v875
  %895 = vmatpush.msra.mxu0 %v874
  %896 = vmatpush.msra.mxu0 %v873
  %897 = vmatpush.msra.mxu0 %v872
  %898 = vmatpush.msra.mxu0 %v871
  %899 = vmatpush.msra.mxu0 %v870
  %900 = vmatpush.msra.mxu0 %v869
  %901 = vmatmul.f32.gmra.mxu0 %v868
  %v902 = vpop.f32.mrf.mxu0
  %v903 = vadd.f32 %v175, %v902
  %904 = vdwg.mxu0
  %v905 = vxor.u32 %v903, 2147483648
  %v906 = vmul.f32 %v905, 1.442695
  %v907 = vpow.pop %v906
  %v908 = vadd.f32 %v907, 1.0
  %v909 = vrcp.pop %v908
  %v910 = vmul.f32 %v908, %v909
  %v911 = vsub.f32 1.0, %v910
  %v912 = vmul.f32 %v909, %v911
  %v913 = vadd.f32 %v909, %v912
  %vm914 = vweird.f32 %v908
  %vm915 = vweird.f32 %v909
  %vm916 = vmor %vm914, %vm915
  %v917 = vsel %vm916, %v909, %v913
  %v918 = vand.u32 2147483647, %v908
  %vm919 = vcmp.eq.f32.partialorder %v918, 8.507059e+37
  %v920 = vand.u32 %v908, 2147483648
  %v921 = vor.u32 1.1754944e-38, %v920
  %v922 = vsel %vm919, %v921, %v917
  %v923 = vmul.f32 1.0, %v922
  %v924 = vtanh.pop %v903
  %v925 = vmul.f32 %v923, %v837
  %927 = vrot.lane.b32.xlu0 %v924, 64
  %v928 = vpop.permute.xlu0 %927
  %v930 = vmul.f32 %v923, %v928
  %932 = vrot.lane.b32.xlu0 %v930, 32
  %v933 = vpop.permute.xlu0 %932
  %v935 = vadd.f32 %v925, %v933
  %v936 = vtanh.pop %v935
  %938 = vrot.lane.b32.xlu0 %v936, 64
  %v939 = vpop.permute.xlu0 %938
  %v941 = vmul.f32 %v923, %v939
  %v942 = vsel %vm180, 6, 1
  %vm943 = vcmp.gt.s32.totalorder %v177, %v942
  %v944 = vsel %vm943, 1, 0
  %945 = vset.pattern.permute.xlu0 0
  %946 = vperm.xlu0 %945, %v944
  %v947 = vpop.permute.xlu0 %946
  %vm948 = vcmp.eq.s32.totalorder %v947, 1
  %v949 = vsel %vm948, %v941, %v836
  %v950 = vsel %vm948, %v935, %v837
  %v951 = vsel %vm948, %v941, 0.0
  %953 = vrot.lane.b32.xlu0 %v951, 32
  %v954 = vpop.permute.xlu0 %953
  %s956 = scalar_lea.vmem [#allocation2], 12
  %957 = vst.msk [vmem:[%s956] sm:$0x3] %vm283, %v954
  %s958 = scalar_lea.vmem [#allocation2], 18
  %959 = vst.msk [vmem:[%s958 - $0x2] sm:$0xc] %vm286, %v954
  %v961 = vrot.slane %v949, 2
  %962 = vrot.lane.b32.xlu0 %v961, 64
  %v963 = vpop.permute.xlu0 %962
  %v965 = vsel %vm181, %v111, %v963
  %v966 = vsel %vm183, %v965, 0.0
  %967 = vrot.lane.b32.xlu0 %v108, 64
  %v968 = vpop.permute.xlu0 %967
  %v971 = vsel %vm183, 0.0, %v968
  %v972 = vsel %vm191, %v971, %v961
  %v974 = vrot.slane %v966, 6
  %v977 = vrot.slane %v972, 6
  %v979 = vsel %vm174, %v974, %v977
  %v980 = vld [vmem:[%s7] sm:$0xff]
  %v981 = vld [vmem:[%s7 + $0x8] sm:$0xff]
  %v982 = vld [vmem:[%s7 + $0x10] sm:$0xff]
  %v983 = vld [vmem:[%s7 + $0x18] sm:$0xff]
  %v984 = vld [vmem:[%s7 + $0x20] sm:$0xff]
  %v985 = vld [vmem:[%s7 + $0x28] sm:$0xff]
  %v986 = vld [vmem:[%s7 + $0x30] sm:$0xff]
  %v987 = vld [vmem:[%s7 + $0x38] sm:$0xff]
  %v988 = vld [vmem:[%s7 + $0x40] sm:$0xff]
  %v989 = vld [vmem:[%s7 + $0x48] sm:$0xff]
  %v990 = vld [vmem:[%s7 + $0x50] sm:$0xff]
  %v991 = vld [vmem:[%s7 + $0x58] sm:$0xff]
  %v992 = vld [vmem:[%s7 + $0x60] sm:$0xff]
  %v993 = vld [vmem:[%s7 + $0x68] sm:$0xff]
  %v994 = vld [vmem:[%s7 + $0x70] sm:$0xff]
  %v995 = vld [vmem:[%s7 + $0x78] sm:$0xff]
  %996 = vmatpush.msra.mxu0 %v995
  %997 = vmatpush.msra.mxu0 %v994
  %998 = vmatpush.msra.mxu0 %v993
  %999 = vmatpush.msra.mxu0 %v992
  %1000 = vmatpush.msra.mxu0 %v991
  %1001 = vmatpush.msra.mxu0 %v990
  %1002 = vmatpush.msra.mxu0 %v989
  %1003 = vmatpush.msra.mxu0 %v988
  %1004 = vmatpush.msra.mxu0 %v987
  %1005 = vmatpush.msra.mxu0 %v986
  %1006 = vmatpush.msra.mxu0 %v985
  %1007 = vmatpush.msra.mxu0 %v984
  %1008 = vmatpush.msra.mxu0 %v983
  %1009 = vmatpush.msra.mxu0 %v982
  %1010 = vmatpush.msra.mxu0 %v981
  %1011 = vmatpush.msra.mxu0 %v980
  %1012 = vmatmul.f32.gmra.mxu0 %v979
  %v1013 = vpop.f32.mrf.mxu0
  %v1014 = vadd.f32 %v175, %v1013
  %1015 = vdwg.mxu0
  %v1016 = vxor.u32 %v1014, 2147483648
  %v1017 = vmul.f32 %v1016, 1.442695
  %v1018 = vpow.pop %v1017
  %v1019 = vadd.f32 %v1018, 1.0
  %v1020 = vrcp.pop %v1019
  %v1021 = vmul.f32 %v1019, %v1020
  %v1022 = vsub.f32 1.0, %v1021
  %v1023 = vmul.f32 %v1020, %v1022
  %v1024 = vadd.f32 %v1020, %v1023
  %vm1025 = vweird.f32 %v1019
  %vm1026 = vweird.f32 %v1020
  %vm1027 = vmor %vm1025, %vm1026
  %v1028 = vsel %vm1027, %v1020, %v1024
  %v1029 = vand.u32 2147483647, %v1019
  %vm1030 = vcmp.eq.f32.partialorder %v1029, 8.507059e+37
  %v1031 = vand.u32 %v1019, 2147483648
  %v1032 = vor.u32 1.1754944e-38, %v1031
  %v1033 = vsel %vm1030, %v1032, %v1028
  %v1034 = vmul.f32 1.0, %v1033
  %v1035 = vtanh.pop %v1014
  %v1036 = vmul.f32 %v1034, %v950
  %1038 = vrot.lane.b32.xlu0 %v1035, 64
  %v1039 = vpop.permute.xlu0 %1038
  %v1041 = vmul.f32 %v1034, %v1039
  %1043 = vrot.lane.b32.xlu0 %v1041, 32
  %v1044 = vpop.permute.xlu0 %1043
  %v1046 = vadd.f32 %v1036, %v1044
  %v1047 = vtanh.pop %v1046
  %1049 = vrot.lane.b32.xlu0 %v1047, 64
  %v1050 = vpop.permute.xlu0 %1049
  %v1052 = vmul.f32 %v1034, %v1050
  %v1053 = vsel %vm180, 7, 0
  %vm1054 = vcmp.gt.s32.totalorder %v177, %v1053
  %v1055 = vsel %vm1054, 1, 0
  %1056 = vset.pattern.permute.xlu0 0
  %1057 = vperm.xlu0 %1056, %v1055
  %v1058 = vpop.permute.xlu0 %1057
  %vm1059 = vcmp.eq.s32.totalorder %v1058, 1
  %v1060 = vsel %vm1059, %v1052, %v949
  %v1061 = vsel %vm1059, %v1046, %v950
  %v1062 = vsel %vm1059, %v1052, 0.0
  %1064 = vrot.lane.b32.xlu0 %v1062, 32
  %v1065 = vpop.permute.xlu0 %1064
  %s1067 = scalar_lea.vmem [#allocation2], 14
  %1068 = vst.msk [vmem:[%s1067] sm:$0x3] %vm283, %v1065
  %s1069 = scalar_lea.vmem [#allocation2], 16
  %1070 = vst.msk [vmem:[%s1069 - $0x2] sm:$0xc] %vm286, %v1065
  %1072 = vrot.lane.b32.xlu0 %v1060, 32
  %v1073 = vpop.permute.xlu0 %1072
  %v1075 = vrot.slane %v1060, 2
  %1076 = vrot.lane.b32.xlu0 %v1075, 64
  %v1077 = vpop.permute.xlu0 %1076
  %v1079 = vsel %vm181, %v1073, %v1077
  %v1080 = vld [vmem:[%s12] sm:$0xff]
  %v1081 = vld [vmem:[%s12 + $0x8] sm:$0xff]
  %v1082 = vld [vmem:[%s12 + $0x10] sm:$0xff]
  %v1083 = vld [vmem:[%s12 + $0x18] sm:$0xff]
  %v1084 = vld [vmem:[%s12 + $0x20] sm:$0xff]
  %v1085 = vld [vmem:[%s12 + $0x28] sm:$0xff]
  %v1086 = vld [vmem:[%s12 + $0x30] sm:$0xff]
  %v1087 = vld [vmem:[%s12 + $0x38] sm:$0xff]
  %v1089 = vsel %vm183, %v1079, 0
  %1091 = vmatpush.msra.mxu0 0.0
  %1092 = vmatpush.msra.mxu0 0.0
  %1093 = vmatpush.msra.mxu0 0.0
  %1094 = vmatpush.msra.mxu0 0.0
  %1095 = vmatpush.msra.mxu0 0.0
  %1096 = vmatpush.msra.mxu0 0.0
  %1097 = vmatpush.msra.mxu0 0.0
  %1098 = vmatpush.msra.mxu0 0.0
  %1099 = vmatpush.msra.mxu0 %v1087
  %1100 = vmatpush.msra.mxu0 %v1086
  %1101 = vmatpush.msra.mxu0 %v1085
  %1102 = vmatpush.msra.mxu0 %v1084
  %1103 = vmatpush.msra.mxu0 %v1083
  %1104 = vmatpush.msra.mxu0 %v1082
  %1105 = vmatpush.msra.mxu0 %v1081
  %1106 = vmatpush.msra.mxu0 %v1080
  %1107 = vmatmul.f32.gmra.mxu0 %v1089
  %v1108 = vpop.f32.mrf.mxu0
  %v1109 = vadd.f32 0.0, %v1108
  %1110 = vdwg.mxu0
  %1112 = vrot.lane.b32.xlu0 %v1061, 96
  %v1113 = vpop.permute.xlu0 %1112
  %v1115 = vrot.slane %v1061, 2
  %v1117 = vsel %vm181, %v1113, %v1115
  %v1118 = vld [vmem:[%s13] sm:$0xff]
  %v1119 = vld [vmem:[%s13 + $0x8] sm:$0xff]
  %v1120 = vld [vmem:[%s13 + $0x10] sm:$0xff]
  %v1121 = vld [vmem:[%s13 + $0x18] sm:$0xff]
  %v1122 = vld [vmem:[%s13 + $0x20] sm:$0xff]
  %v1123 = vld [vmem:[%s13 + $0x28] sm:$0xff]
  %v1124 = vld [vmem:[%s13 + $0x30] sm:$0xff]
  %v1125 = vld [vmem:[%s13 + $0x38] sm:$0xff]
  %v1127 = vsel %vm183, %v1117, 0
  %1129 = vmatpush.msra.mxu0 0.0
  %1130 = vmatpush.msra.mxu0 0.0
  %1131 = vmatpush.msra.mxu0 0.0
  %1132 = vmatpush.msra.mxu0 0.0
  %1133 = vmatpush.msra.mxu0 0.0
  %1134 = vmatpush.msra.mxu0 0.0
  %1135 = vmatpush.msra.mxu0 0.0
  %1136 = vmatpush.msra.mxu0 0.0
  %1137 = vmatpush.msra.mxu0 %v1125
  %1138 = vmatpush.msra.mxu0 %v1124
  %1139 = vmatpush.msra.mxu0 %v1123
  %1140 = vmatpush.msra.mxu0 %v1122
  %1141 = vmatpush.msra.mxu0 %v1121
  %1142 = vmatpush.msra.mxu0 %v1120
  %1143 = vmatpush.msra.mxu0 %v1119
  %1144 = vmatpush.msra.mxu0 %v1118
  %1145 = vmatmul.f32.gmra.mxu0 %v1127
  %v1146 = vpop.f32.mrf.mxu0
  %v1147 = vadd.f32 0.0, %v1146
  %1148 = vdwg.mxu0
  %v1149 = vld [vmem:[#allocation2] sm:$0x3]
  %v1150 = vld [vmem:[#allocation2 + $0x2] sm:$0x3]
  %v1151 = vld [vmem:[#allocation2 + $0x4] sm:$0x3]
  %v1152 = vld [vmem:[#allocation2 + $0x6] sm:$0x3]
  %v1153 = vld [vmem:[#allocation2 + $0x8] sm:$0x3]
  %v1154 = vld [vmem:[#allocation2 + $0xa] sm:$0x3]
  %v1155 = vld [vmem:[#allocation2 + $0xc] sm:$0x3]
  %v1156 = vld [vmem:[#allocation2 + $0xe] sm:$0x3]
  %v1157 = vld [vmem:[%s1069] sm:$0x3]
  %v1158 = vld [vmem:[%s1069 + $0x2] sm:$0x3]
  %v1159 = vld [vmem:[%s1069 + $0x4] sm:$0x3]
  %v1160 = vld [vmem:[%s1069 + $0x6] sm:$0x3]
  %v1161 = vld [vmem:[%s1069 + $0x8] sm:$0x3]
  %v1162 = vld [vmem:[%s1069 + $0xa] sm:$0x3]
  %v1163 = vld [vmem:[%s1069 + $0xc] sm:$0x3]
  %v1164 = vld [vmem:[%s1069 + $0xe] sm:$0x3]
  %v1165 = vperm.slane %v57, 0
  %vm1166 = vcmp.ge.s32.totalorder %v179, %v1165
  %v1167 = vld [vmem:[%s11] sm:$0x1]
  %v1169 = vperm.slane %v1167, 0
  %1172 = vrot.lane.b32.xlu0 %v1109, 64
  %v1173 = vpop.permute.xlu0 %1172
  %v1175 = vsel %vm181, %v161, 0.0
  %v1176 = vsel %vm183, %v1175, %v1173
  %v1177 = vld [vmem:[%s10] sm:$0xff]
  %v1178 = vld [vmem:[%s10 + $0x8] sm:$0xff]
  %v1179 = vld [vmem:[%s10 + $0x10] sm:$0xff]
  %v1180 = vld [vmem:[%s10 + $0x18] sm:$0xff]
  %v1181 = vld [vmem:[%s10 + $0x20] sm:$0xff]
  %v1182 = vld [vmem:[%s10 + $0x28] sm:$0xff]
  %v1183 = vld [vmem:[%s10 + $0x30] sm:$0xff]
  %v1184 = vld [vmem:[%s10 + $0x38] sm:$0xff]
  %v1185 = vld [vmem:[%s10 + $0x40] sm:$0xff]
  %v1186 = vld [vmem:[%s10 + $0x48] sm:$0xff]
  %v1187 = vld [vmem:[%s10 + $0x50] sm:$0xff]
  %v1188 = vld [vmem:[%s10 + $0x58] sm:$0xff]
  %v1190 = vsel %vm191, %v1176, 0
  %1192 = vmatpush.msra.mxu0 0.0
  %1193 = vmatpush.msra.mxu0 0.0
  %1194 = vmatpush.msra.mxu0 0.0
  %1195 = vmatpush.msra.mxu0 0.0
  %1196 = vmatpush.msra.mxu0 %v1188
  %1197 = vmatpush.msra.mxu0 %v1187
  %1198 = vmatpush.msra.mxu0 %v1186
  %1199 = vmatpush.msra.mxu0 %v1185
  %1200 = vmatpush.msra.mxu0 %v1184
  %1201 = vmatpush.msra.mxu0 %v1183
  %1202 = vmatpush.msra.mxu0 %v1182
  %1203 = vmatpush.msra.mxu0 %v1181
  %1204 = vmatpush.msra.mxu0 %v1180
  %1205 = vmatpush.msra.mxu0 %v1179
  %1206 = vmatpush.msra.mxu0 %v1178
  %1207 = vmatpush.msra.mxu0 %v1177
  %1208 = vmatmul.f32.gmra.mxu0 %v1190
  %v1209 = vpop.f32.mrf.mxu0
  %v1210 = vadd.f32 %v1169, %v1209
  %1211 = vdwg.mxu0
  %v1212 = vxor.u32 %v1210, 2147483648
  %v1213 = vmul.f32 %v1212, 1.442695
  %v1214 = vpow.pop %v1213
  %v1215 = vadd.f32 %v1214, 1.0
  %v1216 = vrcp.pop %v1215
  %v1217 = vmul.f32 %v1215, %v1216
  %v1218 = vsub.f32 1.0, %v1217
  %v1219 = vmul.f32 %v1216, %v1218
  %v1220 = vadd.f32 %v1216, %v1219
  %vm1221 = vweird.f32 %v1215
  %vm1222 = vweird.f32 %v1216
  %vm1223 = vmor %vm1221, %vm1222
  %v1224 = vsel %vm1223, %v1216, %v1220
  %v1225 = vand.u32 2147483647, %v1215
  %vm1226 = vcmp.eq.f32.partialorder %v1225, 8.507059e+37
  %v1227 = vand.u32 %v1215, 2147483648
  %v1228 = vor.u32 1.1754944e-38, %v1227
  %v1229 = vsel %vm1226, %v1228, %v1224
  %v1230 = vmul.f32 1.0, %v1229
  %v1231 = vtanh.pop %v1210
  %1233 = vrot.lane.b32.xlu0 %v1147, 32
  %v1234 = vpop.permute.xlu0 %1233
  %v1236 = vmul.f32 %v1230, %v1234
  %1238 = vrot.lane.b32.xlu0 %v1231, 64
  %v1239 = vpop.permute.xlu0 %1238
  %v1241 = vmul.f32 %v1230, %v1239
  %1243 = vrot.lane.b32.xlu0 %v1241, 32
  %v1244 = vpop.permute.xlu0 %1243
  %v1246 = vadd.f32 %v1236, %v1244
  %v1247 = vtanh.pop %v1246
  %1249 = vrot.lane.b32.xlu0 %v1247, 64
  %v1250 = vpop.permute.xlu0 %1249
  %v1252 = vmul.f32 %v1230, %v1250
  %v1253 = vld [vmem:[%s14] sm:$0xff]
  %v1254 = vld [vmem:[%s14 + $0x8] sm:$0xff]
  %v1255 = vld [vmem:[%s14 + $0x10] sm:$0xff]
  %v1256 = vld [vmem:[%s14 + $0x18] sm:$0xff]
  %1258 = vrot.lane.b32.xlu0 %v1252, 32
  %v1259 = vpop.permute.xlu0 %1258
  %v1260 = vsel %vm181, %v1259, 0
  %1262 = vmatpush.msra.mxu0 0.0
  %1263 = vmatpush.msra.mxu0 0.0
  %1264 = vmatpush.msra.mxu0 0.0
  %1265 = vmatpush.msra.mxu0 0.0
  %1266 = vmatpush.msra.mxu0 0.0
  %1267 = vmatpush.msra.mxu0 0.0
  %1268 = vmatpush.msra.mxu0 0.0
  %1269 = vmatpush.msra.mxu0 0.0
  %1270 = vmatpush.msra.mxu0 0.0
  %1271 = vmatpush.msra.mxu0 0.0
  %1272 = vmatpush.msra.mxu0 0.0
  %1273 = vmatpush.msra.mxu0 0.0
  %1274 = vmatpush.msra.mxu0 %v1256
  %1275 = vmatpush.msra.mxu0 %v1255
  %1276 = vmatpush.msra.mxu0 %v1254
  %1277 = vmatpush.msra.mxu0 %v1253
  %1278 = vmatmul.f32.gmra.mxu0 %v1260
  %v1279 = vpop.f32.mrf.mxu0
  %v1280 = vadd.f32 0.0, %v1279
  %1281 = vdwg.mxu0
  %v1282 = vmul.f32 %v1149, %v1280
  %v1283 = vmul.f32 %v1150, %v1280
  %v1284 = vmul.f32 %v1151, %v1280
  %v1285 = vmul.f32 %v1152, %v1280
  %v1286 = vmul.f32 %v1153, %v1280
  %v1287 = vmul.f32 %v1154, %v1280
  %v1288 = vmul.f32 %v1155, %v1280
  %v1289 = vmul.f32 %v1156, %v1280
  %v1290 = vsel %vm283, %v1282, 0.0
  %1291 = vadd.xlane.f32.xlu0 %v1290
  %v1292 = vpop.xlane.xlu0 %1291
  %v1293 = vsel %vm283, %v1283, 0.0
  %1294 = vadd.xlane.f32.xlu0 %v1293
  %v1295 = vpop.xlane.xlu0 %1294
  %v1296 = vsel %vm283, %v1284, 0.0
  %1297 = vadd.xlane.f32.xlu0 %v1296
  %v1298 = vpop.xlane.xlu0 %1297
  %v1299 = vsel %vm283, %v1285, 0.0
  %1300 = vadd.xlane.f32.xlu0 %v1299
  %v1301 = vpop.xlane.xlu0 %1300
  %v1302 = vsel %vm283, %v1286, 0.0
  %1303 = vadd.xlane.f32.xlu0 %v1302
  %v1304 = vpop.xlane.xlu0 %1303
  %v1305 = vsel %vm283, %v1287, 0.0
  %1306 = vadd.xlane.f32.xlu0 %v1305
  %v1307 = vpop.xlane.xlu0 %1306
  %v1308 = vsel %vm283, %v1288, 0.0
  %1309 = vadd.xlane.f32.xlu0 %v1308
  %v1310 = vpop.xlane.xlu0 %1309
  %v1311 = vsel %vm283, %v1289, 0.0
  %1312 = vadd.xlane.f32.xlu0 %v1311
  %v1313 = vpop.xlane.xlu0 %1312
  %1315 = vrot.lane.b32.xlu0 %v1280, 96
  %v1316 = vpop.permute.xlu0 %1315
  %v1318 = vmul.f32 %v1157, %v1316
  %v1319 = vmul.f32 %v1158, %v1316
  %v1320 = vmul.f32 %v1159, %v1316
  %v1321 = vmul.f32 %v1160, %v1316
  %v1322 = vmul.f32 %v1161, %v1316
  %v1323 = vmul.f32 %v1162, %v1316
  %v1324 = vmul.f32 %v1163, %v1316
  %v1325 = vmul.f32 %v1164, %v1316
  %v1326 = vsel %vm283, %v1318, 0.0
  %1327 = vadd.xlane.f32.xlu0 %v1326
  %v1328 = vpop.xlane.xlu0 %1327
  %v1329 = vsel %vm283, %v1319, 0.0
  %1330 = vadd.xlane.f32.xlu0 %v1329
  %v1331 = vpop.xlane.xlu0 %1330
  %v1332 = vsel %vm283, %v1320, 0.0
  %1333 = vadd.xlane.f32.xlu0 %v1332
  %v1334 = vpop.xlane.xlu0 %1333
  %v1335 = vsel %vm283, %v1321, 0.0
  %1336 = vadd.xlane.f32.xlu0 %v1335
  %v1337 = vpop.xlane.xlu0 %1336
  %v1338 = vsel %vm283, %v1322, 0.0
  %1339 = vadd.xlane.f32.xlu0 %v1338
  %v1340 = vpop.xlane.xlu0 %1339
  %v1341 = vsel %vm283, %v1323, 0.0
  %1342 = vadd.xlane.f32.xlu0 %v1341
  %v1343 = vpop.xlane.xlu0 %1342
  %v1344 = vsel %vm283, %v1324, 0.0
  %1345 = vadd.xlane.f32.xlu0 %v1344
  %v1346 = vpop.xlane.xlu0 %1345
  %v1347 = vsel %vm283, %v1325, 0.0
  %1348 = vadd.xlane.f32.xlu0 %v1347
  %v1349 = vpop.xlane.xlu0 %1348
  %v1350 = vadd.f32 %v1292, %v1328
  %v1351 = vadd.f32 %v1295, %v1331
  %v1352 = vadd.f32 %v1298, %v1334
  %v1353 = vadd.f32 %v1301, %v1337
  %v1354 = vadd.f32 %v1304, %v1340
  %v1355 = vadd.f32 %v1307, %v1343
  %v1356 = vadd.f32 %v1310, %v1346
  %v1357 = vadd.f32 %v1313, %v1349
  %v1366 = vperm.slane %v1350, %v59
  %v1367 = vperm.slane %v1351, %v59
  %v1368 = vperm.slane %v1352, %v59
  %v1369 = vperm.slane %v1353, %v59
  %v1370 = vperm.slane %v1354, %v59
  %v1371 = vperm.slane %v1355, %v59
  %v1372 = vperm.slane %v1356, %v59
  %v1373 = vperm.slane %v1357, %v59
  %vm1374 = vcmask 1041409
  %v1375 = vsel %vm1374, %v1367, %v1366
  %vm1376 = vcmask 1042434
  %v1377 = vsel %vm1376, %v1368, %v1375
  %vm1378 = vcmask 1043459
  %v1379 = vsel %vm1378, %v1369, %v1377
  %vm1380 = vcmask 1044484
  %v1381 = vsel %vm1380, %v1370, %v1379
  %vm1382 = vcmask 1045509
  %v1383 = vsel %vm1382, %v1371, %v1381
  %vm1384 = vcmask 1046534
  %v1385 = vsel %vm1384, %v1372, %v1383
  %vm1386 = vcmask 1047559
  %v1387 = vsel %vm1386, %v1373, %v1385
  %v1389 = vsel %vm1166, -1e+30, %v1387
  %vm1390 = vcmask 15360
  %v1391 = vsel %vm1390, %v1389, -inf
  %v1392 = vrot.slane %v1391, 4
  %v1393 = vmax.f32 %v1391, %v1392
  %v1394 = vrot.slane %v1393, 2
  %v1395 = vmax.f32 %v1393, %v1394
  %v1396 = vrot.slane %v1395, 1
  %v1397 = vmax.f32 %v1395, %v1396
  %v1398 = vsub.f32 %v1389, %v1397
  %v1399 = vmul.f32 %v1398, 1.442695
  %v1400 = vpow.pop %v1399
  %v1401 = vsel %vm1390, %v1400, 0.0
  %v1402 = vrot.slane %v1401, 4
  %v1403 = vadd.f32 %v1401, %v1402
  %v1404 = vrot.slane %v1403, 2
  %v1405 = vadd.f32 %v1403, %v1404
  %v1406 = vrot.slane %v1405, 1
  %v1407 = vadd.f32 %v1405, %v1406
  %v1408 = vrcp.pop %v1407
  %v1409 = vmul.f32 %v1407, %v1408
  %v1410 = vsub.f32 1.0, %v1409
  %v1411 = vmul.f32 %v1408, %v1410
  %v1412 = vadd.f32 %v1408, %v1411
  %vm1413 = vweird.f32 %v1407
  %vm1414 = vweird.f32 %v1408
  %vm1415 = vmor %vm1413, %vm1414
  %v1416 = vsel %vm1415, %v1408, %v1412
  %v1417 = vand.u32 2147483647, %v1407
  %vm1418 = vcmp.eq.f32.partialorder %v1417, 8.507059e+37
  %v1419 = vand.u32 %v1407, 2147483648
  %v1420 = vor.u32 1.1754944e-38, %v1419
  %v1421 = vsel %vm1418, %v1420, %v1416
  %v1422 = vmul.f32 %v1400, %v1421
  %v1423 = vperm.slane %v1422, 0
  %v1424 = vlaneseq
  %v1425 = vshrl.u32 %v1424, 7
  %1427 = vset.pattern.permute.xlu0 %v1425
  %1428 = vperm.xlu0 %1427, %v1423
  %v1429 = vpop.permute.xlu0 %1428
  %v1430 = vperm.slane %v1422, 1
  %v1431 = vlaneseq
  %v1432 = vshrl.u32 %v1431, 7
  %1434 = vset.pattern.permute.xlu0 %v1432
  %1435 = vperm.xlu0 %1434, %v1430
  %v1436 = vpop.permute.xlu0 %1435
  %v1437 = vperm.slane %v1422, 2
  %v1438 = vlaneseq
  %v1439 = vshrl.u32 %v1438, 7
  %1441 = vset.pattern.permute.xlu0 %v1439
  %1442 = vperm.xlu0 %1441, %v1437
  %v1443 = vpop.permute.xlu0 %1442
  %v1444 = vperm.slane %v1422, 3
  %v1445 = vlaneseq
  %v1446 = vshrl.u32 %v1445, 7
  %1448 = vset.pattern.permute.xlu0 %v1446
  %1449 = vperm.xlu0 %1448, %v1444
  %v1450 = vpop.permute.xlu0 %1449
  %v1451 = vperm.slane %v1422, 4
  %v1452 = vlaneseq
  %v1453 = vshrl.u32 %v1452, 7
  %1455 = vset.pattern.permute.xlu0 %v1453
  %1456 = vperm.xlu0 %1455, %v1451
  %v1457 = vpop.permute.xlu0 %1456
  %v1458 = vperm.slane %v1422, 5
  %v1459 = vlaneseq
  %v1460 = vshrl.u32 %v1459, 7
  %1462 = vset.pattern.permute.xlu0 %v1460
  %1463 = vperm.xlu0 %1462, %v1458
  %v1464 = vpop.permute.xlu0 %1463
  %v1465 = vperm.slane %v1422, 6
  %v1466 = vlaneseq
  %v1467 = vshrl.u32 %v1466, 7
  %1469 = vset.pattern.permute.xlu0 %v1467
  %1470 = vperm.xlu0 %1469, %v1465
  %v1471 = vpop.permute.xlu0 %1470
  %v1472 = vperm.slane %v1422, 7
  %v1473 = vlaneseq
  %v1474 = vshrl.u32 %v1473, 7
  %1476 = vset.pattern.permute.xlu0 %v1474
  %1477 = vperm.xlu0 %1476, %v1472
  %v1478 = vpop.permute.xlu0 %1477
  %v1479 = vmul.f32 %v1429, %v1149
  %v1480 = vmul.f32 %v1436, %v1150
  %v1481 = vmul.f32 %v1443, %v1151
  %v1482 = vmul.f32 %v1450, %v1152
  %v1483 = vmul.f32 %v1457, %v1153
  %v1484 = vmul.f32 %v1464, %v1154
  %v1485 = vmul.f32 %v1471, %v1155
  %v1486 = vmul.f32 %v1478, %v1156
  %v1487 = vsel %vm283, %v1479, 0.0
  %v1488 = vsel %vm283, %v1480, 0.0
  %v1489 = vadd.f32 %v1487, %v1488
  %v1490 = vsel %vm283, %v1481, 0.0
  %v1491 = vadd.f32 %v1489, %v1490
  %v1492 = vsel %vm283, %v1482, 0.0
  %v1493 = vadd.f32 %v1491, %v1492
  %v1494 = vsel %vm283, %v1483, 0.0
  %v1495 = vadd.f32 %v1493, %v1494
  %v1496 = vsel %vm283, %v1484, 0.0
  %v1497 = vadd.f32 %v1495, %v1496
  %v1498 = vsel %vm283, %v1485, 0.0
  %v1499 = vadd.f32 %v1497, %v1498
  %v1500 = vsel %vm283, %v1486, 0.0
  %v1501 = vadd.f32 %v1499, %v1500
  %v1502 = vmul.f32 %v1429, %v1157
  %v1503 = vmul.f32 %v1436, %v1158
  %v1504 = vmul.f32 %v1443, %v1159
  %v1505 = vmul.f32 %v1450, %v1160
  %v1506 = vmul.f32 %v1457, %v1161
  %v1507 = vmul.f32 %v1464, %v1162
  %v1508 = vmul.f32 %v1471, %v1163
  %v1509 = vmul.f32 %v1478, %v1164
  %v1510 = vsel %vm283, %v1502, 0.0
  %v1511 = vsel %vm283, %v1503, 0.0
  %v1512 = vadd.f32 %v1510, %v1511
  %v1513 = vsel %vm283, %v1504, 0.0
  %v1514 = vadd.f32 %v1512, %v1513
  %v1515 = vsel %vm283, %v1505, 0.0
  %v1516 = vadd.f32 %v1514, %v1515
  %v1517 = vsel %vm283, %v1506, 0.0
  %v1518 = vadd.f32 %v1516, %v1517
  %v1519 = vsel %vm283, %v1507, 0.0
  %v1520 = vadd.f32 %v1518, %v1519
  %v1521 = vsel %vm283, %v1508, 0.0
  %v1522 = vadd.f32 %v1520, %v1521
  %v1523 = vsel %vm283, %v1509, 0.0
  %v1524 = vadd.f32 %v1522, %v1523
  %1526 = vrot.lane.b32.xlu0 %v1524, 32
  %v1527 = vpop.permute.xlu0 %1526
  %1529 = vrot.lane.b32.xlu0 %v1252, 96
  %v1530 = vpop.permute.xlu0 %1529
  %v1532 = vsel %vm181, %v1501, %v1527
  %v1533 = vsel %vm183, %v1532, %v1530
  %v1534 = vld [vmem:[%s15] sm:$0xff]
  %v1535 = vld [vmem:[%s15 + $0x8] sm:$0xff]
  %v1536 = vld [vmem:[%s15 + $0x10] sm:$0xff]
  %v1537 = vld [vmem:[%s15 + $0x18] sm:$0xff]
  %v1538 = vld [vmem:[%s15 + $0x20] sm:$0xff]
  %v1539 = vld [vmem:[%s15 + $0x28] sm:$0xff]
  %v1540 = vld [vmem:[%s15 + $0x30] sm:$0xff]
  %v1541 = vld [vmem:[%s15 + $0x38] sm:$0xff]
  %v1542 = vld [vmem:[%s15 + $0x40] sm:$0xff]
  %v1543 = vld [vmem:[%s15 + $0x48] sm:$0xff]
  %v1544 = vld [vmem:[%s15 + $0x50] sm:$0xff]
  %v1545 = vld [vmem:[%s15 + $0x58] sm:$0xff]
  %v1547 = vsel %vm191, %v1533, 0
  %1549 = vmatpush.msra.mxu0 0.0
  %1550 = vmatpush.msra.mxu0 0.0
  %1551 = vmatpush.msra.mxu0 0.0
  %1552 = vmatpush.msra.mxu0 0.0
  %1553 = vmatpush.msra.mxu0 %v1545
  %1554 = vmatpush.msra.mxu0 %v1544
  %1555 = vmatpush.msra.mxu0 %v1543
  %1556 = vmatpush.msra.mxu0 %v1542
  %1557 = vmatpush.msra.mxu0 %v1541
  %1558 = vmatpush.msra.mxu0 %v1540
  %1559 = vmatpush.msra.mxu0 %v1539
  %1560 = vmatpush.msra.mxu0 %v1538
  %1561 = vmatpush.msra.mxu0 %v1537
  %1562 = vmatpush.msra.mxu0 %v1536
  %1563 = vmatpush.msra.mxu0 %v1535
  %1564 = vmatpush.msra.mxu0 %v1534
  %1565 = vmatmul.f32.gmra.mxu0 %v1547
  %v1566 = vpop.f32.mrf.mxu0
  %v1567 = vadd.f32 0.0, %v1566
  %1568 = vdwg.mxu0
  %v1569 = vtanh.pop %v1567
  %v1571 = vrot.slane %v1569, 6
  %1572 = vrot.lane.b32.xlu0 %v1571, 32
  %v1573 = vpop.permute.xlu0 %1572
  %v1575 = vrot.slane %v1252, 6
  %1576 = vrot.lane.b32.xlu0 %v1575, 96
  %v1577 = vpop.permute.xlu0 %1576
  %v1579 = vsel %vm181, %v161, %v1573
  %v1580 = vsel %vm183, %v1579, %v1577
  %v1582 = vrot.slane %v1580, 2
  %v1583 = vsel %vm191, %v1582, 0
  %1585 = vmatpush.msra.mxu0 0.0
  %1586 = vmatpush.msra.mxu0 0.0
  %1587 = vmatpush.msra.mxu0 0.0
  %1588 = vmatpush.msra.mxu0 0.0
  %1589 = vmatpush.msra.mxu0 %v1188
  %1590 = vmatpush.msra.mxu0 %v1187
  %1591 = vmatpush.msra.mxu0 %v1186
  %1592 = vmatpush.msra.mxu0 %v1185
  %1593 = vmatpush.msra.mxu0 %v1184
  %1594 = vmatpush.msra.mxu0 %v1183
  %1595 = vmatpush.msra.mxu0 %v1182
  %1596 = vmatpush.msra.mxu0 %v1181
  %1597 = vmatpush.msra.mxu0 %v1180
  %1598 = vmatpush.msra.mxu0 %v1179
  %1599 = vmatpush.msra.mxu0 %v1178
  %1600 = vmatpush.msra.mxu0 %v1177
  %1601 = vmatmul.f32.gmra.mxu0 %v1583
  %v1602 = vpop.f32.mrf.mxu0
  %v1603 = vadd.f32 %v1169, %v1602
  %1604 = vdwg.mxu0
  %v1605 = vxor.u32 %v1603, 2147483648
  %v1606 = vmul.f32 %v1605, 1.442695
  %v1607 = vpow.pop %v1606
  %v1608 = vadd.f32 %v1607, 1.0
  %v1609 = vrcp.pop %v1608
  %v1610 = vmul.f32 %v1608, %v1609
  %v1611 = vsub.f32 1.0, %v1610
  %v1612 = vmul.f32 %v1609, %v1611
  %v1613 = vadd.f32 %v1609, %v1612
  %vm1614 = vweird.f32 %v1608
  %vm1615 = vweird.f32 %v1609
  %vm1616 = vmor %vm1614, %vm1615
  %v1617 = vsel %vm1616, %v1609, %v1613
  %v1618 = vand.u32 2147483647, %v1608
  %vm1619 = vcmp.eq.f32.partialorder %v1618, 8.507059e+37
  %v1620 = vand.u32 %v1608, 2147483648
  %v1621 = vor.u32 1.1754944e-38, %v1620
  %v1622 = vsel %vm1619, %v1621, %v1617
  %v1623 = vmul.f32 1.0, %v1622
  %v1624 = vtanh.pop %v1603
  %v1625 = vmul.f32 %v1623, %v1246
  %1627 = vrot.lane.b32.xlu0 %v1624, 64
  %v1628 = vpop.permute.xlu0 %1627
  %v1630 = vmul.f32 %v1623, %v1628
  %1632 = vrot.lane.b32.xlu0 %v1630, 32
  %v1633 = vpop.permute.xlu0 %1632
  %v1635 = vadd.f32 %v1625, %v1633
  %v1636 = vtanh.pop %v1635
  %1638 = vrot.lane.b32.xlu0 %v1636, 64
  %v1639 = vpop.permute.xlu0 %1638
  %v1641 = vmul.f32 %v1623, %v1639
  %1643 = vrot.lane.b32.xlu0 %v1641, 32
  %v1644 = vpop.permute.xlu0 %1643
  %v1645 = vsel %vm181, %v1644, 0
  %1647 = vmatpush.msra.mxu0 0.0
  %1648 = vmatpush.msra.mxu0 0.0
  %1649 = vmatpush.msra.mxu0 0.0
  %1650 = vmatpush.msra.mxu0 0.0
  %1651 = vmatpush.msra.mxu0 0.0
  %1652 = vmatpush.msra.mxu0 0.0
  %1653 = vmatpush.msra.mxu0 0.0
  %1654 = vmatpush.msra.mxu0 0.0
  %1655 = vmatpush.msra.mxu0 0.0
  %1656 = vmatpush.msra.mxu0 0.0
  %1657 = vmatpush.msra.mxu0 0.0
  %1658 = vmatpush.msra.mxu0 0.0
  %1659 = vmatpush.msra.mxu0 %v1256
  %1660 = vmatpush.msra.mxu0 %v1255
  %1661 = vmatpush.msra.mxu0 %v1254
  %1662 = vmatpush.msra.mxu0 %v1253
  %1663 = vmatmul.f32.gmra.mxu0 %v1645
  %v1664 = vpop.f32.mrf.mxu0
  %v1665 = vadd.f32 0.0, %v1664
  %1666 = vdwg.mxu0
  %v1667 = vmul.f32 %v1149, %v1665
  %v1668 = vmul.f32 %v1150, %v1665
  %v1669 = vmul.f32 %v1151, %v1665
  %v1670 = vmul.f32 %v1152, %v1665
  %v1671 = vmul.f32 %v1153, %v1665
  %v1672 = vmul.f32 %v1154, %v1665
  %v1673 = vmul.f32 %v1155, %v1665
  %v1674 = vmul.f32 %v1156, %v1665
  %v1675 = vsel %vm283, %v1667, 0.0
  %1676 = vadd.xlane.f32.xlu0 %v1675
  %v1677 = vpop.xlane.xlu0 %1676
  %v1678 = vsel %vm283, %v1668, 0.0
  %1679 = vadd.xlane.f32.xlu0 %v1678
  %v1680 = vpop.xlane.xlu0 %1679
  %v1681 = vsel %vm283, %v1669, 0.0
  %1682 = vadd.xlane.f32.xlu0 %v1681
  %v1683 = vpop.xlane.xlu0 %1682
  %v1684 = vsel %vm283, %v1670, 0.0
  %1685 = vadd.xlane.f32.xlu0 %v1684
  %v1686 = vpop.xlane.xlu0 %1685
  %v1687 = vsel %vm283, %v1671, 0.0
  %1688 = vadd.xlane.f32.xlu0 %v1687
  %v1689 = vpop.xlane.xlu0 %1688
  %v1690 = vsel %vm283, %v1672, 0.0
  %1691 = vadd.xlane.f32.xlu0 %v1690
  %v1692 = vpop.xlane.xlu0 %1691
  %v1693 = vsel %vm283, %v1673, 0.0
  %1694 = vadd.xlane.f32.xlu0 %v1693
  %v1695 = vpop.xlane.xlu0 %1694
  %v1696 = vsel %vm283, %v1674, 0.0
  %1697 = vadd.xlane.f32.xlu0 %v1696
  %v1698 = vpop.xlane.xlu0 %1697
  %1700 = vrot.lane.b32.xlu0 %v1665, 96
  %v1701 = vpop.permute.xlu0 %1700
  %v1703 = vmul.f32 %v1157, %v1701
  %v1704 = vmul.f32 %v1158, %v1701
  %v1705 = vmul.f32 %v1159, %v1701
  %v1706 = vmul.f32 %v1160, %v1701
  %v1707 = vmul.f32 %v1161, %v1701
  %v1708 = vmul.f32 %v1162, %v1701
  %v1709 = vmul.f32 %v1163, %v1701
  %v1710 = vmul.f32 %v1164, %v1701
  %v1711 = vsel %vm283, %v1703, 0.0
  %1712 = vadd.xlane.f32.xlu0 %v1711
  %v1713 = vpop.xlane.xlu0 %1712
  %v1714 = vsel %vm283, %v1704, 0.0
  %1715 = vadd.xlane.f32.xlu0 %v1714
  %v1716 = vpop.xlane.xlu0 %1715
  %v1717 = vsel %vm283, %v1705, 0.0
  %1718 = vadd.xlane.f32.xlu0 %v1717
  %v1719 = vpop.xlane.xlu0 %1718
  %v1720 = vsel %vm283, %v1706, 0.0
  %1721 = vadd.xlane.f32.xlu0 %v1720
  %v1722 = vpop.xlane.xlu0 %1721
  %v1723 = vsel %vm283, %v1707, 0.0
  %1724 = vadd.xlane.f32.xlu0 %v1723
  %v1725 = vpop.xlane.xlu0 %1724
  %v1726 = vsel %vm283, %v1708, 0.0
  %1727 = vadd.xlane.f32.xlu0 %v1726
  %v1728 = vpop.xlane.xlu0 %1727
  %v1729 = vsel %vm283, %v1709, 0.0
  %1730 = vadd.xlane.f32.xlu0 %v1729
  %v1731 = vpop.xlane.xlu0 %1730
  %v1732 = vsel %vm283, %v1710, 0.0
  %1733 = vadd.xlane.f32.xlu0 %v1732
  %v1734 = vpop.xlane.xlu0 %1733
  %v1735 = vadd.f32 %v1677, %v1713
  %v1736 = vadd.f32 %v1680, %v1716
  %v1737 = vadd.f32 %v1683, %v1719
  %v1738 = vadd.f32 %v1686, %v1722
  %v1739 = vadd.f32 %v1689, %v1725
  %v1740 = vadd.f32 %v1692, %v1728
  %v1741 = vadd.f32 %v1695, %v1731
  %v1742 = vadd.f32 %v1698, %v1734
  %v1751 = vperm.slane %v1735, %v59
  %v1752 = vperm.slane %v1736, %v59
  %v1753 = vperm.slane %v1737, %v59
  %v1754 = vperm.slane %v1738, %v59
  %v1755 = vperm.slane %v1739, %v59
  %v1756 = vperm.slane %v1740, %v59
  %v1757 = vperm.slane %v1741, %v59
  %v1758 = vperm.slane %v1742, %v59
  %v1759 = vsel %vm1374, %v1752, %v1751
  %v1760 = vsel %vm1376, %v1753, %v1759
  %v1761 = vsel %vm1378, %v1754, %v1760
  %v1762 = vsel %vm1380, %v1755, %v1761
  %v1763 = vsel %vm1382, %v1756, %v1762
  %v1764 = vsel %vm1384, %v1757, %v1763
  %v1765 = vsel %vm1386, %v1758, %v1764
  %v1767 = vsel %vm1166, -1e+30, %v1765
  %v1768 = vsel %vm1390, %v1767, -inf
  %v1769 = vrot.slane %v1768, 4
  %v1770 = vmax.f32 %v1768, %v1769
  %v1771 = vrot.slane %v1770, 2
  %v1772 = vmax.f32 %v1770, %v1771
  %v1773 = vrot.slane %v1772, 1
  %v1774 = vmax.f32 %v1772, %v1773
  %v1775 = vsub.f32 %v1767, %v1774
  %v1776 = vmul.f32 %v1775, 1.442695
  %v1777 = vpow.pop %v1776
  %v1778 = vsel %vm1390, %v1777, 0.0
  %v1779 = vrot.slane %v1778, 4
  %v1780 = vadd.f32 %v1778, %v1779
  %v1781 = vrot.slane %v1780, 2
  %v1782 = vadd.f32 %v1780, %v1781
  %v1783 = vrot.slane %v1782, 1
  %v1784 = vadd.f32 %v1782, %v1783
  %v1785 = vrcp.pop %v1784
  %v1786 = vmul.f32 %v1784, %v1785
  %v1787 = vsub.f32 1.0, %v1786
  %v1788 = vmul.f32 %v1785, %v1787
  %v1789 = vadd.f32 %v1785, %v1788
  %vm1790 = vweird.f32 %v1784
  %vm1791 = vweird.f32 %v1785
  %vm1792 = vmor %vm1790, %vm1791
  %v1793 = vsel %vm1792, %v1785, %v1789
  %v1794 = vand.u32 2147483647, %v1784
  %vm1795 = vcmp.eq.f32.partialorder %v1794, 8.507059e+37
  %v1796 = vand.u32 %v1784, 2147483648
  %v1797 = vor.u32 1.1754944e-38, %v1796
  %v1798 = vsel %vm1795, %v1797, %v1793
  %v1799 = vmul.f32 %v1777, %v1798
  %v1800 = vperm.slane %v1799, 0
  %v1801 = vlaneseq
  %v1802 = vshrl.u32 %v1801, 7
  %1804 = vset.pattern.permute.xlu0 %v1802
  %1805 = vperm.xlu0 %1804, %v1800
  %v1806 = vpop.permute.xlu0 %1805
  %v1807 = vperm.slane %v1799, 1
  %v1808 = vlaneseq
  %v1809 = vshrl.u32 %v1808, 7
  %1811 = vset.pattern.permute.xlu0 %v1809
  %1812 = vperm.xlu0 %1811, %v1807
  %v1813 = vpop.permute.xlu0 %1812
  %v1814 = vperm.slane %v1799, 2
  %v1815 = vlaneseq
  %v1816 = vshrl.u32 %v1815, 7
  %1818 = vset.pattern.permute.xlu0 %v1816
  %1819 = vperm.xlu0 %1818, %v1814
  %v1820 = vpop.permute.xlu0 %1819
  %v1821 = vperm.slane %v1799, 3
  %v1822 = vlaneseq
  %v1823 = vshrl.u32 %v1822, 7
  %1825 = vset.pattern.permute.xlu0 %v1823
  %1826 = vperm.xlu0 %1825, %v1821
  %v1827 = vpop.permute.xlu0 %1826
  %v1828 = vperm.slane %v1799, 4
  %v1829 = vlaneseq
  %v1830 = vshrl.u32 %v1829, 7
  %1832 = vset.pattern.permute.xlu0 %v1830
  %1833 = vperm.xlu0 %1832, %v1828
  %v1834 = vpop.permute.xlu0 %1833
  %v1835 = vperm.slane %v1799, 5
  %v1836 = vlaneseq
  %v1837 = vshrl.u32 %v1836, 7
  %1839 = vset.pattern.permute.xlu0 %v1837
  %1840 = vperm.xlu0 %1839, %v1835
  %v1841 = vpop.permute.xlu0 %1840
  %v1842 = vperm.slane %v1799, 6
  %v1843 = vlaneseq
  %v1844 = vshrl.u32 %v1843, 7
  %1846 = vset.pattern.permute.xlu0 %v1844
  %1847 = vperm.xlu0 %1846, %v1842
  %v1848 = vpop.permute.xlu0 %1847
  %v1849 = vperm.slane %v1799, 7
  %v1850 = vlaneseq
  %v1851 = vshrl.u32 %v1850, 7
  %1853 = vset.pattern.permute.xlu0 %v1851
  %1854 = vperm.xlu0 %1853, %v1849
  %v1855 = vpop.permute.xlu0 %1854
  %v1856 = vmul.f32 %v1806, %v1149
  %v1857 = vmul.f32 %v1813, %v1150
  %v1858 = vmul.f32 %v1820, %v1151
  %v1859 = vmul.f32 %v1827, %v1152
  %v1860 = vmul.f32 %v1834, %v1153
  %v1861 = vmul.f32 %v1841, %v1154
  %v1862 = vmul.f32 %v1848, %v1155
  %v1863 = vmul.f32 %v1855, %v1156
  %v1864 = vsel %vm283, %v1856, 0.0
  %v1865 = vsel %vm283, %v1857, 0.0
  %v1866 = vadd.f32 %v1864, %v1865
  %v1867 = vsel %vm283, %v1858, 0.0
  %v1868 = vadd.f32 %v1866, %v1867
  %v1869 = vsel %vm283, %v1859, 0.0
  %v1870 = vadd.f32 %v1868, %v1869
  %v1871 = vsel %vm283, %v1860, 0.0
  %v1872 = vadd.f32 %v1870, %v1871
  %v1873 = vsel %vm283, %v1861, 0.0
  %v1874 = vadd.f32 %v1872, %v1873
  %v1875 = vsel %vm283, %v1862, 0.0
  %v1876 = vadd.f32 %v1874, %v1875
  %v1877 = vsel %vm283, %v1863, 0.0
  %v1878 = vadd.f32 %v1876, %v1877
  %v1879 = vmul.f32 %v1806, %v1157
  %v1880 = vmul.f32 %v1813, %v1158
  %v1881 = vmul.f32 %v1820, %v1159
  %v1882 = vmul.f32 %v1827, %v1160
  %v1883 = vmul.f32 %v1834, %v1161
  %v1884 = vmul.f32 %v1841, %v1162
  %v1885 = vmul.f32 %v1848, %v1163
  %v1886 = vmul.f32 %v1855, %v1164
  %v1887 = vsel %vm283, %v1879, 0.0
  %v1888 = vsel %vm283, %v1880, 0.0
  %v1889 = vadd.f32 %v1887, %v1888
  %v1890 = vsel %vm283, %v1881, 0.0
  %v1891 = vadd.f32 %v1889, %v1890
  %v1892 = vsel %vm283, %v1882, 0.0
  %v1893 = vadd.f32 %v1891, %v1892
  %v1894 = vsel %vm283, %v1883, 0.0
  %v1895 = vadd.f32 %v1893, %v1894
  %v1896 = vsel %vm283, %v1884, 0.0
  %v1897 = vadd.f32 %v1895, %v1896
  %v1898 = vsel %vm283, %v1885, 0.0
  %v1899 = vadd.f32 %v1897, %v1898
  %v1900 = vsel %vm283, %v1886, 0.0
  %v1901 = vadd.f32 %v1899, %v1900
  %1903 = vrot.lane.b32.xlu0 %v1901, 32
  %v1904 = vpop.permute.xlu0 %1903
  %1906 = vrot.lane.b32.xlu0 %v1641, 96
  %v1907 = vpop.permute.xlu0 %1906
  %v1909 = vsel %vm181, %v1878, %v1904
  %v1910 = vsel %vm183, %v1909, %v1907
  %v1912 = vsel %vm191, %v1910, 0
  %1914 = vmatpush.msra.mxu0 0.0
  %1915 = vmatpush.msra.mxu0 0.0
  %1916 = vmatpush.msra.mxu0 0.0
  %1917 = vmatpush.msra.mxu0 0.0
  %1918 = vmatpush.msra.mxu0 %v1545
  %1919 = vmatpush.msra.mxu0 %v1544
  %1920 = vmatpush.msra.mxu0 %v1543
  %1921 = vmatpush.msra.mxu0 %v1542
  %1922 = vmatpush.msra.mxu0 %v1541
  %1923 = vmatpush.msra.mxu0 %v1540
  %1924 = vmatpush.msra.mxu0 %v1539
  %1925 = vmatpush.msra.mxu0 %v1538
  %1926 = vmatpush.msra.mxu0 %v1537
  %1927 = vmatpush.msra.mxu0 %v1536
  %1928 = vmatpush.msra.mxu0 %v1535
  %1929 = vmatpush.msra.mxu0 %v1534
  %1930 = vmatmul.f32.gmra.mxu0 %v1912
  %v1931 = vpop.f32.mrf.mxu0
  %v1932 = vadd.f32 0.0, %v1931
  %1933 = vdwg.mxu0
  %v1934 = vtanh.pop %v1932
  %v1936 = vrot.slane %v1934, 4
  %1937 = vrot.lane.b32.xlu0 %v1936, 32
  %v1938 = vpop.permute.xlu0 %1937
  %v1940 = vrot.slane %v1641, 4
  %1941 = vrot.lane.b32.xlu0 %v1940, 96
  %v1942 = vpop.permute.xlu0 %1941
  %v1944 = vsel %vm181, %v161, %v1938
  %v1945 = vsel %vm183, %v1944, %v1942
  %v1947 = vrot.slane %v1945, 4
  %v1948 = vsel %vm191, %v1947, 0
  %1950 = vmatpush.msra.mxu0 0.0
  %1951 = vmatpush.msra.mxu0 0.0
  %1952 = vmatpush.msra.mxu0 0.0
  %1953 = vmatpush.msra.mxu0 0.0
  %1954 = vmatpush.msra.mxu0 %v1188
  %1955 = vmatpush.msra.mxu0 %v1187
  %1956 = vmatpush.msra.mxu0 %v1186
  %1957 = vmatpush.msra.mxu0 %v1185
  %1958 = vmatpush.msra.mxu0 %v1184
  %1959 = vmatpush.msra.mxu0 %v1183
  %1960 = vmatpush.msra.mxu0 %v1182
  %1961 = vmatpush.msra.mxu0 %v1181
  %1962 = vmatpush.msra.mxu0 %v1180
  %1963 = vmatpush.msra.mxu0 %v1179
  %1964 = vmatpush.msra.mxu0 %v1178
  %1965 = vmatpush.msra.mxu0 %v1177
  %1966 = vmatmul.f32.gmra.mxu0 %v1948
  %v1967 = vpop.f32.mrf.mxu0
  %v1968 = vadd.f32 %v1169, %v1967
  %1969 = vdwg.mxu0
  %v1970 = vxor.u32 %v1968, 2147483648
  %v1971 = vmul.f32 %v1970, 1.442695
  %v1972 = vpow.pop %v1971
  %v1973 = vadd.f32 %v1972, 1.0
  %v1974 = vrcp.pop %v1973
  %v1975 = vmul.f32 %v1973, %v1974
  %v1976 = vsub.f32 1.0, %v1975
  %v1977 = vmul.f32 %v1974, %v1976
  %v1978 = vadd.f32 %v1974, %v1977
  %vm1979 = vweird.f32 %v1973
  %vm1980 = vweird.f32 %v1974
  %vm1981 = vmor %vm1979, %vm1980
  %v1982 = vsel %vm1981, %v1974, %v1978
  %v1983 = vand.u32 2147483647, %v1973
  %vm1984 = vcmp.eq.f32.partialorder %v1983, 8.507059e+37
  %v1985 = vand.u32 %v1973, 2147483648
  %v1986 = vor.u32 1.1754944e-38, %v1985
  %v1987 = vsel %vm1984, %v1986, %v1982
  %v1988 = vmul.f32 1.0, %v1987
  %v1989 = vtanh.pop %v1968
  %v1990 = vmul.f32 %v1988, %v1635
  %1992 = vrot.lane.b32.xlu0 %v1989, 64
  %v1993 = vpop.permute.xlu0 %1992
  %v1995 = vmul.f32 %v1988, %v1993
  %1997 = vrot.lane.b32.xlu0 %v1995, 32
  %v1998 = vpop.permute.xlu0 %1997
  %v2000 = vadd.f32 %v1990, %v1998
  %v2001 = vtanh.pop %v2000
  %2003 = vrot.lane.b32.xlu0 %v2001, 64
  %v2004 = vpop.permute.xlu0 %2003
  %v2006 = vmul.f32 %v1988, %v2004
  %2008 = vrot.lane.b32.xlu0 %v2006, 32
  %v2009 = vpop.permute.xlu0 %2008
  %v2010 = vsel %vm181, %v2009, 0
  %2012 = vmatpush.msra.mxu0 0.0
  %2013 = vmatpush.msra.mxu0 0.0
  %2014 = vmatpush.msra.mxu0 0.0
  %2015 = vmatpush.msra.mxu0 0.0
  %2016 = vmatpush.msra.mxu0 0.0
  %2017 = vmatpush.msra.mxu0 0.0
  %2018 = vmatpush.msra.mxu0 0.0
  %2019 = vmatpush.msra.mxu0 0.0
  %2020 = vmatpush.msra.mxu0 0.0
  %2021 = vmatpush.msra.mxu0 0.0
  %2022 = vmatpush.msra.mxu0 0.0
  %2023 = vmatpush.msra.mxu0 0.0
  %2024 = vmatpush.msra.mxu0 %v1256
  %2025 = vmatpush.msra.mxu0 %v1255
  %2026 = vmatpush.msra.mxu0 %v1254
  %2027 = vmatpush.msra.mxu0 %v1253
  %2028 = vmatmul.f32.gmra.mxu0 %v2010
  %v2029 = vpop.f32.mrf.mxu0
  %v2030 = vadd.f32 0.0, %v2029
  %2031 = vdwg.mxu0
  %v2032 = vmul.f32 %v1149, %v2030
  %v2033 = vmul.f32 %v1150, %v2030
  %v2034 = vmul.f32 %v1151, %v2030
  %v2035 = vmul.f32 %v1152, %v2030
  %v2036 = vmul.f32 %v1153, %v2030
  %v2037 = vmul.f32 %v1154, %v2030
  %v2038 = vmul.f32 %v1155, %v2030
  %v2039 = vmul.f32 %v1156, %v2030
  %v2040 = vsel %vm283, %v2032, 0.0
  %2041 = vadd.xlane.f32.xlu0 %v2040
  %v2042 = vpop.xlane.xlu0 %2041
  %v2043 = vsel %vm283, %v2033, 0.0
  %2044 = vadd.xlane.f32.xlu0 %v2043
  %v2045 = vpop.xlane.xlu0 %2044
  %v2046 = vsel %vm283, %v2034, 0.0
  %2047 = vadd.xlane.f32.xlu0 %v2046
  %v2048 = vpop.xlane.xlu0 %2047
  %v2049 = vsel %vm283, %v2035, 0.0
  %2050 = vadd.xlane.f32.xlu0 %v2049
  %v2051 = vpop.xlane.xlu0 %2050
  %v2052 = vsel %vm283, %v2036, 0.0
  %2053 = vadd.xlane.f32.xlu0 %v2052
  %v2054 = vpop.xlane.xlu0 %2053
  %v2055 = vsel %vm283, %v2037, 0.0
  %2056 = vadd.xlane.f32.xlu0 %v2055
  %v2057 = vpop.xlane.xlu0 %2056
  %v2058 = vsel %vm283, %v2038, 0.0
  %2059 = vadd.xlane.f32.xlu0 %v2058
  %v2060 = vpop.xlane.xlu0 %2059
  %v2061 = vsel %vm283, %v2039, 0.0
  %2062 = vadd.xlane.f32.xlu0 %v2061
  %v2063 = vpop.xlane.xlu0 %2062
  %2065 = vrot.lane.b32.xlu0 %v2030, 96
  %v2066 = vpop.permute.xlu0 %2065
  %v2068 = vmul.f32 %v1157, %v2066
  %v2069 = vmul.f32 %v1158, %v2066
  %v2070 = vmul.f32 %v1159, %v2066
  %v2071 = vmul.f32 %v1160, %v2066
  %v2072 = vmul.f32 %v1161, %v2066
  %v2073 = vmul.f32 %v1162, %v2066
  %v2074 = vmul.f32 %v1163, %v2066
  %v2075 = vmul.f32 %v1164, %v2066
  %v2076 = vsel %vm283, %v2068, 0.0
  %2077 = vadd.xlane.f32.xlu0 %v2076
  %v2078 = vpop.xlane.xlu0 %2077
  %v2079 = vsel %vm283, %v2069, 0.0
  %2080 = vadd.xlane.f32.xlu0 %v2079
  %v2081 = vpop.xlane.xlu0 %2080
  %v2082 = vsel %vm283, %v2070, 0.0
  %2083 = vadd.xlane.f32.xlu0 %v2082
  %v2084 = vpop.xlane.xlu0 %2083
  %v2085 = vsel %vm283, %v2071, 0.0
  %2086 = vadd.xlane.f32.xlu0 %v2085
  %v2087 = vpop.xlane.xlu0 %2086
  %v2088 = vsel %vm283, %v2072, 0.0
  %2089 = vadd.xlane.f32.xlu0 %v2088
  %v2090 = vpop.xlane.xlu0 %2089
  %v2091 = vsel %vm283, %v2073, 0.0
  %2092 = vadd.xlane.f32.xlu0 %v2091
  %v2093 = vpop.xlane.xlu0 %2092
  %v2094 = vsel %vm283, %v2074, 0.0
  %2095 = vadd.xlane.f32.xlu0 %v2094
  %v2096 = vpop.xlane.xlu0 %2095
  %v2097 = vsel %vm283, %v2075, 0.0
  %2098 = vadd.xlane.f32.xlu0 %v2097
  %v2099 = vpop.xlane.xlu0 %2098
  %v2100 = vadd.f32 %v2042, %v2078
  %v2101 = vadd.f32 %v2045, %v2081
  %v2102 = vadd.f32 %v2048, %v2084
  %v2103 = vadd.f32 %v2051, %v2087
  %v2104 = vadd.f32 %v2054, %v2090
  %v2105 = vadd.f32 %v2057, %v2093
  %v2106 = vadd.f32 %v2060, %v2096
  %v2107 = vadd.f32 %v2063, %v2099
  %v2116 = vperm.slane %v2100, %v59
  %v2117 = vperm.slane %v2101, %v59
  %v2118 = vperm.slane %v2102, %v59
  %v2119 = vperm.slane %v2103, %v59
  %v2120 = vperm.slane %v2104, %v59
  %v2121 = vperm.slane %v2105, %v59
  %v2122 = vperm.slane %v2106, %v59
  %v2123 = vperm.slane %v2107, %v59
  %v2124 = vsel %vm1374, %v2117, %v2116
  %v2125 = vsel %vm1376, %v2118, %v2124
  %v2126 = vsel %vm1378, %v2119, %v2125
  %v2127 = vsel %vm1380, %v2120, %v2126
  %v2128 = vsel %vm1382, %v2121, %v2127
  %v2129 = vsel %vm1384, %v2122, %v2128
  %v2130 = vsel %vm1386, %v2123, %v2129
  %v2132 = vsel %vm1166, -1e+30, %v2130
  %v2133 = vsel %vm1390, %v2132, -inf
  %v2134 = vrot.slane %v2133, 4
  %v2135 = vmax.f32 %v2133, %v2134
  %v2136 = vrot.slane %v2135, 2
  %v2137 = vmax.f32 %v2135, %v2136
  %v2138 = vrot.slane %v2137, 1
  %v2139 = vmax.f32 %v2137, %v2138
  %v2140 = vsub.f32 %v2132, %v2139
  %v2141 = vmul.f32 %v2140, 1.442695
  %v2142 = vpow.pop %v2141
  %v2143 = vsel %vm1390, %v2142, 0.0
  %v2144 = vrot.slane %v2143, 4
  %v2145 = vadd.f32 %v2143, %v2144
  %v2146 = vrot.slane %v2145, 2
  %v2147 = vadd.f32 %v2145, %v2146
  %v2148 = vrot.slane %v2147, 1
  %v2149 = vadd.f32 %v2147, %v2148
  %v2150 = vrcp.pop %v2149
  %v2151 = vmul.f32 %v2149, %v2150
  %v2152 = vsub.f32 1.0, %v2151
  %v2153 = vmul.f32 %v2150, %v2152
  %v2154 = vadd.f32 %v2150, %v2153
  %vm2155 = vweird.f32 %v2149
  %vm2156 = vweird.f32 %v2150
  %vm2157 = vmor %vm2155, %vm2156
  %v2158 = vsel %vm2157, %v2150, %v2154
  %v2159 = vand.u32 2147483647, %v2149
  %vm2160 = vcmp.eq.f32.partialorder %v2159, 8.507059e+37
  %v2161 = vand.u32 %v2149, 2147483648
  %v2162 = vor.u32 1.1754944e-38, %v2161
  %v2163 = vsel %vm2160, %v2162, %v2158
  %v2164 = vmul.f32 %v2142, %v2163
  %v2165 = vperm.slane %v2164, 0
  %v2166 = vlaneseq
  %v2167 = vshrl.u32 %v2166, 7
  %2169 = vset.pattern.permute.xlu0 %v2167
  %2170 = vperm.xlu0 %2169, %v2165
  %v2171 = vpop.permute.xlu0 %2170
  %v2172 = vperm.slane %v2164, 1
  %v2173 = vlaneseq
  %v2174 = vshrl.u32 %v2173, 7
  %2176 = vset.pattern.permute.xlu0 %v2174
  %2177 = vperm.xlu0 %2176, %v2172
  %v2178 = vpop.permute.xlu0 %2177
  %v2179 = vperm.slane %v2164, 2
  %v2180 = vlaneseq
  %v2181 = vshrl.u32 %v2180, 7
  %2183 = vset.pattern.permute.xlu0 %v2181
  %2184 = vperm.xlu0 %2183, %v2179
  %v2185 = vpop.permute.xlu0 %2184
  %v2186 = vperm.slane %v2164, 3
  %v2187 = vlaneseq
  %v2188 = vshrl.u32 %v2187, 7
  %2190 = vset.pattern.permute.xlu0 %v2188
  %2191 = vperm.xlu0 %2190, %v2186
  %v2192 = vpop.permute.xlu0 %2191
  %v2193 = vperm.slane %v2164, 4
  %v2194 = vlaneseq
  %v2195 = vshrl.u32 %v2194, 7
  %2197 = vset.pattern.permute.xlu0 %v2195
  %2198 = vperm.xlu0 %2197, %v2193
  %v2199 = vpop.permute.xlu0 %2198
  %v2200 = vperm.slane %v2164, 5
  %v2201 = vlaneseq
  %v2202 = vshrl.u32 %v2201, 7
  %2204 = vset.pattern.permute.xlu0 %v2202
  %2205 = vperm.xlu0 %2204, %v2200
  %v2206 = vpop.permute.xlu0 %2205
  %v2207 = vperm.slane %v2164, 6
  %v2208 = vlaneseq
  %v2209 = vshrl.u32 %v2208, 7
  %2211 = vset.pattern.permute.xlu0 %v2209
  %2212 = vperm.xlu0 %2211, %v2207
  %v2213 = vpop.permute.xlu0 %2212
  %v2214 = vperm.slane %v2164, 7
  %v2215 = vlaneseq
  %v2216 = vshrl.u32 %v2215, 7
  %2218 = vset.pattern.permute.xlu0 %v2216
  %2219 = vperm.xlu0 %2218, %v2214
  %v2220 = vpop.permute.xlu0 %2219
  %v2221 = vmul.f32 %v2171, %v1149
  %v2222 = vmul.f32 %v2178, %v1150
  %v2223 = vmul.f32 %v2185, %v1151
  %v2224 = vmul.f32 %v2192, %v1152
  %v2225 = vmul.f32 %v2199, %v1153
  %v2226 = vmul.f32 %v2206, %v1154
  %v2227 = vmul.f32 %v2213, %v1155
  %v2228 = vmul.f32 %v2220, %v1156
  %v2229 = vsel %vm283, %v2221, 0.0
  %v2230 = vsel %vm283, %v2222, 0.0
  %v2231 = vadd.f32 %v2229, %v2230
  %v2232 = vsel %vm283, %v2223, 0.0
  %v2233 = vadd.f32 %v2231, %v2232
  %v2234 = vsel %vm283, %v2224, 0.0
  %v2235 = vadd.f32 %v2233, %v2234
  %v2236 = vsel %vm283, %v2225, 0.0
  %v2237 = vadd.f32 %v2235, %v2236
  %v2238 = vsel %vm283, %v2226, 0.0
  %v2239 = vadd.f32 %v2237, %v2238
  %v2240 = vsel %vm283, %v2227, 0.0
  %v2241 = vadd.f32 %v2239, %v2240
  %v2242 = vsel %vm283, %v2228, 0.0
  %v2243 = vadd.f32 %v2241, %v2242
  %v2244 = vmul.f32 %v2171, %v1157
  %v2245 = vmul.f32 %v2178, %v1158
  %v2246 = vmul.f32 %v2185, %v1159
  %v2247 = vmul.f32 %v2192, %v1160
  %v2248 = vmul.f32 %v2199, %v1161
  %v2249 = vmul.f32 %v2206, %v1162
  %v2250 = vmul.f32 %v2213, %v1163
  %v2251 = vmul.f32 %v2220, %v1164
  %v2252 = vsel %vm283, %v2244, 0.0
  %v2253 = vsel %vm283, %v2245, 0.0
  %v2254 = vadd.f32 %v2252, %v2253
  %v2255 = vsel %vm283, %v2246, 0.0
  %v2256 = vadd.f32 %v2254, %v2255
  %v2257 = vsel %vm283, %v2247, 0.0
  %v2258 = vadd.f32 %v2256, %v2257
  %v2259 = vsel %vm283, %v2248, 0.0
  %v2260 = vadd.f32 %v2258, %v2259
  %v2261 = vsel %vm283, %v2249, 0.0
  %v2262 = vadd.f32 %v2260, %v2261
  %v2263 = vsel %vm283, %v2250, 0.0
  %v2264 = vadd.f32 %v2262, %v2263
  %v2265 = vsel %vm283, %v2251, 0.0
  %v2266 = vadd.f32 %v2264, %v2265
  %2268 = vrot.lane.b32.xlu0 %v2266, 32
  %v2269 = vpop.permute.xlu0 %2268
  %2271 = vrot.lane.b32.xlu0 %v2006, 96
  %v2272 = vpop.permute.xlu0 %2271
  %v2274 = vsel %vm181, %v2243, %v2269
  %v2275 = vsel %vm183, %v2274, %v2272
  %v2277 = vsel %vm191, %v2275, 0
  %2279 = vmatpush.msra.mxu0 0.0
  %2280 = vmatpush.msra.mxu0 0.0
  %2281 = vmatpush.msra.mxu0 0.0
  %2282 = vmatpush.msra.mxu0 0.0
  %2283 = vmatpush.msra.mxu0 %v1545
  %2284 = vmatpush.msra.mxu0 %v1544
  %2285 = vmatpush.msra.mxu0 %v1543
  %2286 = vmatpush.msra.mxu0 %v1542
  %2287 = vmatpush.msra.mxu0 %v1541
  %2288 = vmatpush.msra.mxu0 %v1540
  %2289 = vmatpush.msra.mxu0 %v1539
  %2290 = vmatpush.msra.mxu0 %v1538
  %2291 = vmatpush.msra.mxu0 %v1537
  %2292 = vmatpush.msra.mxu0 %v1536
  %2293 = vmatpush.msra.mxu0 %v1535
  %2294 = vmatpush.msra.mxu0 %v1534
  %2295 = vmatmul.f32.gmra.mxu0 %v2277
  %v2296 = vpop.f32.mrf.mxu0
  %v2297 = vadd.f32 0.0, %v2296
  %2298 = vdwg.mxu0
  %v2299 = vtanh.pop %v2297
  %v2301 = vrot.slane %v2299, 2
  %2302 = vrot.lane.b32.xlu0 %v2301, 32
  %v2303 = vpop.permute.xlu0 %2302
  %v2305 = vrot.slane %v2006, 2
  %2306 = vrot.lane.b32.xlu0 %v2305, 96
  %v2307 = vpop.permute.xlu0 %2306
  %v2309 = vsel %vm181, %v161, %v2303
  %v2310 = vsel %vm183, %v2309, %v2307
  %v2312 = vrot.slane %v2310, 6
  %v2313 = vsel %vm191, %v2312, 0
  %2315 = vmatpush.msra.mxu0 0.0
  %2316 = vmatpush.msra.mxu0 0.0
  %2317 = vmatpush.msra.mxu0 0.0
  %2318 = vmatpush.msra.mxu0 0.0
  %2319 = vmatpush.msra.mxu0 %v1188
  %2320 = vmatpush.msra.mxu0 %v1187
  %2321 = vmatpush.msra.mxu0 %v1186
  %2322 = vmatpush.msra.mxu0 %v1185
  %2323 = vmatpush.msra.mxu0 %v1184
  %2324 = vmatpush.msra.mxu0 %v1183
  %2325 = vmatpush.msra.mxu0 %v1182
  %2326 = vmatpush.msra.mxu0 %v1181
  %2327 = vmatpush.msra.mxu0 %v1180
  %2328 = vmatpush.msra.mxu0 %v1179
  %2329 = vmatpush.msra.mxu0 %v1178
  %2330 = vmatpush.msra.mxu0 %v1177
  %2331 = vmatmul.f32.gmra.mxu0 %v2313
  %v2332 = vpop.f32.mrf.mxu0
  %v2333 = vadd.f32 %v1169, %v2332
  %2334 = vdwg.mxu0
  %v2335 = vxor.u32 %v2333, 2147483648
  %v2336 = vmul.f32 %v2335, 1.442695
  %v2337 = vpow.pop %v2336
  %v2338 = vadd.f32 %v2337, 1.0
  %v2339 = vrcp.pop %v2338
  %v2340 = vmul.f32 %v2338, %v2339
  %v2341 = vsub.f32 1.0, %v2340
  %v2342 = vmul.f32 %v2339, %v2341
  %v2343 = vadd.f32 %v2339, %v2342
  %vm2344 = vweird.f32 %v2338
  %vm2345 = vweird.f32 %v2339
  %vm2346 = vmor %vm2344, %vm2345
  %v2347 = vsel %vm2346, %v2339, %v2343
  %v2348 = vand.u32 2147483647, %v2338
  %vm2349 = vcmp.eq.f32.partialorder %v2348, 8.507059e+37
  %v2350 = vand.u32 %v2338, 2147483648
  %v2351 = vor.u32 1.1754944e-38, %v2350
  %v2352 = vsel %vm2349, %v2351, %v2347
  %v2353 = vmul.f32 1.0, %v2352
  %v2354 = vtanh.pop %v2333
  %v2355 = vmul.f32 %v2353, %v2000
  %2357 = vrot.lane.b32.xlu0 %v2354, 64
  %v2358 = vpop.permute.xlu0 %2357
  %v2360 = vmul.f32 %v2353, %v2358
  %2362 = vrot.lane.b32.xlu0 %v2360, 32
  %v2363 = vpop.permute.xlu0 %2362
  %v2365 = vadd.f32 %v2355, %v2363
  %v2366 = vtanh.pop %v2365
  %2368 = vrot.lane.b32.xlu0 %v2366, 64
  %v2369 = vpop.permute.xlu0 %2368
  %v2371 = vmul.f32 %v2353, %v2369
  %2373 = vrot.lane.b32.xlu0 %v2371, 32
  %v2374 = vpop.permute.xlu0 %2373
  %v2375 = vsel %vm181, %v2374, 0
  %2377 = vmatpush.msra.mxu0 0.0
  %2378 = vmatpush.msra.mxu0 0.0
  %2379 = vmatpush.msra.mxu0 0.0
  %2380 = vmatpush.msra.mxu0 0.0
  %2381 = vmatpush.msra.mxu0 0.0
  %2382 = vmatpush.msra.mxu0 0.0
  %2383 = vmatpush.msra.mxu0 0.0
  %2384 = vmatpush.msra.mxu0 0.0
  %2385 = vmatpush.msra.mxu0 0.0
  %2386 = vmatpush.msra.mxu0 0.0
  %2387 = vmatpush.msra.mxu0 0.0
  %2388 = vmatpush.msra.mxu0 0.0
  %2389 = vmatpush.msra.mxu0 %v1256
  %2390 = vmatpush.msra.mxu0 %v1255
  %2391 = vmatpush.msra.mxu0 %v1254
  %2392 = vmatpush.msra.mxu0 %v1253
  %2393 = vmatmul.f32.gmra.mxu0 %v2375
  %v2394 = vpop.f32.mrf.mxu0
  %v2395 = vadd.f32 0.0, %v2394
  %2396 = vdwg.mxu0
  %v2397 = vmul.f32 %v1149, %v2395
  %v2398 = vmul.f32 %v1150, %v2395
  %v2399 = vmul.f32 %v1151, %v2395
  %v2400 = vmul.f32 %v1152, %v2395
  %v2401 = vmul.f32 %v1153, %v2395
  %v2402 = vmul.f32 %v1154, %v2395
  %v2403 = vmul.f32 %v1155, %v2395
  %v2404 = vmul.f32 %v1156, %v2395
  %v2405 = vsel %vm283, %v2397, 0.0
  %2406 = vadd.xlane.f32.xlu0 %v2405
  %v2407 = vpop.xlane.xlu0 %2406
  %v2408 = vsel %vm283, %v2398, 0.0
  %2409 = vadd.xlane.f32.xlu0 %v2408
  %v2410 = vpop.xlane.xlu0 %2409
  %v2411 = vsel %vm283, %v2399, 0.0
  %2412 = vadd.xlane.f32.xlu0 %v2411
  %v2413 = vpop.xlane.xlu0 %2412
  %v2414 = vsel %vm283, %v2400, 0.0
  %2415 = vadd.xlane.f32.xlu0 %v2414
  %v2416 = vpop.xlane.xlu0 %2415
  %v2417 = vsel %vm283, %v2401, 0.0
  %2418 = vadd.xlane.f32.xlu0 %v2417
  %v2419 = vpop.xlane.xlu0 %2418
  %v2420 = vsel %vm283, %v2402, 0.0
  %2421 = vadd.xlane.f32.xlu0 %v2420
  %v2422 = vpop.xlane.xlu0 %2421
  %v2423 = vsel %vm283, %v2403, 0.0
  %2424 = vadd.xlane.f32.xlu0 %v2423
  %v2425 = vpop.xlane.xlu0 %2424
  %v2426 = vsel %vm283, %v2404, 0.0
  %2427 = vadd.xlane.f32.xlu0 %v2426
  %v2428 = vpop.xlane.xlu0 %2427
  %2430 = vrot.lane.b32.xlu0 %v2395, 96
  %v2431 = vpop.permute.xlu0 %2430
  %v2433 = vmul.f32 %v1157, %v2431
  %v2434 = vmul.f32 %v1158, %v2431
  %v2435 = vmul.f32 %v1159, %v2431
  %v2436 = vmul.f32 %v1160, %v2431
  %v2437 = vmul.f32 %v1161, %v2431
  %v2438 = vmul.f32 %v1162, %v2431
  %v2439 = vmul.f32 %v1163, %v2431
  %v2440 = vmul.f32 %v1164, %v2431
  %v2441 = vsel %vm283, %v2433, 0.0
  %2442 = vadd.xlane.f32.xlu0 %v2441
  %v2443 = vpop.xlane.xlu0 %2442
  %v2444 = vsel %vm283, %v2434, 0.0
  %2445 = vadd.xlane.f32.xlu0 %v2444
  %v2446 = vpop.xlane.xlu0 %2445
  %v2447 = vsel %vm283, %v2435, 0.0
  %2448 = vadd.xlane.f32.xlu0 %v2447
  %v2449 = vpop.xlane.xlu0 %2448
  %v2450 = vsel %vm283, %v2436, 0.0
  %2451 = vadd.xlane.f32.xlu0 %v2450
  %v2452 = vpop.xlane.xlu0 %2451
  %v2453 = vsel %vm283, %v2437, 0.0
  %2454 = vadd.xlane.f32.xlu0 %v2453
  %v2455 = vpop.xlane.xlu0 %2454
  %v2456 = vsel %vm283, %v2438, 0.0
  %2457 = vadd.xlane.f32.xlu0 %v2456
  %v2458 = vpop.xlane.xlu0 %2457
  %v2459 = vsel %vm283, %v2439, 0.0
  %2460 = vadd.xlane.f32.xlu0 %v2459
  %v2461 = vpop.xlane.xlu0 %2460
  %v2462 = vsel %vm283, %v2440, 0.0
  %2463 = vadd.xlane.f32.xlu0 %v2462
  %v2464 = vpop.xlane.xlu0 %2463
  %v2465 = vadd.f32 %v2407, %v2443
  %v2466 = vadd.f32 %v2410, %v2446
  %v2467 = vadd.f32 %v2413, %v2449
  %v2468 = vadd.f32 %v2416, %v2452
  %v2469 = vadd.f32 %v2419, %v2455
  %v2470 = vadd.f32 %v2422, %v2458
  %v2471 = vadd.f32 %v2425, %v2461
  %v2472 = vadd.f32 %v2428, %v2464
  %v2481 = vperm.slane %v2465, %v59
  %v2482 = vperm.slane %v2466, %v59
  %v2483 = vperm.slane %v2467, %v59
  %v2484 = vperm.slane %v2468, %v59
  %v2485 = vperm.slane %v2469, %v59
  %v2486 = vperm.slane %v2470, %v59
  %v2487 = vperm.slane %v2471, %v59
  %v2488 = vperm.slane %v2472, %v59
  %v2489 = vsel %vm1374, %v2482, %v2481
  %v2490 = vsel %vm1376, %v2483, %v2489
  %v2491 = vsel %vm1378, %v2484, %v2490
  %v2492 = vsel %vm1380, %v2485, %v2491
  %v2493 = vsel %vm1382, %v2486, %v2492
  %v2494 = vsel %vm1384, %v2487, %v2493
  %v2495 = vsel %vm1386, %v2488, %v2494
  %v2497 = vsel %vm1166, -1e+30, %v2495
  %v2498 = vsel %vm1390, %v2497, -inf
  %v2499 = vrot.slane %v2498, 4
  %v2500 = vmax.f32 %v2498, %v2499
  %v2501 = vrot.slane %v2500, 2
  %v2502 = vmax.f32 %v2500, %v2501
  %v2503 = vrot.slane %v2502, 1
  %v2504 = vmax.f32 %v2502, %v2503
  %v2505 = vsub.f32 %v2497, %v2504
  %v2506 = vmul.f32 %v2505, 1.442695
  %v2507 = vpow.pop %v2506
  %v2508 = vsel %vm1390, %v2507, 0.0
  %v2509 = vrot.slane %v2508, 4
  %v2510 = vadd.f32 %v2508, %v2509
  %v2511 = vrot.slane %v2510, 2
  %v2512 = vadd.f32 %v2510, %v2511
  %v2513 = vrot.slane %v2512, 1
  %v2514 = vadd.f32 %v2512, %v2513
  %v2515 = vrcp.pop %v2514
  %v2516 = vmul.f32 %v2514, %v2515
  %v2517 = vsub.f32 1.0, %v2516
  %v2518 = vmul.f32 %v2515, %v2517
  %v2519 = vadd.f32 %v2515, %v2518
  %vm2520 = vweird.f32 %v2514
  %vm2521 = vweird.f32 %v2515
  %vm2522 = vmor %vm2520, %vm2521
  %v2523 = vsel %vm2522, %v2515, %v2519
  %v2524 = vand.u32 2147483647, %v2514
  %vm2525 = vcmp.eq.f32.partialorder %v2524, 8.507059e+37
  %v2526 = vand.u32 %v2514, 2147483648
  %v2527 = vor.u32 1.1754944e-38, %v2526
  %v2528 = vsel %vm2525, %v2527, %v2523
  %v2529 = vmul.f32 %v2507, %v2528
  %v2530 = vperm.slane %v2529, 0
  %v2531 = vlaneseq
  %v2532 = vshrl.u32 %v2531, 7
  %2534 = vset.pattern.permute.xlu0 %v2532
  %2535 = vperm.xlu0 %2534, %v2530
  %v2536 = vpop.permute.xlu0 %2535
  %v2537 = vperm.slane %v2529, 1
  %v2538 = vlaneseq
  %v2539 = vshrl.u32 %v2538, 7
  %2541 = vset.pattern.permute.xlu0 %v2539
  %2542 = vperm.xlu0 %2541, %v2537
  %v2543 = vpop.permute.xlu0 %2542
  %v2544 = vperm.slane %v2529, 2
  %v2545 = vlaneseq
  %v2546 = vshrl.u32 %v2545, 7
  %2548 = vset.pattern.permute.xlu0 %v2546
  %2549 = vperm.xlu0 %2548, %v2544
  %v2550 = vpop.permute.xlu0 %2549
  %v2551 = vperm.slane %v2529, 3
  %v2552 = vlaneseq
  %v2553 = vshrl.u32 %v2552, 7
  %2555 = vset.pattern.permute.xlu0 %v2553
  %2556 = vperm.xlu0 %2555, %v2551
  %v2557 = vpop.permute.xlu0 %2556
  %v2558 = vperm.slane %v2529, 4
  %v2559 = vlaneseq
  %v2560 = vshrl.u32 %v2559, 7
  %2562 = vset.pattern.permute.xlu0 %v2560
  %2563 = vperm.xlu0 %2562, %v2558
  %v2564 = vpop.permute.xlu0 %2563
  %v2565 = vperm.slane %v2529, 5
  %v2566 = vlaneseq
  %v2567 = vshrl.u32 %v2566, 7
  %2569 = vset.pattern.permute.xlu0 %v2567
  %2570 = vperm.xlu0 %2569, %v2565
  %v2571 = vpop.permute.xlu0 %2570
  %v2572 = vperm.slane %v2529, 6
  %v2573 = vlaneseq
  %v2574 = vshrl.u32 %v2573, 7
  %2576 = vset.pattern.permute.xlu0 %v2574
  %2577 = vperm.xlu0 %2576, %v2572
  %v2578 = vpop.permute.xlu0 %2577
  %v2579 = vperm.slane %v2529, 7
  %v2580 = vlaneseq
  %v2581 = vshrl.u32 %v2580, 7
  %2583 = vset.pattern.permute.xlu0 %v2581
  %2584 = vperm.xlu0 %2583, %v2579
  %v2585 = vpop.permute.xlu0 %2584
  %v2586 = vmul.f32 %v2536, %v1149
  %v2587 = vmul.f32 %v2543, %v1150
  %v2588 = vmul.f32 %v2550, %v1151
  %v2589 = vmul.f32 %v2557, %v1152
  %v2590 = vmul.f32 %v2564, %v1153
  %v2591 = vmul.f32 %v2571, %v1154
  %v2592 = vmul.f32 %v2578, %v1155
  %v2593 = vmul.f32 %v2585, %v1156
  %v2594 = vsel %vm283, %v2586, 0.0
  %v2595 = vsel %vm283, %v2587, 0.0
  %v2596 = vadd.f32 %v2594, %v2595
  %v2597 = vsel %vm283, %v2588, 0.0
  %v2598 = vadd.f32 %v2596, %v2597
  %v2599 = vsel %vm283, %v2589, 0.0
  %v2600 = vadd.f32 %v2598, %v2599
  %v2601 = vsel %vm283, %v2590, 0.0
  %v2602 = vadd.f32 %v2600, %v2601
  %v2603 = vsel %vm283, %v2591, 0.0
  %v2604 = vadd.f32 %v2602, %v2603
  %v2605 = vsel %vm283, %v2592, 0.0
  %v2606 = vadd.f32 %v2604, %v2605
  %v2607 = vsel %vm283, %v2593, 0.0
  %v2608 = vadd.f32 %v2606, %v2607
  %v2609 = vmul.f32 %v2536, %v1157
  %v2610 = vmul.f32 %v2543, %v1158
  %v2611 = vmul.f32 %v2550, %v1159
  %v2612 = vmul.f32 %v2557, %v1160
  %v2613 = vmul.f32 %v2564, %v1161
  %v2614 = vmul.f32 %v2571, %v1162
  %v2615 = vmul.f32 %v2578, %v1163
  %v2616 = vmul.f32 %v2585, %v1164
  %v2617 = vsel %vm283, %v2609, 0.0
  %v2618 = vsel %vm283, %v2610, 0.0
  %v2619 = vadd.f32 %v2617, %v2618
  %v2620 = vsel %vm283, %v2611, 0.0
  %v2621 = vadd.f32 %v2619, %v2620
  %v2622 = vsel %vm283, %v2612, 0.0
  %v2623 = vadd.f32 %v2621, %v2622
  %v2624 = vsel %vm283, %v2613, 0.0
  %v2625 = vadd.f32 %v2623, %v2624
  %v2626 = vsel %vm283, %v2614, 0.0
  %v2627 = vadd.f32 %v2625, %v2626
  %v2628 = vsel %vm283, %v2615, 0.0
  %v2629 = vadd.f32 %v2627, %v2628
  %v2630 = vsel %vm283, %v2616, 0.0
  %v2631 = vadd.f32 %v2629, %v2630
  %2633 = vrot.lane.b32.xlu0 %v2631, 32
  %v2634 = vpop.permute.xlu0 %2633
  %2636 = vrot.lane.b32.xlu0 %v2371, 96
  %v2637 = vpop.permute.xlu0 %2636
  %v2639 = vsel %vm181, %v2608, %v2634
  %v2640 = vsel %vm183, %v2639, %v2637
  %v2642 = vsel %vm191, %v2640, 0
  %2644 = vmatpush.msra.mxu0 0.0
  %2645 = vmatpush.msra.mxu0 0.0
  %2646 = vmatpush.msra.mxu0 0.0
  %2647 = vmatpush.msra.mxu0 0.0
  %2648 = vmatpush.msra.mxu0 %v1545
  %2649 = vmatpush.msra.mxu0 %v1544
  %2650 = vmatpush.msra.mxu0 %v1543
  %2651 = vmatpush.msra.mxu0 %v1542
  %2652 = vmatpush.msra.mxu0 %v1541
  %2653 = vmatpush.msra.mxu0 %v1540
  %2654 = vmatpush.msra.mxu0 %v1539
  %2655 = vmatpush.msra.mxu0 %v1538
  %2656 = vmatpush.msra.mxu0 %v1537
  %2657 = vmatpush.msra.mxu0 %v1536
  %2658 = vmatpush.msra.mxu0 %v1535
  %2659 = vmatpush.msra.mxu0 %v1534
  %2660 = vmatmul.f32.gmra.mxu0 %v2642
  %v2661 = vpop.f32.mrf.mxu0
  %v2662 = vadd.f32 0.0, %v2661
  %2663 = vdwg.mxu0
  %v2664 = vtanh.pop %v2662
  %2666 = vrot.lane.b32.xlu0 %v2664, 32
  %v2667 = vpop.permute.xlu0 %2666
  %v2669 = vsel %vm181, %v164, %v2667
  %v2670 = vsel %vm183, %v2669, %v2637
  %v2672 = vsel %vm191, %v2670, 0
  %2674 = vmatpush.msra.mxu0 0.0
  %2675 = vmatpush.msra.mxu0 0.0
  %2676 = vmatpush.msra.mxu0 0.0
  %2677 = vmatpush.msra.mxu0 0.0
  %2678 = vmatpush.msra.mxu0 %v1188
  %2679 = vmatpush.msra.mxu0 %v1187
  %2680 = vmatpush.msra.mxu0 %v1186
  %2681 = vmatpush.msra.mxu0 %v1185
  %2682 = vmatpush.msra.mxu0 %v1184
  %2683 = vmatpush.msra.mxu0 %v1183
  %2684 = vmatpush.msra.mxu0 %v1182
  %2685 = vmatpush.msra.mxu0 %v1181
  %2686 = vmatpush.msra.mxu0 %v1180
  %2687 = vmatpush.msra.mxu0 %v1179
  %2688 = vmatpush.msra.mxu0 %v1178
  %2689 = vmatpush.msra.mxu0 %v1177
  %2690 = vmatmul.f32.gmra.mxu0 %v2672
  %v2691 = vpop.f32.mrf.mxu0
  %v2692 = vadd.f32 %v1169, %v2691
  %2693 = vdwg.mxu0
  %v2694 = vxor.u32 %v2692, 2147483648
  %v2695 = vmul.f32 %v2694, 1.442695
  %v2696 = vpow.pop %v2695
  %v2697 = vadd.f32 %v2696, 1.0
  %v2698 = vrcp.pop %v2697
  %v2699 = vmul.f32 %v2697, %v2698
  %v2700 = vsub.f32 1.0, %v2699
  %v2701 = vmul.f32 %v2698, %v2700
  %v2702 = vadd.f32 %v2698, %v2701
  %vm2703 = vweird.f32 %v2697
  %vm2704 = vweird.f32 %v2698
  %vm2705 = vmor %vm2703, %vm2704
  %v2706 = vsel %vm2705, %v2698, %v2702
  %v2707 = vand.u32 2147483647, %v2697
  %vm2708 = vcmp.eq.f32.partialorder %v2707, 8.507059e+37
  %v2709 = vand.u32 %v2697, 2147483648
  %v2710 = vor.u32 1.1754944e-38, %v2709
  %v2711 = vsel %vm2708, %v2710, %v2706
  %v2712 = vmul.f32 1.0, %v2711
  %v2713 = vtanh.pop %v2692
  %v2714 = vmul.f32 %v2712, %v2365
  %2716 = vrot.lane.b32.xlu0 %v2713, 64
  %v2717 = vpop.permute.xlu0 %2716
  %v2719 = vmul.f32 %v2712, %v2717
  %2721 = vrot.lane.b32.xlu0 %v2719, 32
  %v2722 = vpop.permute.xlu0 %2721
  %v2724 = vadd.f32 %v2714, %v2722
  %v2725 = vtanh.pop %v2724
  %2727 = vrot.lane.b32.xlu0 %v2725, 64
  %v2728 = vpop.permute.xlu0 %2727
  %v2730 = vmul.f32 %v2712, %v2728
  %2732 = vrot.lane.b32.xlu0 %v2730, 32
  %v2733 = vpop.permute.xlu0 %2732
  %v2734 = vsel %vm181, %v2733, 0
  %2736 = vmatpush.msra.mxu0 0.0
  %2737 = vmatpush.msra.mxu0 0.0
  %2738 = vmatpush.msra.mxu0 0.0
  %2739 = vmatpush.msra.mxu0 0.0
  %2740 = vmatpush.msra.mxu0 0.0
  %2741 = vmatpush.msra.mxu0 0.0
  %2742 = vmatpush.msra.mxu0 0.0
  %2743 = vmatpush.msra.mxu0 0.0
  %2744 = vmatpush.msra.mxu0 0.0
  %2745 = vmatpush.msra.mxu0 0.0
  %2746 = vmatpush.msra.mxu0 0.0
  %2747 = vmatpush.msra.mxu0 0.0
  %2748 = vmatpush.msra.mxu0 %v1256
  %2749 = vmatpush.msra.mxu0 %v1255
  %2750 = vmatpush.msra.mxu0 %v1254
  %2751 = vmatpush.msra.mxu0 %v1253
  %2752 = vmatmul.f32.gmra.mxu0 %v2734
  %v2753 = vpop.f32.mrf.mxu0
  %v2754 = vadd.f32 0.0, %v2753
  %2755 = vdwg.mxu0
  %v2756 = vmul.f32 %v1149, %v2754
  %v2757 = vmul.f32 %v1150, %v2754
  %v2758 = vmul.f32 %v1151, %v2754
  %v2759 = vmul.f32 %v1152, %v2754
  %v2760 = vmul.f32 %v1153, %v2754
  %v2761 = vmul.f32 %v1154, %v2754
  %v2762 = vmul.f32 %v1155, %v2754
  %v2763 = vmul.f32 %v1156, %v2754
  %v2764 = vsel %vm283, %v2756, 0.0
  %2765 = vadd.xlane.f32.xlu0 %v2764
  %v2766 = vpop.xlane.xlu0 %2765
  %v2767 = vsel %vm283, %v2757, 0.0
  %2768 = vadd.xlane.f32.xlu0 %v2767
  %v2769 = vpop.xlane.xlu0 %2768
  %v2770 = vsel %vm283, %v2758, 0.0
  %2771 = vadd.xlane.f32.xlu0 %v2770
  %v2772 = vpop.xlane.xlu0 %2771
  %v2773 = vsel %vm283, %v2759, 0.0
  %2774 = vadd.xlane.f32.xlu0 %v2773
  %v2775 = vpop.xlane.xlu0 %2774
  %v2776 = vsel %vm283, %v2760, 0.0
  %2777 = vadd.xlane.f32.xlu0 %v2776
  %v2778 = vpop.xlane.xlu0 %2777
  %v2779 = vsel %vm283, %v2761, 0.0
  %2780 = vadd.xlane.f32.xlu0 %v2779
  %v2781 = vpop.xlane.xlu0 %2780
  %v2782 = vsel %vm283, %v2762, 0.0
  %2783 = vadd.xlane.f32.xlu0 %v2782
  %v2784 = vpop.xlane.xlu0 %2783
  %v2785 = vsel %vm283, %v2763, 0.0
  %2786 = vadd.xlane.f32.xlu0 %v2785
  %v2787 = vpop.xlane.xlu0 %2786
  %2789 = vrot.lane.b32.xlu0 %v2754, 96
  %v2790 = vpop.permute.xlu0 %2789
  %v2792 = vmul.f32 %v1157, %v2790
  %v2793 = vmul.f32 %v1158, %v2790
  %v2794 = vmul.f32 %v1159, %v2790
  %v2795 = vmul.f32 %v1160, %v2790
  %v2796 = vmul.f32 %v1161, %v2790
  %v2797 = vmul.f32 %v1162, %v2790
  %v2798 = vmul.f32 %v1163, %v2790
  %v2799 = vmul.f32 %v1164, %v2790
  %v2800 = vsel %vm283, %v2792, 0.0
  %2801 = vadd.xlane.f32.xlu0 %v2800
  %v2802 = vpop.xlane.xlu0 %2801
  %v2803 = vsel %vm283, %v2793, 0.0
  %2804 = vadd.xlane.f32.xlu0 %v2803
  %v2805 = vpop.xlane.xlu0 %2804
  %v2806 = vsel %vm283, %v2794, 0.0
  %2807 = vadd.xlane.f32.xlu0 %v2806
  %v2808 = vpop.xlane.xlu0 %2807
  %v2809 = vsel %vm283, %v2795, 0.0
  %2810 = vadd.xlane.f32.xlu0 %v2809
  %v2811 = vpop.xlane.xlu0 %2810
  %v2812 = vsel %vm283, %v2796, 0.0
  %2813 = vadd.xlane.f32.xlu0 %v2812
  %v2814 = vpop.xlane.xlu0 %2813
  %v2815 = vsel %vm283, %v2797, 0.0
  %2816 = vadd.xlane.f32.xlu0 %v2815
  %v2817 = vpop.xlane.xlu0 %2816
  %v2818 = vsel %vm283, %v2798, 0.0
  %2819 = vadd.xlane.f32.xlu0 %v2818
  %v2820 = vpop.xlane.xlu0 %2819
  %v2821 = vsel %vm283, %v2799, 0.0
  %2822 = vadd.xlane.f32.xlu0 %v2821
  %v2823 = vpop.xlane.xlu0 %2822
  %v2824 = vadd.f32 %v2766, %v2802
  %v2825 = vadd.f32 %v2769, %v2805
  %v2826 = vadd.f32 %v2772, %v2808
  %v2827 = vadd.f32 %v2775, %v2811
  %v2828 = vadd.f32 %v2778, %v2814
  %v2829 = vadd.f32 %v2781, %v2817
  %v2830 = vadd.f32 %v2784, %v2820
  %v2831 = vadd.f32 %v2787, %v2823
  %v2840 = vperm.slane %v2824, %v59
  %v2841 = vperm.slane %v2825, %v59
  %v2842 = vperm.slane %v2826, %v59
  %v2843 = vperm.slane %v2827, %v59
  %v2844 = vperm.slane %v2828, %v59
  %v2845 = vperm.slane %v2829, %v59
  %v2846 = vperm.slane %v2830, %v59
  %v2847 = vperm.slane %v2831, %v59
  %v2848 = vsel %vm1374, %v2841, %v2840
  %v2849 = vsel %vm1376, %v2842, %v2848
  %v2850 = vsel %vm1378, %v2843, %v2849
  %v2851 = vsel %vm1380, %v2844, %v2850
  %v2852 = vsel %vm1382, %v2845, %v2851
  %v2853 = vsel %vm1384, %v2846, %v2852
  %v2854 = vsel %vm1386, %v2847, %v2853
  %v2856 = vsel %vm1166, -1e+30, %v2854
  %v2857 = vsel %vm1390, %v2856, -inf
  %v2858 = vrot.slane %v2857, 4
  %v2859 = vmax.f32 %v2857, %v2858
  %v2860 = vrot.slane %v2859, 2
  %v2861 = vmax.f32 %v2859, %v2860
  %v2862 = vrot.slane %v2861, 1
  %v2863 = vmax.f32 %v2861, %v2862
  %v2864 = vsub.f32 %v2856, %v2863
  %v2865 = vmul.f32 %v2864, 1.442695
  %v2866 = vpow.pop %v2865
  %v2867 = vsel %vm1390, %v2866, 0.0
  %v2868 = vrot.slane %v2867, 4
  %v2869 = vadd.f32 %v2867, %v2868
  %v2870 = vrot.slane %v2869, 2
  %v2871 = vadd.f32 %v2869, %v2870
  %v2872 = vrot.slane %v2871, 1
  %v2873 = vadd.f32 %v2871, %v2872
  %v2874 = vrcp.pop %v2873
  %v2875 = vmul.f32 %v2873, %v2874
  %v2876 = vsub.f32 1.0, %v2875
  %v2877 = vmul.f32 %v2874, %v2876
  %v2878 = vadd.f32 %v2874, %v2877
  %vm2879 = vweird.f32 %v2873
  %vm2880 = vweird.f32 %v2874
  %vm2881 = vmor %vm2879, %vm2880
  %v2882 = vsel %vm2881, %v2874, %v2878
  %v2883 = vand.u32 2147483647, %v2873
  %vm2884 = vcmp.eq.f32.partialorder %v2883, 8.507059e+37
  %v2885 = vand.u32 %v2873, 2147483648
  %v2886 = vor.u32 1.1754944e-38, %v2885
  %v2887 = vsel %vm2884, %v2886, %v2882
  %v2888 = vmul.f32 %v2866, %v2887
  %v2889 = vperm.slane %v2888, 0
  %v2890 = vlaneseq
  %v2891 = vshrl.u32 %v2890, 7
  %2893 = vset.pattern.permute.xlu0 %v2891
  %2894 = vperm.xlu0 %2893, %v2889
  %v2895 = vpop.permute.xlu0 %2894
  %v2896 = vperm.slane %v2888, 1
  %v2897 = vlaneseq
  %v2898 = vshrl.u32 %v2897, 7
  %2900 = vset.pattern.permute.xlu0 %v2898
  %2901 = vperm.xlu0 %2900, %v2896
  %v2902 = vpop.permute.xlu0 %2901
  %v2903 = vperm.slane %v2888, 2
  %v2904 = vlaneseq
  %v2905 = vshrl.u32 %v2904, 7
  %2907 = vset.pattern.permute.xlu0 %v2905
  %2908 = vperm.xlu0 %2907, %v2903
  %v2909 = vpop.permute.xlu0 %2908
  %v2910 = vperm.slane %v2888, 3
  %v2911 = vlaneseq
  %v2912 = vshrl.u32 %v2911, 7
  %2914 = vset.pattern.permute.xlu0 %v2912
  %2915 = vperm.xlu0 %2914, %v2910
  %v2916 = vpop.permute.xlu0 %2915
  %v2917 = vperm.slane %v2888, 4
  %v2918 = vlaneseq
  %v2919 = vshrl.u32 %v2918, 7
  %2921 = vset.pattern.permute.xlu0 %v2919
  %2922 = vperm.xlu0 %2921, %v2917
  %v2923 = vpop.permute.xlu0 %2922
  %v2924 = vperm.slane %v2888, 5
  %v2925 = vlaneseq
  %v2926 = vshrl.u32 %v2925, 7
  %2928 = vset.pattern.permute.xlu0 %v2926
  %2929 = vperm.xlu0 %2928, %v2924
  %v2930 = vpop.permute.xlu0 %2929
  %v2931 = vperm.slane %v2888, 6
  %v2932 = vlaneseq
  %v2933 = vshrl.u32 %v2932, 7
  %2935 = vset.pattern.permute.xlu0 %v2933
  %2936 = vperm.xlu0 %2935, %v2931
  %v2937 = vpop.permute.xlu0 %2936
  %v2938 = vperm.slane %v2888, 7
  %v2939 = vlaneseq
  %v2940 = vshrl.u32 %v2939, 7
  %2942 = vset.pattern.permute.xlu0 %v2940
  %2943 = vperm.xlu0 %2942, %v2938
  %v2944 = vpop.permute.xlu0 %2943
  %v2945 = vmul.f32 %v2895, %v1149
  %v2946 = vmul.f32 %v2902, %v1150
  %v2947 = vmul.f32 %v2909, %v1151
  %v2948 = vmul.f32 %v2916, %v1152
  %v2949 = vmul.f32 %v2923, %v1153
  %v2950 = vmul.f32 %v2930, %v1154
  %v2951 = vmul.f32 %v2937, %v1155
  %v2952 = vmul.f32 %v2944, %v1156
  %v2953 = vsel %vm283, %v2945, 0.0
  %v2954 = vsel %vm283, %v2946, 0.0
  %v2955 = vadd.f32 %v2953, %v2954
  %v2956 = vsel %vm283, %v2947, 0.0
  %v2957 = vadd.f32 %v2955, %v2956
  %v2958 = vsel %vm283, %v2948, 0.0
  %v2959 = vadd.f32 %v2957, %v2958
  %v2960 = vsel %vm283, %v2949, 0.0
  %v2961 = vadd.f32 %v2959, %v2960
  %v2962 = vsel %vm283, %v2950, 0.0
  %v2963 = vadd.f32 %v2961, %v2962
  %v2964 = vsel %vm283, %v2951, 0.0
  %v2965 = vadd.f32 %v2963, %v2964
  %v2966 = vsel %vm283, %v2952, 0.0
  %v2967 = vadd.f32 %v2965, %v2966
  %v2968 = vmul.f32 %v2895, %v1157
  %v2969 = vmul.f32 %v2902, %v1158
  %v2970 = vmul.f32 %v2909, %v1159
  %v2971 = vmul.f32 %v2916, %v1160
  %v2972 = vmul.f32 %v2923, %v1161
  %v2973 = vmul.f32 %v2930, %v1162
  %v2974 = vmul.f32 %v2937, %v1163
  %v2975 = vmul.f32 %v2944, %v1164
  %v2976 = vsel %vm283, %v2968, 0.0
  %v2977 = vsel %vm283, %v2969, 0.0
  %v2978 = vadd.f32 %v2976, %v2977
  %v2979 = vsel %vm283, %v2970, 0.0
  %v2980 = vadd.f32 %v2978, %v2979
  %v2981 = vsel %vm283, %v2971, 0.0
  %v2982 = vadd.f32 %v2980, %v2981
  %v2983 = vsel %vm283, %v2972, 0.0
  %v2984 = vadd.f32 %v2982, %v2983
  %v2985 = vsel %vm283, %v2973, 0.0
  %v2986 = vadd.f32 %v2984, %v2985
  %v2987 = vsel %vm283, %v2974, 0.0
  %v2988 = vadd.f32 %v2986, %v2987
  %v2989 = vsel %vm283, %v2975, 0.0
  %v2990 = vadd.f32 %v2988, %v2989
  %2992 = vrot.lane.b32.xlu0 %v2990, 32
  %v2993 = vpop.permute.xlu0 %2992
  %2995 = vrot.lane.b32.xlu0 %v2730, 96
  %v2996 = vpop.permute.xlu0 %2995
  %v2998 = vsel %vm181, %v2967, %v2993
  %v2999 = vsel %vm183, %v2998, %v2996
  %v3001 = vsel %vm191, %v2999, 0
  %3003 = vmatpush.msra.mxu0 0.0
  %3004 = vmatpush.msra.mxu0 0.0
  %3005 = vmatpush.msra.mxu0 0.0
  %3006 = vmatpush.msra.mxu0 0.0
  %3007 = vmatpush.msra.mxu0 %v1545
  %3008 = vmatpush.msra.mxu0 %v1544
  %3009 = vmatpush.msra.mxu0 %v1543
  %3010 = vmatpush.msra.mxu0 %v1542
  %3011 = vmatpush.msra.mxu0 %v1541
  %3012 = vmatpush.msra.mxu0 %v1540
  %3013 = vmatpush.msra.mxu0 %v1539
  %3014 = vmatpush.msra.mxu0 %v1538
  %3015 = vmatpush.msra.mxu0 %v1537
  %3016 = vmatpush.msra.mxu0 %v1536
  %3017 = vmatpush.msra.mxu0 %v1535
  %3018 = vmatpush.msra.mxu0 %v1534
  %3019 = vmatmul.f32.gmra.mxu0 %v3001
  %v3020 = vpop.f32.mrf.mxu0
  %v3021 = vadd.f32 0.0, %v3020
  %3022 = vdwg.mxu0
  %v3023 = vtanh.pop %v3021
  %v3025 = vrot.slane %v3023, 6
  %3026 = vrot.lane.b32.xlu0 %v3025, 32
  %v3027 = vpop.permute.xlu0 %3026
  %v3029 = vrot.slane %v2730, 6
  %3030 = vrot.lane.b32.xlu0 %v3029, 96
  %v3031 = vpop.permute.xlu0 %3030
  %v3033 = vsel %vm181, %v164, %v3027
  %v3034 = vsel %vm183, %v3033, %v3031
  %v3036 = vrot.slane %v3034, 2
  %v3037 = vsel %vm191, %v3036, 0
  %3039 = vmatpush.msra.mxu0 0.0
  %3040 = vmatpush.msra.mxu0 0.0
  %3041 = vmatpush.msra.mxu0 0.0
  %3042 = vmatpush.msra.mxu0 0.0
  %3043 = vmatpush.msra.mxu0 %v1188
  %3044 = vmatpush.msra.mxu0 %v1187
  %3045 = vmatpush.msra.mxu0 %v1186
  %3046 = vmatpush.msra.mxu0 %v1185
  %3047 = vmatpush.msra.mxu0 %v1184
  %3048 = vmatpush.msra.mxu0 %v1183
  %3049 = vmatpush.msra.mxu0 %v1182
  %3050 = vmatpush.msra.mxu0 %v1181
  %3051 = vmatpush.msra.mxu0 %v1180
  %3052 = vmatpush.msra.mxu0 %v1179
  %3053 = vmatpush.msra.mxu0 %v1178
  %3054 = vmatpush.msra.mxu0 %v1177
  %3055 = vmatmul.f32.gmra.mxu0 %v3037
  %v3056 = vpop.f32.mrf.mxu0
  %v3057 = vadd.f32 %v1169, %v3056
  %3058 = vdwg.mxu0
  %v3059 = vxor.u32 %v3057, 2147483648
  %v3060 = vmul.f32 %v3059, 1.442695
  %v3061 = vpow.pop %v3060
  %v3062 = vadd.f32 %v3061, 1.0
  %v3063 = vrcp.pop %v3062
  %v3064 = vmul.f32 %v3062, %v3063
  %v3065 = vsub.f32 1.0, %v3064
  %v3066 = vmul.f32 %v3063, %v3065
  %v3067 = vadd.f32 %v3063, %v3066
  %vm3068 = vweird.f32 %v3062
  %vm3069 = vweird.f32 %v3063
  %vm3070 = vmor %vm3068, %vm3069
  %v3071 = vsel %vm3070, %v3063, %v3067
  %v3072 = vand.u32 2147483647, %v3062
  %vm3073 = vcmp.eq.f32.partialorder %v3072, 8.507059e+37
  %v3074 = vand.u32 %v3062, 2147483648
  %v3075 = vor.u32 1.1754944e-38, %v3074
  %v3076 = vsel %vm3073, %v3075, %v3071
  %v3077 = vmul.f32 1.0, %v3076
  %v3078 = vtanh.pop %v3057
  %v3079 = vmul.f32 %v3077, %v2724
  %3081 = vrot.lane.b32.xlu0 %v3078, 64
  %v3082 = vpop.permute.xlu0 %3081
  %v3084 = vmul.f32 %v3077, %v3082
  %3086 = vrot.lane.b32.xlu0 %v3084, 32
  %v3087 = vpop.permute.xlu0 %3086
  %v3089 = vadd.f32 %v3079, %v3087
  %v3090 = vtanh.pop %v3089
  %3092 = vrot.lane.b32.xlu0 %v3090, 64
  %v3093 = vpop.permute.xlu0 %3092
  %v3095 = vmul.f32 %v3077, %v3093
  %3097 = vrot.lane.b32.xlu0 %v3095, 32
  %v3098 = vpop.permute.xlu0 %3097
  %v3099 = vsel %vm181, %v3098, 0
  %3101 = vmatpush.msra.mxu0 0.0
  %3102 = vmatpush.msra.mxu0 0.0
  %3103 = vmatpush.msra.mxu0 0.0
  %3104 = vmatpush.msra.mxu0 0.0
  %3105 = vmatpush.msra.mxu0 0.0
  %3106 = vmatpush.msra.mxu0 0.0
  %3107 = vmatpush.msra.mxu0 0.0
  %3108 = vmatpush.msra.mxu0 0.0
  %3109 = vmatpush.msra.mxu0 0.0
  %3110 = vmatpush.msra.mxu0 0.0
  %3111 = vmatpush.msra.mxu0 0.0
  %3112 = vmatpush.msra.mxu0 0.0
  %3113 = vmatpush.msra.mxu0 %v1256
  %3114 = vmatpush.msra.mxu0 %v1255
  %3115 = vmatpush.msra.mxu0 %v1254
  %3116 = vmatpush.msra.mxu0 %v1253
  %3117 = vmatmul.f32.gmra.mxu0 %v3099
  %v3118 = vpop.f32.mrf.mxu0
  %v3119 = vadd.f32 0.0, %v3118
  %3120 = vdwg.mxu0
  %v3121 = vmul.f32 %v1149, %v3119
  %v3122 = vmul.f32 %v1150, %v3119
  %v3123 = vmul.f32 %v1151, %v3119
  %v3124 = vmul.f32 %v1152, %v3119
  %v3125 = vmul.f32 %v1153, %v3119
  %v3126 = vmul.f32 %v1154, %v3119
  %v3127 = vmul.f32 %v1155, %v3119
  %v3128 = vmul.f32 %v1156, %v3119
  %v3129 = vsel %vm283, %v3121, 0.0
  %3130 = vadd.xlane.f32.xlu0 %v3129
  %v3131 = vpop.xlane.xlu0 %3130
  %v3132 = vsel %vm283, %v3122, 0.0
  %3133 = vadd.xlane.f32.xlu0 %v3132
  %v3134 = vpop.xlane.xlu0 %3133
  %v3135 = vsel %vm283, %v3123, 0.0
  %3136 = vadd.xlane.f32.xlu0 %v3135
  %v3137 = vpop.xlane.xlu0 %3136
  %v3138 = vsel %vm283, %v3124, 0.0
  %3139 = vadd.xlane.f32.xlu0 %v3138
  %v3140 = vpop.xlane.xlu0 %3139
  %v3141 = vsel %vm283, %v3125, 0.0
  %3142 = vadd.xlane.f32.xlu0 %v3141
  %v3143 = vpop.xlane.xlu0 %3142
  %v3144 = vsel %vm283, %v3126, 0.0
  %3145 = vadd.xlane.f32.xlu0 %v3144
  %v3146 = vpop.xlane.xlu0 %3145
  %v3147 = vsel %vm283, %v3127, 0.0
  %3148 = vadd.xlane.f32.xlu0 %v3147
  %v3149 = vpop.xlane.xlu0 %3148
  %v3150 = vsel %vm283, %v3128, 0.0
  %3151 = vadd.xlane.f32.xlu0 %v3150
  %v3152 = vpop.xlane.xlu0 %3151
  %3154 = vrot.lane.b32.xlu0 %v3119, 96
  %v3155 = vpop.permute.xlu0 %3154
  %v3157 = vmul.f32 %v1157, %v3155
  %v3158 = vmul.f32 %v1158, %v3155
  %v3159 = vmul.f32 %v1159, %v3155
  %v3160 = vmul.f32 %v1160, %v3155
  %v3161 = vmul.f32 %v1161, %v3155
  %v3162 = vmul.f32 %v1162, %v3155
  %v3163 = vmul.f32 %v1163, %v3155
  %v3164 = vmul.f32 %v1164, %v3155
  %v3165 = vsel %vm283, %v3157, 0.0
  %3166 = vadd.xlane.f32.xlu0 %v3165
  %v3167 = vpop.xlane.xlu0 %3166
  %v3168 = vsel %vm283, %v3158, 0.0
  %3169 = vadd.xlane.f32.xlu0 %v3168
  %v3170 = vpop.xlane.xlu0 %3169
  %v3171 = vsel %vm283, %v3159, 0.0
  %3172 = vadd.xlane.f32.xlu0 %v3171
  %v3173 = vpop.xlane.xlu0 %3172
  %v3174 = vsel %vm283, %v3160, 0.0
  %3175 = vadd.xlane.f32.xlu0 %v3174
  %v3176 = vpop.xlane.xlu0 %3175
  %v3177 = vsel %vm283, %v3161, 0.0
  %3178 = vadd.xlane.f32.xlu0 %v3177
  %v3179 = vpop.xlane.xlu0 %3178
  %v3180 = vsel %vm283, %v3162, 0.0
  %3181 = vadd.xlane.f32.xlu0 %v3180
  %v3182 = vpop.xlane.xlu0 %3181
  %v3183 = vsel %vm283, %v3163, 0.0
  %3184 = vadd.xlane.f32.xlu0 %v3183
  %v3185 = vpop.xlane.xlu0 %3184
  %v3186 = vsel %vm283, %v3164, 0.0
  %3187 = vadd.xlane.f32.xlu0 %v3186
  %v3188 = vpop.xlane.xlu0 %3187
  %v3189 = vadd.f32 %v3131, %v3167
  %v3190 = vadd.f32 %v3134, %v3170
  %v3191 = vadd.f32 %v3137, %v3173
  %v3192 = vadd.f32 %v3140, %v3176
  %v3193 = vadd.f32 %v3143, %v3179
  %v3194 = vadd.f32 %v3146, %v3182
  %v3195 = vadd.f32 %v3149, %v3185
  %v3196 = vadd.f32 %v3152, %v3188
  %v3205 = vperm.slane %v3189, %v59
  %v3206 = vperm.slane %v3190, %v59
  %v3207 = vperm.slane %v3191, %v59
  %v3208 = vperm.slane %v3192, %v59
  %v3209 = vperm.slane %v3193, %v59
  %v3210 = vperm.slane %v3194, %v59
  %v3211 = vperm.slane %v3195, %v59
  %v3212 = vperm.slane %v3196, %v59
  %v3213 = vsel %vm1374, %v3206, %v3205
  %v3214 = vsel %vm1376, %v3207, %v3213
  %v3215 = vsel %vm1378, %v3208, %v3214
  %v3216 = vsel %vm1380, %v3209, %v3215
  %v3217 = vsel %vm1382, %v3210, %v3216
  %v3218 = vsel %vm1384, %v3211, %v3217
  %v3219 = vsel %vm1386, %v3212, %v3218
  %v3221 = vsel %vm1166, -1e+30, %v3219
  %v3222 = vsel %vm1390, %v3221, -inf
  %v3223 = vrot.slane %v3222, 4
  %v3224 = vmax.f32 %v3222, %v3223
  %v3225 = vrot.slane %v3224, 2
  %v3226 = vmax.f32 %v3224, %v3225
  %v3227 = vrot.slane %v3226, 1
  %v3228 = vmax.f32 %v3226, %v3227
  %v3229 = vsub.f32 %v3221, %v3228
  %v3230 = vmul.f32 %v3229, 1.442695
  %v3231 = vpow.pop %v3230
  %v3232 = vsel %vm1390, %v3231, 0.0
  %v3233 = vrot.slane %v3232, 4
  %v3234 = vadd.f32 %v3232, %v3233
  %v3235 = vrot.slane %v3234, 2
  %v3236 = vadd.f32 %v3234, %v3235
  %v3237 = vrot.slane %v3236, 1
  %v3238 = vadd.f32 %v3236, %v3237
  %v3239 = vrcp.pop %v3238
  %v3240 = vmul.f32 %v3238, %v3239
  %v3241 = vsub.f32 1.0, %v3240
  %v3242 = vmul.f32 %v3239, %v3241
  %v3243 = vadd.f32 %v3239, %v3242
  %vm3244 = vweird.f32 %v3238
  %vm3245 = vweird.f32 %v3239
  %vm3246 = vmor %vm3244, %vm3245
  %v3247 = vsel %vm3246, %v3239, %v3243
  %v3248 = vand.u32 2147483647, %v3238
  %vm3249 = vcmp.eq.f32.partialorder %v3248, 8.507059e+37
  %v3250 = vand.u32 %v3238, 2147483648
  %v3251 = vor.u32 1.1754944e-38, %v3250
  %v3252 = vsel %vm3249, %v3251, %v3247
  %v3253 = vmul.f32 %v3231, %v3252
  %v3254 = vperm.slane %v3253, 0
  %v3255 = vlaneseq
  %v3256 = vshrl.u32 %v3255, 7
  %3258 = vset.pattern.permute.xlu0 %v3256
  %3259 = vperm.xlu0 %3258, %v3254
  %v3260 = vpop.permute.xlu0 %3259
  %v3261 = vperm.slane %v3253, 1
  %v3262 = vlaneseq
  %v3263 = vshrl.u32 %v3262, 7
  %3265 = vset.pattern.permute.xlu0 %v3263
  %3266 = vperm.xlu0 %3265, %v3261
  %v3267 = vpop.permute.xlu0 %3266
  %v3268 = vperm.slane %v3253, 2
  %v3269 = vlaneseq
  %v3270 = vshrl.u32 %v3269, 7
  %3272 = vset.pattern.permute.xlu0 %v3270
  %3273 = vperm.xlu0 %3272, %v3268
  %v3274 = vpop.permute.xlu0 %3273
  %v3275 = vperm.slane %v3253, 3
  %v3276 = vlaneseq
  %v3277 = vshrl.u32 %v3276, 7
  %3279 = vset.pattern.permute.xlu0 %v3277
  %3280 = vperm.xlu0 %3279, %v3275
  %v3281 = vpop.permute.xlu0 %3280
  %v3282 = vperm.slane %v3253, 4
  %v3283 = vlaneseq
  %v3284 = vshrl.u32 %v3283, 7
  %3286 = vset.pattern.permute.xlu0 %v3284
  %3287 = vperm.xlu0 %3286, %v3282
  %v3288 = vpop.permute.xlu0 %3287
  %v3289 = vperm.slane %v3253, 5
  %v3290 = vlaneseq
  %v3291 = vshrl.u32 %v3290, 7
  %3293 = vset.pattern.permute.xlu0 %v3291
  %3294 = vperm.xlu0 %3293, %v3289
  %v3295 = vpop.permute.xlu0 %3294
  %v3296 = vperm.slane %v3253, 6
  %v3297 = vlaneseq
  %v3298 = vshrl.u32 %v3297, 7
  %3300 = vset.pattern.permute.xlu0 %v3298
  %3301 = vperm.xlu0 %3300, %v3296
  %v3302 = vpop.permute.xlu0 %3301
  %v3303 = vperm.slane %v3253, 7
  %v3304 = vlaneseq
  %v3305 = vshrl.u32 %v3304, 7
  %3307 = vset.pattern.permute.xlu0 %v3305
  %3308 = vperm.xlu0 %3307, %v3303
  %v3309 = vpop.permute.xlu0 %3308
  %v3310 = vmul.f32 %v3260, %v1149
  %v3311 = vmul.f32 %v3267, %v1150
  %v3312 = vmul.f32 %v3274, %v1151
  %v3313 = vmul.f32 %v3281, %v1152
  %v3314 = vmul.f32 %v3288, %v1153
  %v3315 = vmul.f32 %v3295, %v1154
  %v3316 = vmul.f32 %v3302, %v1155
  %v3317 = vmul.f32 %v3309, %v1156
  %v3318 = vsel %vm283, %v3310, 0.0
  %v3319 = vsel %vm283, %v3311, 0.0
  %v3320 = vadd.f32 %v3318, %v3319
  %v3321 = vsel %vm283, %v3312, 0.0
  %v3322 = vadd.f32 %v3320, %v3321
  %v3323 = vsel %vm283, %v3313, 0.0
  %v3324 = vadd.f32 %v3322, %v3323
  %v3325 = vsel %vm283, %v3314, 0.0
  %v3326 = vadd.f32 %v3324, %v3325
  %v3327 = vsel %vm283, %v3315, 0.0
  %v3328 = vadd.f32 %v3326, %v3327
  %v3329 = vsel %vm283, %v3316, 0.0
  %v3330 = vadd.f32 %v3328, %v3329
  %v3331 = vsel %vm283, %v3317, 0.0
  %v3332 = vadd.f32 %v3330, %v3331
  %v3333 = vmul.f32 %v3260, %v1157
  %v3334 = vmul.f32 %v3267, %v1158
  %v3335 = vmul.f32 %v3274, %v1159
  %v3336 = vmul.f32 %v3281, %v1160
  %v3337 = vmul.f32 %v3288, %v1161
  %v3338 = vmul.f32 %v3295, %v1162
  %v3339 = vmul.f32 %v3302, %v1163
  %v3340 = vmul.f32 %v3309, %v1164
  %v3341 = vsel %vm283, %v3333, 0.0
  %v3342 = vsel %vm283, %v3334, 0.0
  %v3343 = vadd.f32 %v3341, %v3342
  %v3344 = vsel %vm283, %v3335, 0.0
  %v3345 = vadd.f32 %v3343, %v3344
  %v3346 = vsel %vm283, %v3336, 0.0
  %v3347 = vadd.f32 %v3345, %v3346
  %v3348 = vsel %vm283, %v3337, 0.0
  %v3349 = vadd.f32 %v3347, %v3348
  %v3350 = vsel %vm283, %v3338, 0.0
  %v3351 = vadd.f32 %v3349, %v3350
  %v3352 = vsel %vm283, %v3339, 0.0
  %v3353 = vadd.f32 %v3351, %v3352
  %v3354 = vsel %vm283, %v3340, 0.0
  %v3355 = vadd.f32 %v3353, %v3354
  %3357 = vrot.lane.b32.xlu0 %v3355, 32
  %v3358 = vpop.permute.xlu0 %3357
  %3360 = vrot.lane.b32.xlu0 %v3095, 96
  %v3361 = vpop.permute.xlu0 %3360
  %v3363 = vsel %vm181, %v3332, %v3358
  %v3364 = vsel %vm183, %v3363, %v3361
  %v3366 = vsel %vm191, %v3364, 0
  %3368 = vmatpush.msra.mxu0 0.0
  %3369 = vmatpush.msra.mxu0 0.0
  %3370 = vmatpush.msra.mxu0 0.0
  %3371 = vmatpush.msra.mxu0 0.0
  %3372 = vmatpush.msra.mxu0 %v1545
  %3373 = vmatpush.msra.mxu0 %v1544
  %3374 = vmatpush.msra.mxu0 %v1543
  %3375 = vmatpush.msra.mxu0 %v1542
  %3376 = vmatpush.msra.mxu0 %v1541
  %3377 = vmatpush.msra.mxu0 %v1540
  %3378 = vmatpush.msra.mxu0 %v1539
  %3379 = vmatpush.msra.mxu0 %v1538
  %3380 = vmatpush.msra.mxu0 %v1537
  %3381 = vmatpush.msra.mxu0 %v1536
  %3382 = vmatpush.msra.mxu0 %v1535
  %3383 = vmatpush.msra.mxu0 %v1534
  %3384 = vmatmul.f32.gmra.mxu0 %v3366
  %v3385 = vpop.f32.mrf.mxu0
  %v3386 = vadd.f32 0.0, %v3385
  %3387 = vdwg.mxu0
  %v3388 = vtanh.pop %v3386
  %v3390 = vrot.slane %v3388, 4
  %3391 = vrot.lane.b32.xlu0 %v3390, 32
  %v3392 = vpop.permute.xlu0 %3391
  %v3394 = vrot.slane %v3095, 4
  %3395 = vrot.lane.b32.xlu0 %v3394, 96
  %v3396 = vpop.permute.xlu0 %3395
  %v3398 = vsel %vm181, %v164, %v3392
  %v3399 = vsel %vm183, %v3398, %v3396
  %v3401 = vrot.slane %v3399, 4
  %v3402 = vsel %vm191, %v3401, 0
  %3404 = vmatpush.msra.mxu0 0.0
  %3405 = vmatpush.msra.mxu0 0.0
  %3406 = vmatpush.msra.mxu0 0.0
  %3407 = vmatpush.msra.mxu0 0.0
  %3408 = vmatpush.msra.mxu0 %v1188
  %3409 = vmatpush.msra.mxu0 %v1187
  %3410 = vmatpush.msra.mxu0 %v1186
  %3411 = vmatpush.msra.mxu0 %v1185
  %3412 = vmatpush.msra.mxu0 %v1184
  %3413 = vmatpush.msra.mxu0 %v1183
  %3414 = vmatpush.msra.mxu0 %v1182
  %3415 = vmatpush.msra.mxu0 %v1181
  %3416 = vmatpush.msra.mxu0 %v1180
  %3417 = vmatpush.msra.mxu0 %v1179
  %3418 = vmatpush.msra.mxu0 %v1178
  %3419 = vmatpush.msra.mxu0 %v1177
  %3420 = vmatmul.f32.gmra.mxu0 %v3402
  %v3421 = vpop.f32.mrf.mxu0
  %v3422 = vadd.f32 %v1169, %v3421
  %3423 = vdwg.mxu0
  %v3424 = vxor.u32 %v3422, 2147483648
  %v3425 = vmul.f32 %v3424, 1.442695
  %v3426 = vpow.pop %v3425
  %v3427 = vadd.f32 %v3426, 1.0
  %v3428 = vrcp.pop %v3427
  %v3429 = vmul.f32 %v3427, %v3428
  %v3430 = vsub.f32 1.0, %v3429
  %v3431 = vmul.f32 %v3428, %v3430
  %v3432 = vadd.f32 %v3428, %v3431
  %vm3433 = vweird.f32 %v3427
  %vm3434 = vweird.f32 %v3428
  %vm3435 = vmor %vm3433, %vm3434
  %v3436 = vsel %vm3435, %v3428, %v3432
  %v3437 = vand.u32 2147483647, %v3427
  %vm3438 = vcmp.eq.f32.partialorder %v3437, 8.507059e+37
  %v3439 = vand.u32 %v3427, 2147483648
  %v3440 = vor.u32 1.1754944e-38, %v3439
  %v3441 = vsel %vm3438, %v3440, %v3436
  %v3442 = vmul.f32 1.0, %v3441
  %v3443 = vtanh.pop %v3422
  %v3444 = vmul.f32 %v3442, %v3089
  %3446 = vrot.lane.b32.xlu0 %v3443, 64
  %v3447 = vpop.permute.xlu0 %3446
  %v3449 = vmul.f32 %v3442, %v3447
  %3451 = vrot.lane.b32.xlu0 %v3449, 32
  %v3452 = vpop.permute.xlu0 %3451
  %v3454 = vadd.f32 %v3444, %v3452
  %v3455 = vtanh.pop %v3454
  %3457 = vrot.lane.b32.xlu0 %v3455, 64
  %v3458 = vpop.permute.xlu0 %3457
  %v3460 = vmul.f32 %v3442, %v3458
  %3462 = vrot.lane.b32.xlu0 %v3460, 32
  %v3463 = vpop.permute.xlu0 %3462
  %v3464 = vsel %vm181, %v3463, 0
  %3466 = vmatpush.msra.mxu0 0.0
  %3467 = vmatpush.msra.mxu0 0.0
  %3468 = vmatpush.msra.mxu0 0.0
  %3469 = vmatpush.msra.mxu0 0.0
  %3470 = vmatpush.msra.mxu0 0.0
  %3471 = vmatpush.msra.mxu0 0.0
  %3472 = vmatpush.msra.mxu0 0.0
  %3473 = vmatpush.msra.mxu0 0.0
  %3474 = vmatpush.msra.mxu0 0.0
  %3475 = vmatpush.msra.mxu0 0.0
  %3476 = vmatpush.msra.mxu0 0.0
  %3477 = vmatpush.msra.mxu0 0.0
  %3478 = vmatpush.msra.mxu0 %v1256
  %3479 = vmatpush.msra.mxu0 %v1255
  %3480 = vmatpush.msra.mxu0 %v1254
  %3481 = vmatpush.msra.mxu0 %v1253
  %3482 = vmatmul.f32.gmra.mxu0 %v3464
  %v3483 = vpop.f32.mrf.mxu0
  %v3484 = vadd.f32 0.0, %v3483
  %3485 = vdwg.mxu0
  %v3486 = vmul.f32 %v1149, %v3484
  %v3487 = vmul.f32 %v1150, %v3484
  %v3488 = vmul.f32 %v1151, %v3484
  %v3489 = vmul.f32 %v1152, %v3484
  %v3490 = vmul.f32 %v1153, %v3484
  %v3491 = vmul.f32 %v1154, %v3484
  %v3492 = vmul.f32 %v1155, %v3484
  %v3493 = vmul.f32 %v1156, %v3484
  %v3494 = vsel %vm283, %v3486, 0.0
  %3495 = vadd.xlane.f32.xlu0 %v3494
  %v3496 = vpop.xlane.xlu0 %3495
  %v3497 = vsel %vm283, %v3487, 0.0
  %3498 = vadd.xlane.f32.xlu0 %v3497
  %v3499 = vpop.xlane.xlu0 %3498
  %v3500 = vsel %vm283, %v3488, 0.0
  %3501 = vadd.xlane.f32.xlu0 %v3500
  %v3502 = vpop.xlane.xlu0 %3501
  %v3503 = vsel %vm283, %v3489, 0.0
  %3504 = vadd.xlane.f32.xlu0 %v3503
  %v3505 = vpop.xlane.xlu0 %3504
  %v3506 = vsel %vm283, %v3490, 0.0
  %3507 = vadd.xlane.f32.xlu0 %v3506
  %v3508 = vpop.xlane.xlu0 %3507
  %v3509 = vsel %vm283, %v3491, 0.0
  %3510 = vadd.xlane.f32.xlu0 %v3509
  %v3511 = vpop.xlane.xlu0 %3510
  %v3512 = vsel %vm283, %v3492, 0.0
  %3513 = vadd.xlane.f32.xlu0 %v3512
  %v3514 = vpop.xlane.xlu0 %3513
  %v3515 = vsel %vm283, %v3493, 0.0
  %3516 = vadd.xlane.f32.xlu0 %v3515
  %v3517 = vpop.xlane.xlu0 %3516
  %3519 = vrot.lane.b32.xlu0 %v3484, 96
  %v3520 = vpop.permute.xlu0 %3519
  %v3522 = vmul.f32 %v1157, %v3520
  %v3523 = vmul.f32 %v1158, %v3520
  %v3524 = vmul.f32 %v1159, %v3520
  %v3525 = vmul.f32 %v1160, %v3520
  %v3526 = vmul.f32 %v1161, %v3520
  %v3527 = vmul.f32 %v1162, %v3520
  %v3528 = vmul.f32 %v1163, %v3520
  %v3529 = vmul.f32 %v1164, %v3520
  %v3530 = vsel %vm283, %v3522, 0.0
  %3531 = vadd.xlane.f32.xlu0 %v3530
  %v3532 = vpop.xlane.xlu0 %3531
  %v3533 = vsel %vm283, %v3523, 0.0
  %3534 = vadd.xlane.f32.xlu0 %v3533
  %v3535 = vpop.xlane.xlu0 %3534
  %v3536 = vsel %vm283, %v3524, 0.0
  %3537 = vadd.xlane.f32.xlu0 %v3536
  %v3538 = vpop.xlane.xlu0 %3537
  %v3539 = vsel %vm283, %v3525, 0.0
  %3540 = vadd.xlane.f32.xlu0 %v3539
  %v3541 = vpop.xlane.xlu0 %3540
  %v3542 = vsel %vm283, %v3526, 0.0
  %3543 = vadd.xlane.f32.xlu0 %v3542
  %v3544 = vpop.xlane.xlu0 %3543
  %v3545 = vsel %vm283, %v3527, 0.0
  %3546 = vadd.xlane.f32.xlu0 %v3545
  %v3547 = vpop.xlane.xlu0 %3546
  %v3548 = vsel %vm283, %v3528, 0.0
  %3549 = vadd.xlane.f32.xlu0 %v3548
  %v3550 = vpop.xlane.xlu0 %3549
  %v3551 = vsel %vm283, %v3529, 0.0
  %3552 = vadd.xlane.f32.xlu0 %v3551
  %v3553 = vpop.xlane.xlu0 %3552
  %v3554 = vadd.f32 %v3496, %v3532
  %v3555 = vadd.f32 %v3499, %v3535
  %v3556 = vadd.f32 %v3502, %v3538
  %v3557 = vadd.f32 %v3505, %v3541
  %v3558 = vadd.f32 %v3508, %v3544
  %v3559 = vadd.f32 %v3511, %v3547
  %v3560 = vadd.f32 %v3514, %v3550
  %v3561 = vadd.f32 %v3517, %v3553
  %v3570 = vperm.slane %v3554, %v59
  %v3571 = vperm.slane %v3555, %v59
  %v3572 = vperm.slane %v3556, %v59
  %v3573 = vperm.slane %v3557, %v59
  %v3574 = vperm.slane %v3558, %v59
  %v3575 = vperm.slane %v3559, %v59
  %v3576 = vperm.slane %v3560, %v59
  %v3577 = vperm.slane %v3561, %v59
  %v3578 = vsel %vm1374, %v3571, %v3570
  %v3579 = vsel %vm1376, %v3572, %v3578
  %v3580 = vsel %vm1378, %v3573, %v3579
  %v3581 = vsel %vm1380, %v3574, %v3580
  %v3582 = vsel %vm1382, %v3575, %v3581
  %v3583 = vsel %vm1384, %v3576, %v3582
  %v3584 = vsel %vm1386, %v3577, %v3583
  %v3586 = vsel %vm1166, -1e+30, %v3584
  %v3587 = vsel %vm1390, %v3586, -inf
  %v3588 = vrot.slane %v3587, 4
  %v3589 = vmax.f32 %v3587, %v3588
  %v3590 = vrot.slane %v3589, 2
  %v3591 = vmax.f32 %v3589, %v3590
  %v3592 = vrot.slane %v3591, 1
  %v3593 = vmax.f32 %v3591, %v3592
  %v3594 = vsub.f32 %v3586, %v3593
  %v3595 = vmul.f32 %v3594, 1.442695
  %v3596 = vpow.pop %v3595
  %v3597 = vsel %vm1390, %v3596, 0.0
  %v3598 = vrot.slane %v3597, 4
  %v3599 = vadd.f32 %v3597, %v3598
  %v3600 = vrot.slane %v3599, 2
  %v3601 = vadd.f32 %v3599, %v3600
  %v3602 = vrot.slane %v3601, 1
  %v3603 = vadd.f32 %v3601, %v3602
  %v3604 = vrcp.pop %v3603
  %v3605 = vmul.f32 %v3603, %v3604
  %v3606 = vsub.f32 1.0, %v3605
  %v3607 = vmul.f32 %v3604, %v3606
  %v3608 = vadd.f32 %v3604, %v3607
  %vm3609 = vweird.f32 %v3603
  %vm3610 = vweird.f32 %v3604
  %vm3611 = vmor %vm3609, %vm3610
  %v3612 = vsel %vm3611, %v3604, %v3608
  %v3613 = vand.u32 2147483647, %v3603
  %vm3614 = vcmp.eq.f32.partialorder %v3613, 8.507059e+37
  %v3615 = vand.u32 %v3603, 2147483648
  %v3616 = vor.u32 1.1754944e-38, %v3615
  %v3617 = vsel %vm3614, %v3616, %v3612
  %v3618 = vmul.f32 %v3596, %v3617
  %v3619 = vperm.slane %v3618, 0
  %v3620 = vlaneseq
  %v3621 = vshrl.u32 %v3620, 7
  %3623 = vset.pattern.permute.xlu0 %v3621
  %3624 = vperm.xlu0 %3623, %v3619
  %v3625 = vpop.permute.xlu0 %3624
  %v3626 = vperm.slane %v3618, 1
  %v3627 = vlaneseq
  %v3628 = vshrl.u32 %v3627, 7
  %3630 = vset.pattern.permute.xlu0 %v3628
  %3631 = vperm.xlu0 %3630, %v3626
  %v3632 = vpop.permute.xlu0 %3631
  %v3633 = vperm.slane %v3618, 2
  %v3634 = vlaneseq
  %v3635 = vshrl.u32 %v3634, 7
  %3637 = vset.pattern.permute.xlu0 %v3635
  %3638 = vperm.xlu0 %3637, %v3633
  %v3639 = vpop.permute.xlu0 %3638
  %v3640 = vperm.slane %v3618, 3
  %v3641 = vlaneseq
  %v3642 = vshrl.u32 %v3641, 7
  %3644 = vset.pattern.permute.xlu0 %v3642
  %3645 = vperm.xlu0 %3644, %v3640
  %v3646 = vpop.permute.xlu0 %3645
  %v3647 = vperm.slane %v3618, 4
  %v3648 = vlaneseq
  %v3649 = vshrl.u32 %v3648, 7
  %3651 = vset.pattern.permute.xlu0 %v3649
  %3652 = vperm.xlu0 %3651, %v3647
  %v3653 = vpop.permute.xlu0 %3652
  %v3654 = vperm.slane %v3618, 5
  %v3655 = vlaneseq
  %v3656 = vshrl.u32 %v3655, 7
  %3658 = vset.pattern.permute.xlu0 %v3656
  %3659 = vperm.xlu0 %3658, %v3654
  %v3660 = vpop.permute.xlu0 %3659
  %v3661 = vperm.slane %v3618, 6
  %v3662 = vlaneseq
  %v3663 = vshrl.u32 %v3662, 7
  %3665 = vset.pattern.permute.xlu0 %v3663
  %3666 = vperm.xlu0 %3665, %v3661
  %v3667 = vpop.permute.xlu0 %3666
  %v3668 = vperm.slane %v3618, 7
  %v3669 = vlaneseq
  %v3670 = vshrl.u32 %v3669, 7
  %3672 = vset.pattern.permute.xlu0 %v3670
  %3673 = vperm.xlu0 %3672, %v3668
  %v3674 = vpop.permute.xlu0 %3673
  %v3675 = vmul.f32 %v3625, %v1149
  %v3676 = vmul.f32 %v3632, %v1150
  %v3677 = vmul.f32 %v3639, %v1151
  %v3678 = vmul.f32 %v3646, %v1152
  %v3679 = vmul.f32 %v3653, %v1153
  %v3680 = vmul.f32 %v3660, %v1154
  %v3681 = vmul.f32 %v3667, %v1155
  %v3682 = vmul.f32 %v3674, %v1156
  %v3683 = vsel %vm283, %v3675, 0.0
  %v3684 = vsel %vm283, %v3676, 0.0
  %v3685 = vadd.f32 %v3683, %v3684
  %v3686 = vsel %vm283, %v3677, 0.0
  %v3687 = vadd.f32 %v3685, %v3686
  %v3688 = vsel %vm283, %v3678, 0.0
  %v3689 = vadd.f32 %v3687, %v3688
  %v3690 = vsel %vm283, %v3679, 0.0
  %v3691 = vadd.f32 %v3689, %v3690
  %v3692 = vsel %vm283, %v3680, 0.0
  %v3693 = vadd.f32 %v3691, %v3692
  %v3694 = vsel %vm283, %v3681, 0.0
  %v3695 = vadd.f32 %v3693, %v3694
  %v3696 = vsel %vm283, %v3682, 0.0
  %v3697 = vadd.f32 %v3695, %v3696
  %v3698 = vmul.f32 %v3625, %v1157
  %v3699 = vmul.f32 %v3632, %v1158
  %v3700 = vmul.f32 %v3639, %v1159
  %v3701 = vmul.f32 %v3646, %v1160
  %v3702 = vmul.f32 %v3653, %v1161
  %v3703 = vmul.f32 %v3660, %v1162
  %v3704 = vmul.f32 %v3667, %v1163
  %v3705 = vmul.f32 %v3674, %v1164
  %v3706 = vsel %vm283, %v3698, 0.0
  %v3707 = vsel %vm283, %v3699, 0.0
  %v3708 = vadd.f32 %v3706, %v3707
  %v3709 = vsel %vm283, %v3700, 0.0
  %v3710 = vadd.f32 %v3708, %v3709
  %v3711 = vsel %vm283, %v3701, 0.0
  %v3712 = vadd.f32 %v3710, %v3711
  %v3713 = vsel %vm283, %v3702, 0.0
  %v3714 = vadd.f32 %v3712, %v3713
  %v3715 = vsel %vm283, %v3703, 0.0
  %v3716 = vadd.f32 %v3714, %v3715
  %v3717 = vsel %vm283, %v3704, 0.0
  %v3718 = vadd.f32 %v3716, %v3717
  %v3719 = vsel %vm283, %v3705, 0.0
  %v3720 = vadd.f32 %v3718, %v3719
  %3722 = vrot.lane.b32.xlu0 %v3720, 32
  %v3723 = vpop.permute.xlu0 %3722
  %3725 = vrot.lane.b32.xlu0 %v3460, 96
  %v3726 = vpop.permute.xlu0 %3725
  %v3728 = vsel %vm181, %v3697, %v3723
  %v3729 = vsel %vm183, %v3728, %v3726
  %v3731 = vsel %vm191, %v3729, 0
  %3733 = vmatpush.msra.mxu0 0.0
  %3734 = vmatpush.msra.mxu0 0.0
  %3735 = vmatpush.msra.mxu0 0.0
  %3736 = vmatpush.msra.mxu0 0.0
  %3737 = vmatpush.msra.mxu0 %v1545
  %3738 = vmatpush.msra.mxu0 %v1544
  %3739 = vmatpush.msra.mxu0 %v1543
  %3740 = vmatpush.msra.mxu0 %v1542
  %3741 = vmatpush.msra.mxu0 %v1541
  %3742 = vmatpush.msra.mxu0 %v1540
  %3743 = vmatpush.msra.mxu0 %v1539
  %3744 = vmatpush.msra.mxu0 %v1538
  %3745 = vmatpush.msra.mxu0 %v1537
  %3746 = vmatpush.msra.mxu0 %v1536
  %3747 = vmatpush.msra.mxu0 %v1535
  %3748 = vmatpush.msra.mxu0 %v1534
  %3749 = vmatmul.f32.gmra.mxu0 %v3731
  %v3750 = vpop.f32.mrf.mxu0
  %v3751 = vadd.f32 0.0, %v3750
  %3752 = vdwg.mxu0
  %v3753 = vtanh.pop %v3751
  %v3754 = vrot.slane %v1934, 6
  %v3756 = vrot.slane %v2299, 4
  %v3758 = vrot.slane %v2664, 2
  %v3760 = vrot.slane %v3388, 6
  %v3763 = vrot.slane %v3753, 4
  %v3765 = vsel %vm174, %v1569, %v3754
  %vm3766 = vcmask 1043456
  %v3767 = vsel %vm3766, %v3765, %v3756
  %vm3768 = vcmask 1045504
  %v3769 = vsel %vm3768, %v3767, %v3758
  %v3770 = vsel %vm174, %v3023, %v3760
  %v3771 = vsel %vm3766, %v3770, %v3763
  %v3772 = vld [vmem:[%s16] sm:$0xff]
  %v3773 = vld [vmem:[%s16 + $0x8] sm:$0xff]
  %v3774 = vld [vmem:[%s16 + $0x10] sm:$0xff]
  %v3775 = vld [vmem:[%s16 + $0x18] sm:$0xff]
  %v3777 = vsel %vm181, %v3769, 0
  %v3780 = vsel %vm181, %v3771, 0
  %3782 = vmatpush.msra.mxu0 0.0
  %3783 = vmatpush.msra.mxu0 0.0
  %3784 = vmatpush.msra.mxu0 0.0
  %3785 = vmatpush.msra.mxu0 0.0
  %3786 = vmatpush.msra.mxu0 0.0
  %3787 = vmatpush.msra.mxu0 0.0
  %3788 = vmatpush.msra.mxu0 0.0
  %3789 = vmatpush.msra.mxu0 0.0
  %3790 = vmatpush.msra.mxu0 0.0
  %3791 = vmatpush.msra.mxu0 0.0
  %3792 = vmatpush.msra.mxu0 0.0
  %3793 = vmatpush.msra.mxu0 0.0
  %3794 = vmatpush.msra.mxu0 %v3775
  %3795 = vmatpush.msra.mxu0 %v3774
  %3796 = vmatpush.msra.mxu0 %v3773
  %3797 = vmatpush.msra.mxu0 %v3772
  %3798 = vmatmul.f32.gmra.mxu0 %v3777
  %v3799 = vpop.f32.mrf.mxu0
  %v3800 = vadd.f32 0.0, %v3799
  %3801 = vmatmul.f32.gmra.mxu0 %v3780
  %v3802 = vpop.f32.mrf.mxu0
  %v3803 = vadd.f32 0.0, %v3802
  %3804 = vdwg.mxu0
  %vm3805 = vcmp.ge.s32.totalorder %v59, 48
  %v3806 = vsel %vm3805, -1e+30, %v3800
  %v3807 = vsel %vm3805, -1e+30, %v3803
  %3808 = vmax.xlane.f32.xlu0 %v3806
  %v3809 = vpop.xlane.xlu0 %3808
  %v3810 = vsel %vm3768, %v3807, -inf
  %3811 = vmax.xlane.f32.xlu0 %v3810
  %v3812 = vpop.xlane.xlu0 %3811
  %v3813 = vsub.f32 %v3806, %v3809
  %v3814 = vsub.f32 %v3807, %v3812
  %v3815 = vmul.f32 %v3813, 1.442695
  %v3816 = vpow.pop %v3815
  %v3817 = vmul.f32 %v3814, 1.442695
  %v3818 = vpow.pop %v3817
  %3819 = vadd.xlane.f32.xlu0 %v3816
  %v3820 = vpop.xlane.xlu0 %3819
  %v3821 = vsel %vm3768, %v3818, 0.0
  %3822 = vadd.xlane.f32.xlu0 %v3821
  %v3823 = vpop.xlane.xlu0 %3822
  %v3824 = vlog2.pop %v3820
  %v3825 = vmul.f32 %v3824, 0.6931472
  %v3826 = vlog2.pop %v3823
  %v3827 = vmul.f32 %v3826, 0.6931472
  %v3828 = vadd.f32 %v3825, %v3809
  %v3829 = vadd.f32 %v3827, %v3812
  %v3830 = vld [vmem:[%s4] sm:$0xff]
  %v3831 = vld [vmem:[%s4 + $0x8] sm:$0x3f]
  %3832 = vset.pattern.permute.xlu0 0
  %3833 = vperm.xlu0 %3832, %v3830
  %v3834 = vpop.permute.xlu0 %3833
  %3835 = vset.pattern.permute.xlu0 0
  %3836 = vperm.xlu0 %3835, %v3831
  %v3837 = vpop.permute.xlu0 %3836
  %vm3838 = vcmp.eq.s32.totalorder %v59, %v3834
  %vm3839 = vcmp.eq.s32.totalorder %v59, %v3837
  %v3840 = vsel %vm3838, %v3806, 0.0
  %v3841 = vsel %vm3839, %v3807, 0.0
  %3842 = vadd.xlane.f32.xlu0 %v3840
  %v3843 = vpop.xlane.xlu0 %3842
  %v3844 = vsel %vm3768, %v3841, 0.0
  %3845 = vadd.xlane.f32.xlu0 %v3844
  %v3846 = vpop.xlane.xlu0 %3845
  %vm3847 = vcmp.ne.s32.totalorder %v3830, 0
  %vm3848 = vcmp.ne.s32.totalorder %v3831, 0
  %v3849 = vsel %vm3847, 1, 0
  %v3850 = vsel %vm3848, 1, 0
  %v3851 = vcvt.s32.f32 %v3849
  %v3852 = vcvt.s32.f32 %v3850
  %v3853 = vsub.f32 %v3843, %v3828
  %v3854 = vsub.f32 %v3846, %v3829
  %v3855 = vmul.f32 %v3853, %v3851
  %v3856 = vmul.f32 %v3854, %v3852
  %v3857 = vadd.f32 %v3855, 0.0
  %v3859 = vrot.slane %v3855, 2
  %v3861 = vadd.f32 %v3857, %v3859
  %v3862 = vrot.slane %v3855, 4
  %v3864 = vadd.f32 %v3861, %v3862
  %v3865 = vrot.slane %v3855, 6
  %v3867 = vadd.f32 %v3864, %v3865
  %v3868 = vadd.f32 %v3867, %v3856
  %v3870 = vrot.slane %v3856, 2
  %v3872 = vadd.f32 %v3868, %v3870
  %v3873 = vrot.slane %v3856, 4
  %v3875 = vadd.f32 %v3872, %v3873
  %vm3876 = vcmask 1024
  %3877 = vst.msk [vmem:[%s17] sm:$0x3] %vm3876, %v3875
  // Predicated region
  $region70: #{nmt_forward_pallas.1} parent=0 // pred_check
    _
  $region71: #{nmt_forward_pallas.1} parent=0 // pred_check_branch
    %3879 = sbr.rel (0) target = $region73
  $region72: #{nmt_forward_pallas.1} parent=0 // pred_region
    _
  $region73: #{nmt_forward_pallas.1} parent=0 // pred_fallthru
    _
  // Predicated region
  $region74: #{nmt_forward_pallas.1} parent=0 // pred_check
    _
  $region75: #{nmt_forward_pallas.1} parent=0 // pred_check_branch
    %3881 = sbr.rel (0) target = $region77
  $region76: #{nmt_forward_pallas.1} parent=0 // pred_region
    _
  $region77: #{nmt_forward_pallas.1} parent=0 // pred_fallthru
    _

</llo_original>
